<compile_context>
chip_gen: v5e
topology: v5e:2x2
jax: 0.10.0
libtpu: 0.0.40
codegen_flags: <defaults>
</compile_context>

<pallas_src>
import jax
import jax.numpy as jnp
from jax.experimental import pallas as pl
from jax.experimental.pallas import tpu as pltpu


# --------------------------------------------------------------------------
# Tiling selection
# --------------------------------------------------------------------------
def _divisors(n):
    small, large = [], []
    i = 1
    while i * i <= n:
        if n % i == 0:
            small.append(i)
            if i != n // i:
                large.append(n // i)
        i += 1
    return small + large[::-1]


def _choose_tiling(A, C, itemsize, target_block_bytes):
    """Pick (G, R, L, SUB).

    G  : anchors per lane-row (must divide A so the reshape is a free view)
    L  : lanes per row  = G * C   (prefer a multiple of 128, ~512 wide)
    R  : rows per batch = A // G  (prefer a multiple of 8 -> sublane tiling)
    SUB: rows per block (multiple of 8, or all of R), block ~target bytes.
    """
    def g_key(g):
        lanes = g * C
        rows = A // g
        return (lanes % 128 != 0,     # lane-dense vregs, unmasked stores
                rows % 8 != 0,        # rows can tile the 8-sublane axis
                abs(lanes - 512))     # ~512 lanes: measured HBM sweet spot

    G = min((g for g in _divisors(A) if g * C <= 4096), key=g_key)
    R = A // G
    L = G * C
    target_rows = max(1, target_block_bytes // (L * itemsize))
    # Block's second-minor dim must be a multiple of 8 or equal the full R.
    candidates = [R] + [s for s in _divisors(R) if s % 8 == 0]
    SUB = min(candidates, key=lambda s: (abs(s - target_rows), s))
    return G, R, L, SUB


# --------------------------------------------------------------------------
# Kernel
# --------------------------------------------------------------------------
def _expand_anchor_weights(w, expand):
    """Exactly broadcast per-anchor weights (SUB, G) -> per-element (SUB, L).

    Each w[:, g] must be repeated C times along the lane axis (L = G*C).
    A jnp.repeat along lanes would need an expensive lane relayout, so we use
    the otherwise-idle MXU with a constant 0/1 expansion matrix.  The f32
    weights are split into three bf16-exact addends so every MXU product is
    exact (0/1 * bf16) and the f32 accumulation reconstructs the original
    weight to <~1 ulp, independent of the MXU's f32 pass decomposition.
    """
    hi = w.astype(jnp.bfloat16)
    r1 = w - hi.astype(jnp.float32)
    mid = r1.astype(jnp.bfloat16)
    lo = (r1 - mid.astype(jnp.float32)).astype(jnp.bfloat16)
    out = jnp.dot(hi, expand, preferred_element_type=jnp.float32)
    out = out + jnp.dot(mid, expand, preferred_element_type=jnp.float32)
    out = out + jnp.dot(lo, expand, preferred_element_type=jnp.float32)
    return out


def _make_kernel(has_cw, has_w):
    def kernel(*refs):
        i = 0
        x_ref = refs[i]; i += 1
        t_ref = refs[i]; i += 1
        cw_ref = None
        if has_cw:
            cw_ref = refs[i]; i += 1
        w_ref = e_ref = None
        if has_w:
            w_ref, e_ref = refs[i], refs[i + 1]; i += 2
        o_ref = refs[i]

        x = x_ref[...].astype(jnp.float32)           # (1, SUB, L)
        t = t_ref[...].astype(jnp.float32)
        # NaN regression targets contribute zero loss
        # (reference sets target <- input there, so input - target == 0).
        diff = jnp.where(jnp.isnan(t), 0.0, x - t)
        if has_cw:
            diff = diff * cw_ref[...]                # (1, 1, L) sublane bcast
        loss = jnp.abs(diff)
        if has_w:
            w = w_ref[0].astype(jnp.float32)         # (SUB, G)
            loss = loss * _expand_anchor_weights(w, e_ref[...])[None]
        o_ref[...] = loss.astype(o_ref.dtype)

    return kernel


# --------------------------------------------------------------------------
# Wrapper
# --------------------------------------------------------------------------
def weighted_l1_loss(inp, target, code_weights=None, weights=None, *,
                     target_block_bytes=512 * 1024):
    """Weighted L1 loss, no reduction.

    Args:
      inp:          (B, A, C) float (f32 or bf16).
      target:       (B, A, C) float, may contain NaNs.
      code_weights: (C,) float or None.
      weights:      (B, A) float or None.
    Returns:
      loss: (B, A, C) in inp.dtype.
    """
    B, A, C = inp.shape
    assert target.shape == (B, A, C)
    if weights is not None:
        assert weights.shape[0] == B and weights.shape[1] == A
    out_dtype = inp.dtype
    itemsize = jnp.dtype(inp.dtype).itemsize

    G, R, L, SUB = _choose_tiling(A, C, itemsize, target_block_bytes)

    # Free reshapes: (A, C) -> (R, G*C) keeps row-major element order.
    x3 = inp.reshape(B, R, L)
    t3 = target.reshape(B, R, L)

    inputs = [x3, t3]
    in_specs = [
        pl.BlockSpec((1, SUB, L), lambda b, r: (b, r, 0)),
        pl.BlockSpec((1, SUB, L), lambda b, r: (b, r, 0)),
    ]

    has_cw = code_weights is not None
    if has_cw:
        cw = jnp.asarray(code_weights, dtype=jnp.float32).reshape(C)
        # One lane-dense row with the per-code pattern repeated per anchor;
        # constant index_map -> stays resident across grid steps.
        cw_row = jnp.tile(cw, G).reshape(1, 1, L)
        inputs.append(cw_row)
        in_specs.append(pl.BlockSpec((1, 1, L), lambda b, r: (0, 0, 0)))

    has_w = weights is not None
    if has_w:
        w3 = weights.astype(jnp.float32).reshape(B, R, G)
        # Constant 0/1 expansion matrix: expand[g, g*C + c] = 1  (tiny).
        expand = (
            jnp.arange(L, dtype=jnp.int32)[None, :] // C
            == jnp.arange(G, dtype=jnp.int32)[:, None]
        ).astype(jnp.bfloat16)
        inputs += [w3, expand]
        in_specs += [
            pl.BlockSpec((1, SUB, G), lambda b, r: (b, r, 0)),
            pl.BlockSpec((G, L), lambda b, r: (0, 0)),
        ]

    grid = (B, R // SUB)
    out = pl.pallas_call(
        _make_kernel(has_cw, has_w),
        out_shape=jax.ShapeDtypeStruct((B, R, L), out_dtype),
        grid_spec=pltpu.PrefetchScalarGridSpec(
            num_scalar_prefetch=0,
            grid=grid,
            in_specs=in_specs,
            out_specs=pl.BlockSpec((1, SUB, L), lambda b, r: (b, r, 0)),
        ),
        compiler_params=pltpu.CompilerParams(
            dimension_semantics=("parallel", "parallel"),
        ),
    )(*inputs)
    return out.reshape(B, A, C)


# --------------------------------------------------------------------------
# Reference + tests
# --------------------------------------------------------------------------
def _reference(inp, target, code_weights, weights):
    inp = inp.astype(jnp.float32)
    target = target.astype(jnp.float32)
    target = jnp.where(jnp.isnan(target), inp, target)
    diff = inp - target
    if code_weights is not None:
        diff = diff * jnp.asarray(code_weights, jnp.float32).reshape(1, 1, -1)
    loss = jnp.abs(diff)
    if weights is not None:
        loss = loss * weights.astype(jnp.float32)[..., None]
    return loss


def _run_case(key, B, A, C, *, dtype, use_code_weights, use_weights,
              atol, rtol, **kwargs):
    k1, k2, k3, k4 = jax.random.split(key, 4)
    inp = jax.random.normal(k1, (B, A, C), dtype=jnp.float32)
    target = jax.random.normal(k2, (B, A, C), dtype=jnp.float32)
    # Sprinkle NaNs into the targets to exercise the isnan branch.
    nan_mask = jax.random.bernoulli(k3, 0.05, (B, A, C))
    target = jnp.where(nan_mask, jnp.nan, target)
    inp = inp.astype(dtype)
    target = target.astype(dtype)

    code_weights = None
    if use_code_weights:
        code_weights = jnp.linspace(0.5, 1.5, C, dtype=jnp.float32)
    weights = None
    if use_weights:
        weights = jax.random.uniform(k4, (B, A), dtype=jnp.float32).astype(dtype)

    out = jax.block_until_ready(
        weighted_l1_loss(inp, target, code_weights, weights, **kwargs))
    ref = _reference(inp, target, code_weights, weights)

    assert out.shape == (B, A, C)
    assert out.dtype == inp.dtype
    assert not bool(jnp.isnan(out).any()), "NaNs leaked into the loss"
    out_f32 = out.astype(jnp.float32)
    assert jnp.allclose(out_f32, ref, atol=atol, rtol=rtol), (
        f"mismatch vs reference (B={B}, A={A}, C={C}, dtype={dtype}): "
        f"max abs err {float(jnp.max(jnp.abs(out_f32 - ref))):.3e}")


if __name__ == "__main__":
    key = jax.random.PRNGKey(0)
    k1, k2, k3 = jax.random.split(key, 3)

    # 1) Detection-head-like shape: lane-dense 512-lane rows, 512 KiB blocks,
    #    grid = (batch, row_tiles) = (2, 2), both axes parallel.
    _run_case(k1, 2, 32768, 8, dtype=jnp.float32,
              use_code_weights=True, use_weights=True, atol=1e-6, rtol=1e-5)

    # 2) Awkward shape with both optional arguments disabled
    #    (code_weights=None, weights=None, like the original module allows).
    _run_case(k2, 1, 21, 7, dtype=jnp.float32,
              use_code_weights=False, use_weights=False, atol=1e-6, rtol=1e-5)

    # 3) bf16 I/O path: bf16 over HBM, f32 math in-kernel, bf16 output.
    _run_case(k3, 2, 2048, 8, dtype=jnp.bfloat16,
              use_code_weights=True, use_weights=True, atol=2e-2, rtol=2e-2)

    print("KERNEL_OK")
</pallas_src>

<mosaic_0001>
module attributes {stable_mosaic.version = 11 : i64} {
  func.func @kernel(%arg0: i32, %arg1: i32, %arg2: memref<1x256x512xf32, #tpu.memory_space<vmem>>, %arg3: memref<1x256x512xf32, #tpu.memory_space<vmem>>, %arg4: memref<1x1x512xf32, #tpu.memory_space<vmem>>, %arg5: memref<1x256x64xf32, #tpu.memory_space<vmem>>, %arg6: memref<64x512xbf16, #tpu.memory_space<vmem>>, %arg7: memref<1x256x512xf32, #tpu.memory_space<vmem>>) attributes {dimension_semantics = [#tpu.dimension_semantics<parallel>, #tpu.dimension_semantics<parallel>], iteration_bounds = array<i64: 2, 2>, scalar_prefetch = 0 : i64, scratch_operands = 0 : i64, tpu.core_type = #tpu.core_type<tc>, window_params = [{transform_indices = @transform_0, window_bounds = array<i64: 1, 256, 512>}, {transform_indices = @transform_1, window_bounds = array<i64: 1, 256, 512>}, {pipeline_mode = #tpu.pipeline_mode<synchronous>, transform_indices = @transform_2, window_bounds = array<i64: 1, 1, 512>}, {transform_indices = @transform_3, window_bounds = array<i64: 1, 256, 64>}, {pipeline_mode = #tpu.pipeline_mode<synchronous>, transform_indices = @transform_4, window_bounds = array<i64: 64, 512>}, {transform_indices = @transform_5, window_bounds = array<i64: 1, 256, 512>}]} {
    %c0 = arith.constant 0 : index
    %c0_0 = arith.constant 0 : index
    %c0_1 = arith.constant 0 : index
    %0 = vector.load %arg2[%c0, %c0_0, %c0_1] : memref<1x256x512xf32, #tpu.memory_space<vmem>>, vector<1x256x512xf32>
    %c0_2 = arith.constant 0 : index
    %c0_3 = arith.constant 0 : index
    %c0_4 = arith.constant 0 : index
    %1 = vector.load %arg3[%c0_2, %c0_3, %c0_4] : memref<1x256x512xf32, #tpu.memory_space<vmem>>, vector<1x256x512xf32>
    %2 = arith.cmpf one, %1, %1 : vector<1x256x512xf32>
    %3 = arith.subf %0, %1 : vector<1x256x512xf32>
    %cst = arith.constant 0.000000e+00 : f32
    %4 = vector.broadcast %cst : f32 to vector<1x256x512xf32>
    %5 = arith.select %2, %4, %3 : vector<1x256x512xi1>, vector<1x256x512xf32>
    %c0_5 = arith.constant 0 : index
    %c0_6 = arith.constant 0 : index
    %c0_7 = arith.constant 0 : index
    %6 = vector.load %arg4[%c0_5, %c0_6, %c0_7] : memref<1x1x512xf32, #tpu.memory_space<vmem>>, vector<1x1x512xf32>
    %7 = vector.broadcast %6 : vector<1x1x512xf32> to vector<1x256x512xf32>
    %8 = arith.mulf %5, %7 : vector<1x256x512xf32>
    %9 = math.absf %8 : vector<1x256x512xf32>
    %c0_8 = arith.constant 0 : index
    %c0_9 = arith.constant 0 : index
    %c0_10 = arith.constant 0 : index
    %10 = vector.load %arg5[%c0_8, %c0_9, %c0_10] : memref<1x256x64xf32, #tpu.memory_space<vmem>>, vector<1x256x64xf32>
    %11 = vector.shape_cast %10 : vector<1x256x64xf32> to vector<256x64xf32>
    %c0_11 = arith.constant 0 : index
    %c0_12 = arith.constant 0 : index
    %12 = vector.load %arg6[%c0_11, %c0_12] : memref<64x512xbf16, #tpu.memory_space<vmem>>, vector<64x512xbf16>
    %13 = arith.truncf %11 : vector<256x64xf32> to vector<256x64xbf16>
    %14 = arith.extf %13 : vector<256x64xbf16> to vector<256x64xf32>
    %15 = arith.subf %11, %14 : vector<256x64xf32>
    %16 = arith.truncf %15 : vector<256x64xf32> to vector<256x64xbf16>
    %17 = arith.extf %16 : vector<256x64xbf16> to vector<256x64xf32>
    %18 = arith.subf %15, %17 : vector<256x64xf32>
    %19 = arith.truncf %18 : vector<256x64xf32> to vector<256x64xbf16>
    %cst_13 = arith.constant dense<0.000000e+00> : vector<256x512xf32>
    %20 = tpu.matmul %13, %12, %cst_13 {dimension_numbers = #tpu.dot_dimension_numbers<[1], [0], [0], [1], [0, 0, 1, 1], [], []>} : vector<256x64xbf16>, vector<64x512xbf16>, vector<256x512xf32> -> vector<256x512xf32>
    %cst_14 = arith.constant dense<0.000000e+00> : vector<256x512xf32>
    %21 = tpu.matmul %16, %12, %cst_14 {dimension_numbers = #tpu.dot_dimension_numbers<[1], [0], [0], [1], [0, 0, 1, 1], [], []>} : vector<256x64xbf16>, vector<64x512xbf16>, vector<256x512xf32> -> vector<256x512xf32>
    %22 = arith.addf %20, %21 : vector<256x512xf32>
    %cst_15 = arith.constant dense<0.000000e+00> : vector<256x512xf32>
    %23 = tpu.matmul %19, %12, %cst_15 {dimension_numbers = #tpu.dot_dimension_numbers<[1], [0], [0], [1], [0, 0, 1, 1], [], []>} : vector<256x64xbf16>, vector<64x512xbf16>, vector<256x512xf32> -> vector<256x512xf32>
    %24 = arith.addf %22, %23 : vector<256x512xf32>
    %25 = vector.shape_cast %24 : vector<256x512xf32> to vector<1x256x512xf32>
    %26 = arith.mulf %9, %25 : vector<1x256x512xf32>
    %c0_16 = arith.constant 0 : index
    %c0_17 = arith.constant 0 : index
    %c0_18 = arith.constant 0 : index
    %27 = vector.load %arg7[%c0_16, %c0_17, %c0_18] : memref<1x256x512xf32, #tpu.memory_space<vmem>>, vector<1x256x512xf32>
    tpu.vector_store %arg7[%c0_16, %c0_17, %c0_18], %26 {strides = array<i32>} : memref<1x256x512xf32, #tpu.memory_space<vmem>>, vector<1x256x512xf32>,
    return
  }
  func.func @transform_0(%arg0: i32, %arg1: i32) -> (i32, i32, i32) {
    %c0_i32 = arith.constant 0 : i32
    %c0_i32_0 = arith.constant 0 : i32
    return %arg0, %arg1, %c0_i32 : i32, i32, i32
  }
  func.func @transform_1(%arg0: i32, %arg1: i32) -> (i32, i32, i32) {
    %c0_i32 = arith.constant 0 : i32
    %c0_i32_0 = arith.constant 0 : i32
    return %arg0, %arg1, %c0_i32 : i32, i32, i32
  }
  func.func @transform_2(%arg0: i32, %arg1: i32) -> (i32, i32, i32) {
    %c0_i32 = arith.constant 0 : i32
    %c0_i32_0 = arith.constant 0 : i32
    %c0_i32_1 = arith.constant 0 : i32
    %c0_i32_2 = arith.constant 0 : i32
    return %c0_i32, %c0_i32_0, %c0_i32_1 : i32, i32, i32
  }
  func.func @transform_3(%arg0: i32, %arg1: i32) -> (i32, i32, i32) {
    %c0_i32 = arith.constant 0 : i32
    %c0_i32_0 = arith.constant 0 : i32
    return %arg0, %arg1, %c0_i32 : i32, i32, i32
  }
  func.func @transform_4(%arg0: i32, %arg1: i32) -> (i32, i32) {
    %c0_i32 = arith.constant 0 : i32
    %c0_i32_0 = arith.constant 0 : i32
    %c0_i32_1 = arith.constant 0 : i32
    return %c0_i32, %c0_i32_0 : i32, i32
  }
  func.func @transform_5(%arg0: i32, %arg1: i32) -> (i32, i32, i32) {
    %c0_i32 = arith.constant 0 : i32
    %c0_i32_0 = arith.constant 0 : i32
    return %arg0, %arg1, %c0_i32 : i32, i32, i32
  }
}

</mosaic_0001>

<llo_original>
// kernel: tpu_custom_call.1
$region0: #{tpu_custom_call.1}
  #allocation0 [shape = 'u32[]', space=smem, size = 0x4, offset = 0x4, fixed_abs, tag = 'smem constant byte address 0x4 - core index']
  #allocation1 [shape = 'u32[72,128]{1,0:T(1,128)}', space=vmem, size = 0x9000, scoped, tag = 'internal scratch']
  %s0 = inlined_call_operand.hbm [shape: f32[2,512,512], index: 0, kind: input, shape index: {}]
  %s1 = inlined_call_operand.hbm [shape: f32[2,512,512], index: 1, kind: input, shape index: {}]
  %s2 = inlined_call_operand.hbm [shape: f32[1,1,512], index: 2, kind: input, shape index: {}]
  %s3 = inlined_call_operand.vmem [shape: f32[2,512,64], index: 3, kind: input, shape index: {}]
  %s4 = inlined_call_operand.hbm [shape: bf16[64,512], index: 4, kind: input, shape index: {}]
  %s5 = inlined_call_operand.hbm [shape: f32[2,512,512], index: 5, kind: output, shape index: {}]
  %s6 = sld [smem:[#allocation0]]
  $region69: #{tpu_custom_call.1} parent=0
    _
  %s8 = ssub.s32 1, %s6
  %s9 = scalar_select 0, %s8, %s6
  $region1: #{tpu_custom_call.1} parent=0
    #allocation2 [shape = 'u8[1048576]{0}', space=vmem, size = 0x100000, scoped, tag = 'input window, operand 0']
    #allocation3 [shape = 's32[2]{0}', space=sflag, size = 0x8, scoped, tag = 'scoped memory for tpu_custom_call.1']
    #allocation4 [shape = 's32[2]{0}', space=sflag, size = 0x8, scoped, tag = 'scoped memory for tpu_custom_call.1']
    #allocation5 [shape = 'u8[1048576]{0}', space=vmem, size = 0x100000, scoped, tag = 'input window, operand 1']
    #allocation6 [shape = 's32[2]{0}', space=sflag, size = 0x8, scoped, tag = 'scoped memory for tpu_custom_call.1']
    #allocation7 [shape = 'u8[2048]{0}', space=vmem, size = 0x800, scoped, tag = 'input window, operand 2, single buffered']
    #allocation8 [shape = 'u8[65536]{0}', space=vmem, size = 0x10000, scoped, tag = 'input window, operand 4, single buffered']
    #allocation9 [shape = 's32[1]{0}', space=sflag, size = 0x4, scoped, tag = 'scoped memory for tpu_custom_call.1']
    #allocation10 [shape = 'u8[1048576]{0}', space=vmem, size = 0x100000, scoped, tag = 'output window, operand 0']
    %10 = vsyncpa [#allocation3], 0
    %s11 = scalar_lea.sflag [#allocation3], 1
    %12 = vsyncpa %s11, 0
    %13 = vsyncpa [#allocation6], 0
    %s14 = scalar_lea.sflag [#allocation6], 1
    %15 = vsyncpa %s14, 0
    %16 = vsyncpa [#allocation9], 0
    %17 = vsyncpa [#allocation4], 0
    %s18 = scalar_lea.sflag [#allocation4], 1
    %19 = vsyncpa %s18, 0
    loop: start=0, step=1, limit=6
    $region2: #{tpu_custom_call.1} parent=1 // loop_pre_header
      _
    $region3: #{tpu_custom_call.1} parent=1 // loop_header
      %s21 = sphi 0, %s25
      %p22 = scmp.ge.s32.totalorder %s21, 6
      %s28 = sphi 0, %s40
      %s29 = sphi 0, %s36
      %s30 = sphi 0, %s28
      %s31 = sphi 0, %s29
      %s32 = sphi 0, %s30
      %s33 = sphi 0, %s31
      %s45 = sphi 0, %s47
      %s48 = sphi 0, %s45
      %s49 = sphi 0, %s48
      %s65 = sphi 0, %s49
      %s73 = sphi 0, %s75
      %s76 = sphi 0, %s73
      %s77 = sphi 0, %s76
      %s93 = sphi 0, %s77
      %s97 = sphi 0, %s97
      %s99 = sphi 0, %s97
      %s100 = sphi 0, %s99
      %s114 = sphi 0, %s100
      %s122 = sphi 0, %s124
      %s125 = sphi 0, %s122
      %s126 = sphi 0, %s125
      %s142 = sphi 0, %s126
      %s146 = sphi 0, %s146
      %s148 = sphi 0, %s146
      %s149 = sphi 0, %s148
      %s163 = sphi 0, %s149
      %s171 = sphi 0, %s173
      %s174 = sphi 0, %s171
      %s175 = sphi 0, %s174
      %s191 = sphi 0, %s175
    $region4: #{tpu_custom_call.1} parent=1 // loop_header_branch
      %24 = sbr.rel (%p22) target = $region8
    $region5: #{tpu_custom_call.1} parent=1 // loop_body
      %s26 = ssub.s32 %s21, 1
      %s27 = ssub.s32 %s21, 2
      %s34 = sadd.s32 1, %s29
      %p35 = scmp.ge.s32.totalorder %s34, 2
      %s36 = scalar_select %p35, 0, %s34
      %s37 = sadd.s32 1, %s28
      %s38 = scalar_select %p35, %s37, %s28
      %p39 = scmp.ge.s32.totalorder %s38, 2
      %s40 = scalar_select %p39, 0, %s38
      %s41 = ssub.s32 %s28, %s40
      %s42 = ssub.s32 %s29, %s36
      %s43 = sor.u32 %s41, %s42
      %p44 = scmp.eq.s32.totalorder %s43, 0
      %s46 = sadd.s32 %s45, 1
      %s47 = scalar_select %p44, %s45, %s46
      %p50 = pneg %p44
      %p51 = scmp.eq.s32.totalorder %s21, 3
      %p52 = por %p50, %p51
      %p53 = scmp.ne.s32.totalorder %s45, %s48
      %p54 = scmp.eq.s32.totalorder %s21, 0
      %p55 = por %p53, %p54
      %p56 = scmp.ne.s32.totalorder %s45, %s48
      %p57 = scmp.eq.s32.totalorder %s26, 3
      %p58 = por %p56, %p57
      %p59 = scmp.ne.s32.totalorder %s48, %s49
      %p60 = scmp.eq.s32.totalorder %s26, 0
      %p61 = por %p59, %p60
      %p62 = scmp.ne.s32.totalorder %s48, %s49
      %p63 = scmp.eq.s32.totalorder %s27, 3
      %p64 = por %p62, %p63
      %p66 = scmp.ne.s32.totalorder %s49, %s65
      %p67 = scmp.eq.s32.totalorder %s27, 0
      %p68 = por %p66, %p67
      %s69 = ssub.s32 %s28, %s40
      %s70 = ssub.s32 %s29, %s36
      %s71 = sor.u32 %s69, %s70
      %p72 = scmp.eq.s32.totalorder %s71, 0
      %s74 = sadd.s32 %s73, 1
      %s75 = scalar_select %p72, %s73, %s74
      %p78 = pneg %p72
      %p79 = scmp.eq.s32.totalorder %s21, 3
      %p80 = por %p78, %p79
      %p81 = scmp.ne.s32.totalorder %s73, %s76
      %p82 = scmp.eq.s32.totalorder %s21, 0
      %p83 = por %p81, %p82
      %p84 = scmp.ne.s32.totalorder %s73, %s76
      %p85 = scmp.eq.s32.totalorder %s26, 3
      %p86 = por %p84, %p85
      %p87 = scmp.ne.s32.totalorder %s76, %s77
      %p88 = scmp.eq.s32.totalorder %s26, 0
      %p89 = por %p87, %p88
      %p90 = scmp.ne.s32.totalorder %s76, %s77
      %p91 = scmp.eq.s32.totalorder %s27, 3
      %p92 = por %p90, %p91
      %p94 = scmp.ne.s32.totalorder %s77, %s93
      %p95 = scmp.eq.s32.totalorder %s27, 0
      %p96 = por %p94, %p95
      %s98 = sadd.s32 %s97, 1
      %p101 = scmp.eq.s32.totalorder %s21, 3
      %p102 = scmp.ne.s32.totalorder %s97, %s99
      %p103 = scmp.eq.s32.totalorder %s21, 0
      %p104 = por %p102, %p103
      %p105 = scmp.ne.s32.totalorder %s97, %s99
      %p106 = scmp.eq.s32.totalorder %s26, 3
      %p107 = por %p105, %p106
      %p108 = scmp.ne.s32.totalorder %s99, %s100
      %p109 = scmp.eq.s32.totalorder %s26, 0
      %p110 = por %p108, %p109
      %p111 = scmp.ne.s32.totalorder %s99, %s100
      %p112 = scmp.eq.s32.totalorder %s27, 3
      %p113 = por %p111, %p112
      %p115 = scmp.ne.s32.totalorder %s100, %s114
      %p116 = scmp.eq.s32.totalorder %s27, 0
      %p117 = por %p115, %p116
      %s118 = ssub.s32 %s28, %s40
      %s119 = ssub.s32 %s29, %s36
      %s120 = sor.u32 %s118, %s119
      %p121 = scmp.eq.s32.totalorder %s120, 0
      %s123 = sadd.s32 %s122, 1
      %s124 = scalar_select %p121, %s122, %s123
      %p127 = pneg %p121
      %p128 = scmp.eq.s32.totalorder %s21, 3
      %p129 = por %p127, %p128
      %p130 = scmp.ne.s32.totalorder %s122, %s125
      %p131 = scmp.eq.s32.totalorder %s21, 0
      %p132 = por %p130, %p131
      %p133 = scmp.ne.s32.totalorder %s122, %s125
      %p134 = scmp.eq.s32.totalorder %s26, 3
      %p135 = por %p133, %p134
      %p136 = scmp.ne.s32.totalorder %s125, %s126
      %p137 = scmp.eq.s32.totalorder %s26, 0
      %p138 = por %p136, %p137
      %p139 = scmp.ne.s32.totalorder %s125, %s126
      %p140 = scmp.eq.s32.totalorder %s27, 3
      %p141 = por %p139, %p140
      %p143 = scmp.ne.s32.totalorder %s126, %s142
      %p144 = scmp.eq.s32.totalorder %s27, 0
      %p145 = por %p143, %p144
      %s147 = sadd.s32 %s146, 1
      %p150 = scmp.eq.s32.totalorder %s21, 3
      %p151 = scmp.ne.s32.totalorder %s146, %s148
      %p152 = scmp.eq.s32.totalorder %s21, 0
      %p153 = por %p151, %p152
      %p154 = scmp.ne.s32.totalorder %s146, %s148
      %p155 = scmp.eq.s32.totalorder %s26, 3
      %p156 = por %p154, %p155
      %p157 = scmp.ne.s32.totalorder %s148, %s149
      %p158 = scmp.eq.s32.totalorder %s26, 0
      %p159 = por %p157, %p158
      %p160 = scmp.ne.s32.totalorder %s148, %s149
      %p161 = scmp.eq.s32.totalorder %s27, 3
      %p162 = por %p160, %p161
      %p164 = scmp.ne.s32.totalorder %s149, %s163
      %p165 = scmp.eq.s32.totalorder %s27, 0
      %p166 = por %p164, %p165
      %s167 = ssub.s32 %s28, %s40
      %s168 = ssub.s32 %s29, %s36
      %s169 = sor.u32 %s167, %s168
      %p170 = scmp.eq.s32.totalorder %s169, 0
      %s172 = sadd.s32 %s171, 1
      %s173 = scalar_select %p170, %s171, %s172
      %p176 = pneg %p170
      %p177 = scmp.eq.s32.totalorder %s21, 3
      %p178 = por %p176, %p177
      %p179 = scmp.ne.s32.totalorder %s171, %s174
      %p180 = scmp.eq.s32.totalorder %s21, 0
      %p181 = por %p179, %p180
      %p182 = scmp.ne.s32.totalorder %s171, %s174
      %p183 = scmp.eq.s32.totalorder %s26, 3
      %p184 = por %p182, %p183
      %p185 = scmp.ne.s32.totalorder %s174, %s175
      %p186 = scmp.eq.s32.totalorder %s26, 0
      %p187 = por %p185, %p186
      %p188 = scmp.ne.s32.totalorder %s174, %s175
      %p189 = scmp.eq.s32.totalorder %s27, 3
      %p190 = por %p188, %p189
      %p192 = scmp.ne.s32.totalorder %s175, %s191
      %p193 = scmp.eq.s32.totalorder %s27, 0
      %p194 = por %p192, %p193
      %p195 = scmp.le.s32.totalorder 1, %s21
      %p196 = scmp.lt.s32.totalorder %s21, 5
      %p197 = pnand %p195, %p196
      %p198 = pneg %p197
      // Predicated region
      $region9: #{tpu_custom_call.1} parent=5 // pred_check
        _
      $region10: #{tpu_custom_call.1} parent=5 // pred_check_branch
        %200 = sbr.rel (%p197) target = $region12
      $region11: #{tpu_custom_call.1} parent=5 // pred_region
        %s201 = ssub.s32 %s21, 1
        // Predicated region
        $region13: #{tpu_custom_call.1} parent=11 // pred_check
          %p202 = pneg %p110
        $region14: #{tpu_custom_call.1} parent=11 // pred_check_branch
          %204 = sbr.rel (%p202) target = $region16
        $region15: #{tpu_custom_call.1} parent=11 // pred_region
          %206 = vsyncadd [#allocation6], 0
          %s208 = sshll.u32 %s2, 4
          %s209 = int_to_ptr.hbm [resolvable:$true] %s208
          %s210 = sshll.u32 [#allocation7], 4
          %s211 = int_to_ptr.vmem [resolvable:$true] %s210
          %213 = dma.hbm_to_vmem [thread:$0]  %s209, 64, %s211, [#allocation6]
        $region16: #{tpu_custom_call.1} parent=11 // pred_fallthru
          _
        // Predicated region
        $region17: #{tpu_custom_call.1} parent=11 // pred_check
          %p214 = pneg %p159
        $region18: #{tpu_custom_call.1} parent=11 // pred_check_branch
          %216 = sbr.rel (%p214) target = $region20
        $region19: #{tpu_custom_call.1} parent=11 // pred_region
          %218 = vsyncadd [#allocation9], 0
          %s219 = sshll.u32 %s4, 4
          %s220 = int_to_ptr.hbm [resolvable:$true] %s219
          %s221 = sshll.u32 [#allocation8], 4
          %s222 = int_to_ptr.vmem [resolvable:$true] %s221
          %227 = dma.hbm_to_vmem [thread:$0]  %s220, 2048, %s222, [#allocation9], 256, 256, 16
        $region20: #{tpu_custom_call.1} parent=11 // pred_fallthru
          _
      $region12: #{tpu_custom_call.1} parent=5 // pred_fallthru
        _
      %p228 = scmp.lt.s32.totalorder %s21, 4
      // Predicated region
      $region21: #{tpu_custom_call.1} parent=5 // pred_check
        %p229 = pneg %p228
      $region22: #{tpu_custom_call.1} parent=5 // pred_check_branch
        %231 = sbr.rel (%p229) target = $region24
      $region23: #{tpu_custom_call.1} parent=5 // pred_region
        // Predicated region
        $region25: #{tpu_custom_call.1} parent=23 // pred_check
          %p232 = pneg %p55
        $region26: #{tpu_custom_call.1} parent=23 // pred_check_branch
          %234 = sbr.rel (%p232) target = $region28
        $region27: #{tpu_custom_call.1} parent=23 // pred_region
          %s235 = sand.u32 %s45, 1
          %s236 = scalar_lea.sflag [#allocation3], %s235
          %s237 = sand.u32 %s45, 1
          %s238 = smul.addr %s237, 1024
          %s239 = scalar_lea.vmem [#allocation2], %s238
          %s240 = smul.u32 32, %s29
          %242 = vsyncadd %s236, 0
          %s243 = smul.addr %s240, 4
          %s244 = smul.addr %s28, 256
          %s245 = sadd.s32 %s243, %s244
          %s246 = smul.addr %s245, 8
          %s247 = scalar_lea.hbm %s0, %s246
          %s248 = sshll.u32 %s247, 4
          %s249 = int_to_ptr.hbm [resolvable:$true] %s248
          %s250 = sshll.u32 %s239, 4
          %s251 = int_to_ptr.vmem [resolvable:$true] %s250
          %256 = dma.hbm_to_vmem [thread:$0]  %s249, 16384, %s251, %s236, 512, 512, 32
        $region28: #{tpu_custom_call.1} parent=23 // pred_fallthru
          _
        // Predicated region
        $region29: #{tpu_custom_call.1} parent=23 // pred_check
          %p257 = pneg %p83
        $region30: #{tpu_custom_call.1} parent=23 // pred_check_branch
          %259 = sbr.rel (%p257) target = $region32
        $region31: #{tpu_custom_call.1} parent=23 // pred_region
          %s260 = sand.u32 %s21, 1
          %s261 = scalar_lea.sflag [#allocation6], %s260
          %s262 = sand.u32 %s73, 1
          %s263 = smul.addr %s262, 1024
          %s264 = scalar_lea.vmem [#allocation5], %s263
          %s265 = smul.u32 32, %s29
          %267 = vsyncadd %s261, 0
          %s268 = smul.addr %s265, 4
          %s269 = smul.addr %s28, 256
          %s270 = sadd.s32 %s268, %s269
          %s271 = smul.addr %s270, 8
          %s272 = scalar_lea.hbm %s1, %s271
          %s273 = sshll.u32 %s272, 4
          %s274 = int_to_ptr.hbm [resolvable:$true] %s273
          %s275 = sshll.u32 %s264, 4
          %s276 = int_to_ptr.vmem [resolvable:$true] %s275
          %281 = dma.hbm_to_vmem [thread:$0]  %s274, 16384, %s276, %s261, 512, 512, 32
        $region32: #{tpu_custom_call.1} parent=23 // pred_fallthru
          _
        // Predicated region
        $region33: #{tpu_custom_call.1} parent=23 // pred_check
          %p282 = pneg %p132
        $region34: #{tpu_custom_call.1} parent=23 // pred_check_branch
          %284 = sbr.rel (%p282) target = $region36
        $region35: #{tpu_custom_call.1} parent=23 // pred_region
          %s285 = smul.u32 32, %s29
          %p286 = scmp.lt.s32.totalorder %s28, 1
          %s287 = scalar_select %p286, %s28, 1
          %p288 = scmp.lt.s32.totalorder %s285, 63
          %s289 = scalar_select %p288, %s285, 63
          %s290 = smul.addr %s287, 64
          %s291 = sadd.s32 %s289, %s290
          %s292 = smul.addr %s291, 8
          %s293 = scalar_lea.vmem %s3, %s292
          %s294 = smul.u32 32, %s29
        $region36: #{tpu_custom_call.1} parent=23 // pred_fallthru
          _
      $region24: #{tpu_custom_call.1} parent=5 // pred_fallthru
        _
      %p295 = scmp.le.s32.totalorder 1, %s21
      %p296 = scmp.lt.s32.totalorder %s21, 5
      %p297 = pnand %p295, %p296
      %p298 = pneg %p297
      // Predicated region
      $region37: #{tpu_custom_call.1} parent=5 // pred_check
        _
      $region38: #{tpu_custom_call.1} parent=5 // pred_check_branch
        %300 = sbr.rel (%p297) target = $region40
      $region39: #{tpu_custom_call.1} parent=5 // pred_region
        %s301 = ssub.s32 %s21, 1
        %s302 = sand.u32 %s48, 1
        %s303 = scalar_lea.sflag [#allocation3], %s302
        %s304 = sand.u32 %s48, 1
        %s305 = smul.addr %s304, 1024
        %s306 = scalar_lea.vmem [#allocation2], %s305
        // Predicated region
        $region41: #{tpu_custom_call.1} parent=39 // pred_check
          %p307 = pneg %p61
        $region42: #{tpu_custom_call.1} parent=39 // pred_check_branch
          %309 = sbr.rel (%p307) target = $region44
        $region43: #{tpu_custom_call.1} parent=39 // pred_region
          %311 = dma.done %s303, 16384
        $region44: #{tpu_custom_call.1} parent=39 // pred_fallthru
          _
        %s312 = sand.u32 %s26, 1
        %s313 = scalar_lea.sflag [#allocation6], %s312
        %s314 = sand.u32 %s76, 1
        %s315 = smul.addr %s314, 1024
        %s316 = scalar_lea.vmem [#allocation5], %s315
        // Predicated region
        $region45: #{tpu_custom_call.1} parent=39 // pred_check
          %p317 = pneg %p89
        $region46: #{tpu_custom_call.1} parent=39 // pred_check_branch
          %319 = sbr.rel (%p317) target = $region48
        $region47: #{tpu_custom_call.1} parent=39 // pred_region
          %321 = dma.done %s313, 16384
        $region48: #{tpu_custom_call.1} parent=39 // pred_fallthru
          _
        // Predicated region
        $region49: #{tpu_custom_call.1} parent=39 // pred_check
          %p322 = pneg %p110
        $region50: #{tpu_custom_call.1} parent=39 // pred_check_branch
          %324 = sbr.rel (%p322) target = $region52
        $region51: #{tpu_custom_call.1} parent=39 // pred_region
          %326 = dma.done [#allocation6], 64
        $region52: #{tpu_custom_call.1} parent=39 // pred_fallthru
          _
        // Predicated region
        $region53: #{tpu_custom_call.1} parent=39 // pred_check
          %p327 = pneg %p159
        $region54: #{tpu_custom_call.1} parent=39 // pred_check_branch
          %329 = sbr.rel (%p327) target = $region56
        $region55: #{tpu_custom_call.1} parent=39 // pred_region
          %331 = dma.done [#allocation9], 2048
        $region56: #{tpu_custom_call.1} parent=39 // pred_fallthru
          _
        %s332 = sand.u32 %s48, 1
        %s333 = scalar_lea.sflag [#allocation3], %s332
        %s334 = sand.u32 %s48, 1
        %s335 = smul.addr %s334, 1024
        %s336 = scalar_lea.vmem [#allocation2], %s335
        %p337 = pneg %p61
        %p338 = pneg %p58
        %s339 = sand.u32 %s26, 1
        %s340 = scalar_lea.sflag [#allocation6], %s339
        %s341 = sand.u32 %s76, 1
        %s342 = smul.addr %s341, 1024
        %s343 = scalar_lea.vmem [#allocation5], %s342
        %p344 = pneg %p89
        %p345 = pneg %p86
        %p346 = pneg %p110
        %p347 = pneg %p107
        %s348 = smul.u32 32, %s31
        %p349 = scmp.lt.s32.totalorder %s30, 1
        %s350 = scalar_select %p349, %s30, 1
        %p351 = scmp.lt.s32.totalorder %s348, 63
        %s352 = scalar_select %p351, %s348, 63
        %s353 = smul.addr %s350, 64
        %s354 = sadd.s32 %s352, %s353
        %s355 = smul.addr %s354, 8
        %s356 = scalar_lea.vmem %s3, %s355
        %p357 = pneg %p138
        %p358 = pneg %p135
        %p359 = pneg %p159
        %p360 = pneg %p156
        %p361 = pneg %p187
        %p362 = pneg %p184
        %s363 = sand.u32 %s174, 1
        %s364 = scalar_lea.sflag [#allocation4], %s363
        %s365 = sand.u32 %s174, 1
        %s366 = smul.addr %s365, 1024
        %s367 = scalar_lea.vmem [#allocation10], %s366
        %s368 = smul.u32 32, %s31
        %s369 = smul.u32 32, %s31
        %s370 = smul.u32 32, %s31
        %p371 = scmp.lt.s32.totalorder %s30, 1
        %s372 = scalar_select %p371, %s30, 1
        %p373 = scmp.lt.s32.totalorder %s370, 63
        %s374 = scalar_select %p373, %s370, 63
        %s375 = smul.addr %s372, 64
        %s376 = sadd.s32 %s374, %s375
        %s377 = smul.addr %s376, 8
        %s378 = scalar_lea.vmem %s3, %s377
        %s379 = smul.u32 32, %s31
        %s380 = smul.u32 32, %s31
        %v382 = vld [vmem:[%s306] sm:$0xff]
        %v383 = vld [vmem:[%s306 + $0x8] sm:$0xff]
        %v384 = vld [vmem:[%s306 + $0x10] sm:$0xff]
        %v385 = vld [vmem:[%s306 + $0x18] sm:$0xff]
        %v386 = vld [vmem:[%s306 + $0x20] sm:$0xff]
        %v387 = vld [vmem:[%s306 + $0x28] sm:$0xff]
        %v388 = vld [vmem:[%s306 + $0x30] sm:$0xff]
        %v389 = vld [vmem:[%s306 + $0x38] sm:$0xff]
        %v390 = vld [vmem:[%s306 + $0x40] sm:$0xff]
        %v391 = vld [vmem:[%s306 + $0x48] sm:$0xff]
        %v392 = vld [vmem:[%s306 + $0x50] sm:$0xff]
        %v393 = vld [vmem:[%s306 + $0x58] sm:$0xff]
        %v394 = vld [vmem:[%s306 + $0x60] sm:$0xff]
        %v395 = vld [vmem:[%s306 + $0x68] sm:$0xff]
        %v396 = vld [vmem:[%s306 + $0x70] sm:$0xff]
        %v397 = vld [vmem:[%s306 + $0x78] sm:$0xff]
        %v398 = vld [vmem:[%s306 + $0x80] sm:$0xff]
        %v399 = vld [vmem:[%s306 + $0x88] sm:$0xff]
        %v400 = vld [vmem:[%s306 + $0x90] sm:$0xff]
        %v401 = vld [vmem:[%s306 + $0x98] sm:$0xff]
        %v402 = vld [vmem:[%s306 + $0xa0] sm:$0xff]
        %v403 = vld [vmem:[%s306 + $0xa8] sm:$0xff]
        %v404 = vld [vmem:[%s306 + $0xb0] sm:$0xff]
        %v405 = vld [vmem:[%s306 + $0xb8] sm:$0xff]
        %v406 = vld [vmem:[%s306 + $0xc0] sm:$0xff]
        %v407 = vld [vmem:[%s306 + $0xc8] sm:$0xff]
        %v408 = vld [vmem:[%s306 + $0xd0] sm:$0xff]
        %v409 = vld [vmem:[%s306 + $0xd8] sm:$0xff]
        %v410 = vld [vmem:[%s306 + $0xe0] sm:$0xff]
        %v411 = vld [vmem:[%s306 + $0xe8] sm:$0xff]
        %v412 = vld [vmem:[%s306 + $0xf0] sm:$0xff]
        %v413 = vld [vmem:[%s306 + $0xf8] sm:$0xff]
        %v414 = vld [vmem:[%s306 + $0x100] sm:$0xff]
        %v415 = vld [vmem:[%s306 + $0x108] sm:$0xff]
        %v416 = vld [vmem:[%s306 + $0x110] sm:$0xff]
        %v417 = vld [vmem:[%s306 + $0x118] sm:$0xff]
        %v418 = vld [vmem:[%s306 + $0x120] sm:$0xff]
        %v419 = vld [vmem:[%s306 + $0x128] sm:$0xff]
        %v420 = vld [vmem:[%s306 + $0x130] sm:$0xff]
        %v421 = vld [vmem:[%s306 + $0x138] sm:$0xff]
        %v422 = vld [vmem:[%s306 + $0x140] sm:$0xff]
        %v423 = vld [vmem:[%s306 + $0x148] sm:$0xff]
        %v424 = vld [vmem:[%s306 + $0x150] sm:$0xff]
        %v425 = vld [vmem:[%s306 + $0x158] sm:$0xff]
        %v426 = vld [vmem:[%s306 + $0x160] sm:$0xff]
        %v427 = vld [vmem:[%s306 + $0x168] sm:$0xff]
        %v428 = vld [vmem:[%s306 + $0x170] sm:$0xff]
        %v429 = vld [vmem:[%s306 + $0x178] sm:$0xff]
        %v430 = vld [vmem:[%s306 + $0x180] sm:$0xff]
        %v431 = vld [vmem:[%s306 + $0x188] sm:$0xff]
        %v432 = vld [vmem:[%s306 + $0x190] sm:$0xff]
        %v433 = vld [vmem:[%s306 + $0x198] sm:$0xff]
        %v434 = vld [vmem:[%s306 + $0x1a0] sm:$0xff]
        %v435 = vld [vmem:[%s306 + $0x1a8] sm:$0xff]
        %v436 = vld [vmem:[%s306 + $0x1b0] sm:$0xff]
        %v437 = vld [vmem:[%s306 + $0x1b8] sm:$0xff]
        %v438 = vld [vmem:[%s306 + $0x1c0] sm:$0xff]
        %v439 = vld [vmem:[%s306 + $0x1c8] sm:$0xff]
        %v440 = vld [vmem:[%s306 + $0x1d0] sm:$0xff]
        %v441 = vld [vmem:[%s306 + $0x1d8] sm:$0xff]
        %v442 = vld [vmem:[%s306 + $0x1e0] sm:$0xff]
        %v443 = vld [vmem:[%s306 + $0x1e8] sm:$0xff]
        %v444 = vld [vmem:[%s306 + $0x1f0] sm:$0xff]
        %v445 = vld [vmem:[%s306 + $0x1f8] sm:$0xff]
        %v446 = vld [vmem:[%s306 + $0x200] sm:$0xff]
        %v447 = vld [vmem:[%s306 + $0x208] sm:$0xff]
        %v448 = vld [vmem:[%s306 + $0x210] sm:$0xff]
        %v449 = vld [vmem:[%s306 + $0x218] sm:$0xff]
        %v450 = vld [vmem:[%s306 + $0x220] sm:$0xff]
        %v451 = vld [vmem:[%s306 + $0x228] sm:$0xff]
        %v452 = vld [vmem:[%s306 + $0x230] sm:$0xff]
        %v453 = vld [vmem:[%s306 + $0x238] sm:$0xff]
        %v454 = vld [vmem:[%s306 + $0x240] sm:$0xff]
        %v455 = vld [vmem:[%s306 + $0x248] sm:$0xff]
        %v456 = vld [vmem:[%s306 + $0x250] sm:$0xff]
        %v457 = vld [vmem:[%s306 + $0x258] sm:$0xff]
        %v458 = vld [vmem:[%s306 + $0x260] sm:$0xff]
        %v459 = vld [vmem:[%s306 + $0x268] sm:$0xff]
        %v460 = vld [vmem:[%s306 + $0x270] sm:$0xff]
        %v461 = vld [vmem:[%s306 + $0x278] sm:$0xff]
        %v462 = vld [vmem:[%s306 + $0x280] sm:$0xff]
        %v463 = vld [vmem:[%s306 + $0x288] sm:$0xff]
        %v464 = vld [vmem:[%s306 + $0x290] sm:$0xff]
        %v465 = vld [vmem:[%s306 + $0x298] sm:$0xff]
        %v466 = vld [vmem:[%s306 + $0x2a0] sm:$0xff]
        %v467 = vld [vmem:[%s306 + $0x2a8] sm:$0xff]
        %v468 = vld [vmem:[%s306 + $0x2b0] sm:$0xff]
        %v469 = vld [vmem:[%s306 + $0x2b8] sm:$0xff]
        %v470 = vld [vmem:[%s306 + $0x2c0] sm:$0xff]
        %v471 = vld [vmem:[%s306 + $0x2c8] sm:$0xff]
        %v472 = vld [vmem:[%s306 + $0x2d0] sm:$0xff]
        %v473 = vld [vmem:[%s306 + $0x2d8] sm:$0xff]
        %v474 = vld [vmem:[%s306 + $0x2e0] sm:$0xff]
        %v475 = vld [vmem:[%s306 + $0x2e8] sm:$0xff]
        %v476 = vld [vmem:[%s306 + $0x2f0] sm:$0xff]
        %v477 = vld [vmem:[%s306 + $0x2f8] sm:$0xff]
        %v478 = vld [vmem:[%s306 + $0x300] sm:$0xff]
        %v479 = vld [vmem:[%s306 + $0x308] sm:$0xff]
        %v480 = vld [vmem:[%s306 + $0x310] sm:$0xff]
        %v481 = vld [vmem:[%s306 + $0x318] sm:$0xff]
        %v482 = vld [vmem:[%s306 + $0x320] sm:$0xff]
        %v483 = vld [vmem:[%s306 + $0x328] sm:$0xff]
        %v484 = vld [vmem:[%s306 + $0x330] sm:$0xff]
        %v485 = vld [vmem:[%s306 + $0x338] sm:$0xff]
        %v486 = vld [vmem:[%s306 + $0x340] sm:$0xff]
        %v487 = vld [vmem:[%s306 + $0x348] sm:$0xff]
        %v488 = vld [vmem:[%s306 + $0x350] sm:$0xff]
        %v489 = vld [vmem:[%s306 + $0x358] sm:$0xff]
        %v490 = vld [vmem:[%s306 + $0x360] sm:$0xff]
        %v491 = vld [vmem:[%s306 + $0x368] sm:$0xff]
        %v492 = vld [vmem:[%s306 + $0x370] sm:$0xff]
        %v493 = vld [vmem:[%s306 + $0x378] sm:$0xff]
        %v494 = vld [vmem:[%s306 + $0x380] sm:$0xff]
        %v495 = vld [vmem:[%s306 + $0x388] sm:$0xff]
        %v496 = vld [vmem:[%s306 + $0x390] sm:$0xff]
        %v497 = vld [vmem:[%s306 + $0x398] sm:$0xff]
        %v498 = vld [vmem:[%s306 + $0x3a0] sm:$0xff]
        %v499 = vld [vmem:[%s306 + $0x3a8] sm:$0xff]
        %v500 = vld [vmem:[%s306 + $0x3b0] sm:$0xff]
        %v501 = vld [vmem:[%s306 + $0x3b8] sm:$0xff]
        %v502 = vld [vmem:[%s306 + $0x3c0] sm:$0xff]
        %v503 = vld [vmem:[%s306 + $0x3c8] sm:$0xff]
        %v504 = vld [vmem:[%s306 + $0x3d0] sm:$0xff]
        %v505 = vld [vmem:[%s306 + $0x3d8] sm:$0xff]
        %v506 = vld [vmem:[%s306 + $0x3e0] sm:$0xff]
        %v507 = vld [vmem:[%s306 + $0x3e8] sm:$0xff]
        %v508 = vld [vmem:[%s306 + $0x3f0] sm:$0xff]
        %v509 = vld [vmem:[%s306 + $0x3f8] sm:$0xff]
        %v510 = vld [vmem:[%s316] sm:$0xff]
        %v511 = vld [vmem:[%s316 + $0x8] sm:$0xff]
        %v512 = vld [vmem:[%s316 + $0x10] sm:$0xff]
        %v513 = vld [vmem:[%s316 + $0x18] sm:$0xff]
        %v514 = vld [vmem:[%s316 + $0x20] sm:$0xff]
        %v515 = vld [vmem:[%s316 + $0x28] sm:$0xff]
        %v516 = vld [vmem:[%s316 + $0x30] sm:$0xff]
        %v517 = vld [vmem:[%s316 + $0x38] sm:$0xff]
        %v518 = vld [vmem:[%s316 + $0x40] sm:$0xff]
        %v519 = vld [vmem:[%s316 + $0x48] sm:$0xff]
        %v520 = vld [vmem:[%s316 + $0x50] sm:$0xff]
        %v521 = vld [vmem:[%s316 + $0x58] sm:$0xff]
        %v522 = vld [vmem:[%s316 + $0x60] sm:$0xff]
        %v523 = vld [vmem:[%s316 + $0x68] sm:$0xff]
        %v524 = vld [vmem:[%s316 + $0x70] sm:$0xff]
        %v525 = vld [vmem:[%s316 + $0x78] sm:$0xff]
        %v526 = vld [vmem:[%s316 + $0x80] sm:$0xff]
        %v527 = vld [vmem:[%s316 + $0x88] sm:$0xff]
        %v528 = vld [vmem:[%s316 + $0x90] sm:$0xff]
        %v529 = vld [vmem:[%s316 + $0x98] sm:$0xff]
        %v530 = vld [vmem:[%s316 + $0xa0] sm:$0xff]
        %v531 = vld [vmem:[%s316 + $0xa8] sm:$0xff]
        %v532 = vld [vmem:[%s316 + $0xb0] sm:$0xff]
        %v533 = vld [vmem:[%s316 + $0xb8] sm:$0xff]
        %v534 = vld [vmem:[%s316 + $0xc0] sm:$0xff]
        %v535 = vld [vmem:[%s316 + $0xc8] sm:$0xff]
        %v536 = vld [vmem:[%s316 + $0xd0] sm:$0xff]
        %v537 = vld [vmem:[%s316 + $0xd8] sm:$0xff]
        %v538 = vld [vmem:[%s316 + $0xe0] sm:$0xff]
        %v539 = vld [vmem:[%s316 + $0xe8] sm:$0xff]
        %v540 = vld [vmem:[%s316 + $0xf0] sm:$0xff]
        %v541 = vld [vmem:[%s316 + $0xf8] sm:$0xff]
        %v542 = vld [vmem:[%s316 + $0x100] sm:$0xff]
        %v543 = vld [vmem:[%s316 + $0x108] sm:$0xff]
        %v544 = vld [vmem:[%s316 + $0x110] sm:$0xff]
        %v545 = vld [vmem:[%s316 + $0x118] sm:$0xff]
        %v546 = vld [vmem:[%s316 + $0x120] sm:$0xff]
        %v547 = vld [vmem:[%s316 + $0x128] sm:$0xff]
        %v548 = vld [vmem:[%s316 + $0x130] sm:$0xff]
        %v549 = vld [vmem:[%s316 + $0x138] sm:$0xff]
        %v550 = vld [vmem:[%s316 + $0x140] sm:$0xff]
        %v551 = vld [vmem:[%s316 + $0x148] sm:$0xff]
        %v552 = vld [vmem:[%s316 + $0x150] sm:$0xff]
        %v553 = vld [vmem:[%s316 + $0x158] sm:$0xff]
        %v554 = vld [vmem:[%s316 + $0x160] sm:$0xff]
        %v555 = vld [vmem:[%s316 + $0x168] sm:$0xff]
        %v556 = vld [vmem:[%s316 + $0x170] sm:$0xff]
        %v557 = vld [vmem:[%s316 + $0x178] sm:$0xff]
        %v558 = vld [vmem:[%s316 + $0x180] sm:$0xff]
        %v559 = vld [vmem:[%s316 + $0x188] sm:$0xff]
        %v560 = vld [vmem:[%s316 + $0x190] sm:$0xff]
        %v561 = vld [vmem:[%s316 + $0x198] sm:$0xff]
        %v562 = vld [vmem:[%s316 + $0x1a0] sm:$0xff]
        %v563 = vld [vmem:[%s316 + $0x1a8] sm:$0xff]
        %v564 = vld [vmem:[%s316 + $0x1b0] sm:$0xff]
        %v565 = vld [vmem:[%s316 + $0x1b8] sm:$0xff]
        %v566 = vld [vmem:[%s316 + $0x1c0] sm:$0xff]
        %v567 = vld [vmem:[%s316 + $0x1c8] sm:$0xff]
        %v568 = vld [vmem:[%s316 + $0x1d0] sm:$0xff]
        %v569 = vld [vmem:[%s316 + $0x1d8] sm:$0xff]
        %v570 = vld [vmem:[%s316 + $0x1e0] sm:$0xff]
        %v571 = vld [vmem:[%s316 + $0x1e8] sm:$0xff]
        %v572 = vld [vmem:[%s316 + $0x1f0] sm:$0xff]
        %v573 = vld [vmem:[%s316 + $0x1f8] sm:$0xff]
        %v574 = vld [vmem:[%s316 + $0x200] sm:$0xff]
        %v575 = vld [vmem:[%s316 + $0x208] sm:$0xff]
        %v576 = vld [vmem:[%s316 + $0x210] sm:$0xff]
        %v577 = vld [vmem:[%s316 + $0x218] sm:$0xff]
        %v578 = vld [vmem:[%s316 + $0x220] sm:$0xff]
        %v579 = vld [vmem:[%s316 + $0x228] sm:$0xff]
        %v580 = vld [vmem:[%s316 + $0x230] sm:$0xff]
        %v581 = vld [vmem:[%s316 + $0x238] sm:$0xff]
        %v582 = vld [vmem:[%s316 + $0x240] sm:$0xff]
        %v583 = vld [vmem:[%s316 + $0x248] sm:$0xff]
        %v584 = vld [vmem:[%s316 + $0x250] sm:$0xff]
        %v585 = vld [vmem:[%s316 + $0x258] sm:$0xff]
        %v586 = vld [vmem:[%s316 + $0x260] sm:$0xff]
        %v587 = vld [vmem:[%s316 + $0x268] sm:$0xff]
        %v588 = vld [vmem:[%s316 + $0x270] sm:$0xff]
        %v589 = vld [vmem:[%s316 + $0x278] sm:$0xff]
        %v590 = vld [vmem:[%s316 + $0x280] sm:$0xff]
        %v591 = vld [vmem:[%s316 + $0x288] sm:$0xff]
        %v592 = vld [vmem:[%s316 + $0x290] sm:$0xff]
        %v593 = vld [vmem:[%s316 + $0x298] sm:$0xff]
        %v594 = vld [vmem:[%s316 + $0x2a0] sm:$0xff]
        %v595 = vld [vmem:[%s316 + $0x2a8] sm:$0xff]
        %v596 = vld [vmem:[%s316 + $0x2b0] sm:$0xff]
        %v597 = vld [vmem:[%s316 + $0x2b8] sm:$0xff]
        %v598 = vld [vmem:[%s316 + $0x2c0] sm:$0xff]
        %v599 = vld [vmem:[%s316 + $0x2c8] sm:$0xff]
        %v600 = vld [vmem:[%s316 + $0x2d0] sm:$0xff]
        %v601 = vld [vmem:[%s316 + $0x2d8] sm:$0xff]
        %v602 = vld [vmem:[%s316 + $0x2e0] sm:$0xff]
        %v603 = vld [vmem:[%s316 + $0x2e8] sm:$0xff]
        %v604 = vld [vmem:[%s316 + $0x2f0] sm:$0xff]
        %v605 = vld [vmem:[%s316 + $0x2f8] sm:$0xff]
        %v606 = vld [vmem:[%s316 + $0x300] sm:$0xff]
        %v607 = vld [vmem:[%s316 + $0x308] sm:$0xff]
        %v608 = vld [vmem:[%s316 + $0x310] sm:$0xff]
        %v609 = vld [vmem:[%s316 + $0x318] sm:$0xff]
        %v610 = vld [vmem:[%s316 + $0x320] sm:$0xff]
        %v611 = vld [vmem:[%s316 + $0x328] sm:$0xff]
        %v612 = vld [vmem:[%s316 + $0x330] sm:$0xff]
        %v613 = vld [vmem:[%s316 + $0x338] sm:$0xff]
        %v614 = vld [vmem:[%s316 + $0x340] sm:$0xff]
        %v615 = vld [vmem:[%s316 + $0x348] sm:$0xff]
        %v616 = vld [vmem:[%s316 + $0x350] sm:$0xff]
        %v617 = vld [vmem:[%s316 + $0x358] sm:$0xff]
        %v618 = vld [vmem:[%s316 + $0x360] sm:$0xff]
        %v619 = vld [vmem:[%s316 + $0x368] sm:$0xff]
        %v620 = vld [vmem:[%s316 + $0x370] sm:$0xff]
        %v621 = vld [vmem:[%s316 + $0x378] sm:$0xff]
        %v622 = vld [vmem:[%s316 + $0x380] sm:$0xff]
        %v623 = vld [vmem:[%s316 + $0x388] sm:$0xff]
        %v624 = vld [vmem:[%s316 + $0x390] sm:$0xff]
        %v625 = vld [vmem:[%s316 + $0x398] sm:$0xff]
        %v626 = vld [vmem:[%s316 + $0x3a0] sm:$0xff]
        %v627 = vld [vmem:[%s316 + $0x3a8] sm:$0xff]
        %v628 = vld [vmem:[%s316 + $0x3b0] sm:$0xff]
        %v629 = vld [vmem:[%s316 + $0x3b8] sm:$0xff]
        %v630 = vld [vmem:[%s316 + $0x3c0] sm:$0xff]
        %v631 = vld [vmem:[%s316 + $0x3c8] sm:$0xff]
        %v632 = vld [vmem:[%s316 + $0x3d0] sm:$0xff]
        %v633 = vld [vmem:[%s316 + $0x3d8] sm:$0xff]
        %v634 = vld [vmem:[%s316 + $0x3e0] sm:$0xff]
        %v635 = vld [vmem:[%s316 + $0x3e8] sm:$0xff]
        %v636 = vld [vmem:[%s316 + $0x3f0] sm:$0xff]
        %v637 = vld [vmem:[%s316 + $0x3f8] sm:$0xff]
        %vm638 = vcmp.ne.f32.partialorder %v510, %v510
        %vm639 = vcmp.ne.f32.partialorder %v511, %v511
        %vm640 = vcmp.ne.f32.partialorder %v512, %v512
        %vm641 = vcmp.ne.f32.partialorder %v513, %v513
        %vm642 = vcmp.ne.f32.partialorder %v514, %v514
        %vm643 = vcmp.ne.f32.partialorder %v515, %v515
        %vm644 = vcmp.ne.f32.partialorder %v516, %v516
        %vm645 = vcmp.ne.f32.partialorder %v517, %v517
        %vm646 = vcmp.ne.f32.partialorder %v518, %v518
        %vm647 = vcmp.ne.f32.partialorder %v519, %v519
        %vm648 = vcmp.ne.f32.partialorder %v520, %v520
        %vm649 = vcmp.ne.f32.partialorder %v521, %v521
        %vm650 = vcmp.ne.f32.partialorder %v522, %v522
        %vm651 = vcmp.ne.f32.partialorder %v523, %v523
        %vm652 = vcmp.ne.f32.partialorder %v524, %v524
        %vm653 = vcmp.ne.f32.partialorder %v525, %v525
        %vm654 = vcmp.ne.f32.partialorder %v526, %v526
        %vm655 = vcmp.ne.f32.partialorder %v527, %v527
        %vm656 = vcmp.ne.f32.partialorder %v528, %v528
        %vm657 = vcmp.ne.f32.partialorder %v529, %v529
        %vm658 = vcmp.ne.f32.partialorder %v530, %v530
        %vm659 = vcmp.ne.f32.partialorder %v531, %v531
        %vm660 = vcmp.ne.f32.partialorder %v532, %v532
        %vm661 = vcmp.ne.f32.partialorder %v533, %v533
        %vm662 = vcmp.ne.f32.partialorder %v534, %v534
        %vm663 = vcmp.ne.f32.partialorder %v535, %v535
        %vm664 = vcmp.ne.f32.partialorder %v536, %v536
        %vm665 = vcmp.ne.f32.partialorder %v537, %v537
        %vm666 = vcmp.ne.f32.partialorder %v538, %v538
        %vm667 = vcmp.ne.f32.partialorder %v539, %v539
        %vm668 = vcmp.ne.f32.partialorder %v540, %v540
        %vm669 = vcmp.ne.f32.partialorder %v541, %v541
        %vm670 = vcmp.ne.f32.partialorder %v542, %v542
        %vm671 = vcmp.ne.f32.partialorder %v543, %v543
        %vm672 = vcmp.ne.f32.partialorder %v544, %v544
        %vm673 = vcmp.ne.f32.partialorder %v545, %v545
        %vm674 = vcmp.ne.f32.partialorder %v546, %v546
        %vm675 = vcmp.ne.f32.partialorder %v547, %v547
        %vm676 = vcmp.ne.f32.partialorder %v548, %v548
        %vm677 = vcmp.ne.f32.partialorder %v549, %v549
        %vm678 = vcmp.ne.f32.partialorder %v550, %v550
        %vm679 = vcmp.ne.f32.partialorder %v551, %v551
        %vm680 = vcmp.ne.f32.partialorder %v552, %v552
        %vm681 = vcmp.ne.f32.partialorder %v553, %v553
        %vm682 = vcmp.ne.f32.partialorder %v554, %v554
        %vm683 = vcmp.ne.f32.partialorder %v555, %v555
        %vm684 = vcmp.ne.f32.partialorder %v556, %v556
        %vm685 = vcmp.ne.f32.partialorder %v557, %v557
        %vm686 = vcmp.ne.f32.partialorder %v558, %v558
        %vm687 = vcmp.ne.f32.partialorder %v559, %v559
        %vm688 = vcmp.ne.f32.partialorder %v560, %v560
        %vm689 = vcmp.ne.f32.partialorder %v561, %v561
        %vm690 = vcmp.ne.f32.partialorder %v562, %v562
        %vm691 = vcmp.ne.f32.partialorder %v563, %v563
        %vm692 = vcmp.ne.f32.partialorder %v564, %v564
        %vm693 = vcmp.ne.f32.partialorder %v565, %v565
        %vm694 = vcmp.ne.f32.partialorder %v566, %v566
        %vm695 = vcmp.ne.f32.partialorder %v567, %v567
        %vm696 = vcmp.ne.f32.partialorder %v568, %v568
        %vm697 = vcmp.ne.f32.partialorder %v569, %v569
        %vm698 = vcmp.ne.f32.partialorder %v570, %v570
        %vm699 = vcmp.ne.f32.partialorder %v571, %v571
        %vm700 = vcmp.ne.f32.partialorder %v572, %v572
        %vm701 = vcmp.ne.f32.partialorder %v573, %v573
        %vm702 = vcmp.ne.f32.partialorder %v574, %v574
        %vm703 = vcmp.ne.f32.partialorder %v575, %v575
        %vm704 = vcmp.ne.f32.partialorder %v576, %v576
        %vm705 = vcmp.ne.f32.partialorder %v577, %v577
        %vm706 = vcmp.ne.f32.partialorder %v578, %v578
        %vm707 = vcmp.ne.f32.partialorder %v579, %v579
        %vm708 = vcmp.ne.f32.partialorder %v580, %v580
        %vm709 = vcmp.ne.f32.partialorder %v581, %v581
        %vm710 = vcmp.ne.f32.partialorder %v582, %v582
        %vm711 = vcmp.ne.f32.partialorder %v583, %v583
        %vm712 = vcmp.ne.f32.partialorder %v584, %v584
        %vm713 = vcmp.ne.f32.partialorder %v585, %v585
        %vm714 = vcmp.ne.f32.partialorder %v586, %v586
        %vm715 = vcmp.ne.f32.partialorder %v587, %v587
        %vm716 = vcmp.ne.f32.partialorder %v588, %v588
        %vm717 = vcmp.ne.f32.partialorder %v589, %v589
        %vm718 = vcmp.ne.f32.partialorder %v590, %v590
        %vm719 = vcmp.ne.f32.partialorder %v591, %v591
        %vm720 = vcmp.ne.f32.partialorder %v592, %v592
        %vm721 = vcmp.ne.f32.partialorder %v593, %v593
        %vm722 = vcmp.ne.f32.partialorder %v594, %v594
        %vm723 = vcmp.ne.f32.partialorder %v595, %v595
        %vm724 = vcmp.ne.f32.partialorder %v596, %v596
        %vm725 = vcmp.ne.f32.partialorder %v597, %v597
        %vm726 = vcmp.ne.f32.partialorder %v598, %v598
        %vm727 = vcmp.ne.f32.partialorder %v599, %v599
        %vm728 = vcmp.ne.f32.partialorder %v600, %v600
        %vm729 = vcmp.ne.f32.partialorder %v601, %v601
        %vm730 = vcmp.ne.f32.partialorder %v602, %v602
        %vm731 = vcmp.ne.f32.partialorder %v603, %v603
        %vm732 = vcmp.ne.f32.partialorder %v604, %v604
        %vm733 = vcmp.ne.f32.partialorder %v605, %v605
        %vm734 = vcmp.ne.f32.partialorder %v606, %v606
        %vm735 = vcmp.ne.f32.partialorder %v607, %v607
        %vm736 = vcmp.ne.f32.partialorder %v608, %v608
        %vm737 = vcmp.ne.f32.partialorder %v609, %v609
        %vm738 = vcmp.ne.f32.partialorder %v610, %v610
        %vm739 = vcmp.ne.f32.partialorder %v611, %v611
        %vm740 = vcmp.ne.f32.partialorder %v612, %v612
        %vm741 = vcmp.ne.f32.partialorder %v613, %v613
        %vm742 = vcmp.ne.f32.partialorder %v614, %v614
        %vm743 = vcmp.ne.f32.partialorder %v615, %v615
        %vm744 = vcmp.ne.f32.partialorder %v616, %v616
        %vm745 = vcmp.ne.f32.partialorder %v617, %v617
        %vm746 = vcmp.ne.f32.partialorder %v618, %v618
        %vm747 = vcmp.ne.f32.partialorder %v619, %v619
        %vm748 = vcmp.ne.f32.partialorder %v620, %v620
        %vm749 = vcmp.ne.f32.partialorder %v621, %v621
        %vm750 = vcmp.ne.f32.partialorder %v622, %v622
        %vm751 = vcmp.ne.f32.partialorder %v623, %v623
        %vm752 = vcmp.ne.f32.partialorder %v624, %v624
        %vm753 = vcmp.ne.f32.partialorder %v625, %v625
        %vm754 = vcmp.ne.f32.partialorder %v626, %v626
        %vm755 = vcmp.ne.f32.partialorder %v627, %v627
        %vm756 = vcmp.ne.f32.partialorder %v628, %v628
        %vm757 = vcmp.ne.f32.partialorder %v629, %v629
        %vm758 = vcmp.ne.f32.partialorder %v630, %v630
        %vm759 = vcmp.ne.f32.partialorder %v631, %v631
        %vm760 = vcmp.ne.f32.partialorder %v632, %v632
        %vm761 = vcmp.ne.f32.partialorder %v633, %v633
        %vm762 = vcmp.ne.f32.partialorder %v634, %v634
        %vm763 = vcmp.ne.f32.partialorder %v635, %v635
        %vm764 = vcmp.ne.f32.partialorder %v636, %v636
        %vm765 = vcmp.ne.f32.partialorder %v637, %v637
        %v766 = vsub.f32 %v382, %v510
        %v767 = vsub.f32 %v383, %v511
        %v768 = vsub.f32 %v384, %v512
        %v769 = vsub.f32 %v385, %v513
        %v770 = vsub.f32 %v386, %v514
        %v771 = vsub.f32 %v387, %v515
        %v772 = vsub.f32 %v388, %v516
        %v773 = vsub.f32 %v389, %v517
        %v774 = vsub.f32 %v390, %v518
        %v775 = vsub.f32 %v391, %v519
        %v776 = vsub.f32 %v392, %v520
        %v777 = vsub.f32 %v393, %v521
        %v778 = vsub.f32 %v394, %v522
        %v779 = vsub.f32 %v395, %v523
        %v780 = vsub.f32 %v396, %v524
        %v781 = vsub.f32 %v397, %v525
        %v782 = vsub.f32 %v398, %v526
        %v783 = vsub.f32 %v399, %v527
        %v784 = vsub.f32 %v400, %v528
        %v785 = vsub.f32 %v401, %v529
        %v786 = vsub.f32 %v402, %v530
        %v787 = vsub.f32 %v403, %v531
        %v788 = vsub.f32 %v404, %v532
        %v789 = vsub.f32 %v405, %v533
        %v790 = vsub.f32 %v406, %v534
        %v791 = vsub.f32 %v407, %v535
        %v792 = vsub.f32 %v408, %v536
        %v793 = vsub.f32 %v409, %v537
        %v794 = vsub.f32 %v410, %v538
        %v795 = vsub.f32 %v411, %v539
        %v796 = vsub.f32 %v412, %v540
        %v797 = vsub.f32 %v413, %v541
        %v798 = vsub.f32 %v414, %v542
        %v799 = vsub.f32 %v415, %v543
        %v800 = vsub.f32 %v416, %v544
        %v801 = vsub.f32 %v417, %v545
        %v802 = vsub.f32 %v418, %v546
        %v803 = vsub.f32 %v419, %v547
        %v804 = vsub.f32 %v420, %v548
        %v805 = vsub.f32 %v421, %v549
        %v806 = vsub.f32 %v422, %v550
        %v807 = vsub.f32 %v423, %v551
        %v808 = vsub.f32 %v424, %v552
        %v809 = vsub.f32 %v425, %v553
        %v810 = vsub.f32 %v426, %v554
        %v811 = vsub.f32 %v427, %v555
        %v812 = vsub.f32 %v428, %v556
        %v813 = vsub.f32 %v429, %v557
        %v814 = vsub.f32 %v430, %v558
        %v815 = vsub.f32 %v431, %v559
        %v816 = vsub.f32 %v432, %v560
        %v817 = vsub.f32 %v433, %v561
        %v818 = vsub.f32 %v434, %v562
        %v819 = vsub.f32 %v435, %v563
        %v820 = vsub.f32 %v436, %v564
        %v821 = vsub.f32 %v437, %v565
        %v822 = vsub.f32 %v438, %v566
        %v823 = vsub.f32 %v439, %v567
        %v824 = vsub.f32 %v440, %v568
        %v825 = vsub.f32 %v441, %v569
        %v826 = vsub.f32 %v442, %v570
        %v827 = vsub.f32 %v443, %v571
        %v828 = vsub.f32 %v444, %v572
        %v829 = vsub.f32 %v445, %v573
        %v830 = vsub.f32 %v446, %v574
        %v831 = vsub.f32 %v447, %v575
        %v832 = vsub.f32 %v448, %v576
        %v833 = vsub.f32 %v449, %v577
        %v834 = vsub.f32 %v450, %v578
        %v835 = vsub.f32 %v451, %v579
        %v836 = vsub.f32 %v452, %v580
        %v837 = vsub.f32 %v453, %v581
        %v838 = vsub.f32 %v454, %v582
        %v839 = vsub.f32 %v455, %v583
        %v840 = vsub.f32 %v456, %v584
        %v841 = vsub.f32 %v457, %v585
        %v842 = vsub.f32 %v458, %v586
        %v843 = vsub.f32 %v459, %v587
        %v844 = vsub.f32 %v460, %v588
        %v845 = vsub.f32 %v461, %v589
        %v846 = vsub.f32 %v462, %v590
        %v847 = vsub.f32 %v463, %v591
        %v848 = vsub.f32 %v464, %v592
        %v849 = vsub.f32 %v465, %v593
        %v850 = vsub.f32 %v466, %v594
        %v851 = vsub.f32 %v467, %v595
        %v852 = vsub.f32 %v468, %v596
        %v853 = vsub.f32 %v469, %v597
        %v854 = vsub.f32 %v470, %v598
        %v855 = vsub.f32 %v471, %v599
        %v856 = vsub.f32 %v472, %v600
        %v857 = vsub.f32 %v473, %v601
        %v858 = vsub.f32 %v474, %v602
        %v859 = vsub.f32 %v475, %v603
        %v860 = vsub.f32 %v476, %v604
        %v861 = vsub.f32 %v477, %v605
        %v862 = vsub.f32 %v478, %v606
        %v863 = vsub.f32 %v479, %v607
        %v864 = vsub.f32 %v480, %v608
        %v865 = vsub.f32 %v481, %v609
        %v866 = vsub.f32 %v482, %v610
        %v867 = vsub.f32 %v483, %v611
        %v868 = vsub.f32 %v484, %v612
        %v869 = vsub.f32 %v485, %v613
        %v870 = vsub.f32 %v486, %v614
        %v871 = vsub.f32 %v487, %v615
        %v872 = vsub.f32 %v488, %v616
        %v873 = vsub.f32 %v489, %v617
        %v874 = vsub.f32 %v490, %v618
        %v875 = vsub.f32 %v491, %v619
        %v876 = vsub.f32 %v492, %v620
        %v877 = vsub.f32 %v493, %v621
        %v878 = vsub.f32 %v494, %v622
        %v879 = vsub.f32 %v495, %v623
        %v880 = vsub.f32 %v496, %v624
        %v881 = vsub.f32 %v497, %v625
        %v882 = vsub.f32 %v498, %v626
        %v883 = vsub.f32 %v499, %v627
        %v884 = vsub.f32 %v500, %v628
        %v885 = vsub.f32 %v501, %v629
        %v886 = vsub.f32 %v502, %v630
        %v887 = vsub.f32 %v503, %v631
        %v888 = vsub.f32 %v504, %v632
        %v889 = vsub.f32 %v505, %v633
        %v890 = vsub.f32 %v506, %v634
        %v891 = vsub.f32 %v507, %v635
        %v892 = vsub.f32 %v508, %v636
        %v893 = vsub.f32 %v509, %v637
        %v894 = vsel %vm638, 0.0, %v766
        %v895 = vsel %vm639, 0.0, %v767
        %v896 = vsel %vm640, 0.0, %v768
        %v897 = vsel %vm641, 0.0, %v769
        %v898 = vsel %vm642, 0.0, %v770
        %v899 = vsel %vm643, 0.0, %v771
        %v900 = vsel %vm644, 0.0, %v772
        %v901 = vsel %vm645, 0.0, %v773
        %v902 = vsel %vm646, 0.0, %v774
        %v903 = vsel %vm647, 0.0, %v775
        %v904 = vsel %vm648, 0.0, %v776
        %v905 = vsel %vm649, 0.0, %v777
        %v906 = vsel %vm650, 0.0, %v778
        %v907 = vsel %vm651, 0.0, %v779
        %v908 = vsel %vm652, 0.0, %v780
        %v909 = vsel %vm653, 0.0, %v781
        %v910 = vsel %vm654, 0.0, %v782
        %v911 = vsel %vm655, 0.0, %v783
        %v912 = vsel %vm656, 0.0, %v784
        %v913 = vsel %vm657, 0.0, %v785
        %v914 = vsel %vm658, 0.0, %v786
        %v915 = vsel %vm659, 0.0, %v787
        %v916 = vsel %vm660, 0.0, %v788
        %v917 = vsel %vm661, 0.0, %v789
        %v918 = vsel %vm662, 0.0, %v790
        %v919 = vsel %vm663, 0.0, %v791
        %v920 = vsel %vm664, 0.0, %v792
        %v921 = vsel %vm665, 0.0, %v793
        %v922 = vsel %vm666, 0.0, %v794
        %v923 = vsel %vm667, 0.0, %v795
        %v924 = vsel %vm668, 0.0, %v796
        %v925 = vsel %vm669, 0.0, %v797
        %v926 = vsel %vm670, 0.0, %v798
        %v927 = vsel %vm671, 0.0, %v799
        %v928 = vsel %vm672, 0.0, %v800
        %v929 = vsel %vm673, 0.0, %v801
        %v930 = vsel %vm674, 0.0, %v802
        %v931 = vsel %vm675, 0.0, %v803
        %v932 = vsel %vm676, 0.0, %v804
        %v933 = vsel %vm677, 0.0, %v805
        %v934 = vsel %vm678, 0.0, %v806
        %v935 = vsel %vm679, 0.0, %v807
        %v936 = vsel %vm680, 0.0, %v808
        %v937 = vsel %vm681, 0.0, %v809
        %v938 = vsel %vm682, 0.0, %v810
        %v939 = vsel %vm683, 0.0, %v811
        %v940 = vsel %vm684, 0.0, %v812
        %v941 = vsel %vm685, 0.0, %v813
        %v942 = vsel %vm686, 0.0, %v814
        %v943 = vsel %vm687, 0.0, %v815
        %v944 = vsel %vm688, 0.0, %v816
        %v945 = vsel %vm689, 0.0, %v817
        %v946 = vsel %vm690, 0.0, %v818
        %v947 = vsel %vm691, 0.0, %v819
        %v948 = vsel %vm692, 0.0, %v820
        %v949 = vsel %vm693, 0.0, %v821
        %v950 = vsel %vm694, 0.0, %v822
        %v951 = vsel %vm695, 0.0, %v823
        %v952 = vsel %vm696, 0.0, %v824
        %v953 = vsel %vm697, 0.0, %v825
        %v954 = vsel %vm698, 0.0, %v826
        %v955 = vsel %vm699, 0.0, %v827
        %v956 = vsel %vm700, 0.0, %v828
        %v957 = vsel %vm701, 0.0, %v829
        %v958 = vsel %vm702, 0.0, %v830
        %v959 = vsel %vm703, 0.0, %v831
        %v960 = vsel %vm704, 0.0, %v832
        %v961 = vsel %vm705, 0.0, %v833
        %v962 = vsel %vm706, 0.0, %v834
        %v963 = vsel %vm707, 0.0, %v835
        %v964 = vsel %vm708, 0.0, %v836
        %v965 = vsel %vm709, 0.0, %v837
        %v966 = vsel %vm710, 0.0, %v838
        %v967 = vsel %vm711, 0.0, %v839
        %v968 = vsel %vm712, 0.0, %v840
        %v969 = vsel %vm713, 0.0, %v841
        %v970 = vsel %vm714, 0.0, %v842
        %v971 = vsel %vm715, 0.0, %v843
        %v972 = vsel %vm716, 0.0, %v844
        %v973 = vsel %vm717, 0.0, %v845
        %v974 = vsel %vm718, 0.0, %v846
        %v975 = vsel %vm719, 0.0, %v847
        %v976 = vsel %vm720, 0.0, %v848
        %v977 = vsel %vm721, 0.0, %v849
        %v978 = vsel %vm722, 0.0, %v850
        %v979 = vsel %vm723, 0.0, %v851
        %v980 = vsel %vm724, 0.0, %v852
        %v981 = vsel %vm725, 0.0, %v853
        %v982 = vsel %vm726, 0.0, %v854
        %v983 = vsel %vm727, 0.0, %v855
        %v984 = vsel %vm728, 0.0, %v856
        %v985 = vsel %vm729, 0.0, %v857
        %v986 = vsel %vm730, 0.0, %v858
        %v987 = vsel %vm731, 0.0, %v859
        %v988 = vsel %vm732, 0.0, %v860
        %v989 = vsel %vm733, 0.0, %v861
        %v990 = vsel %vm734, 0.0, %v862
        %v991 = vsel %vm735, 0.0, %v863
        %v992 = vsel %vm736, 0.0, %v864
        %v993 = vsel %vm737, 0.0, %v865
        %v994 = vsel %vm738, 0.0, %v866
        %v995 = vsel %vm739, 0.0, %v867
        %v996 = vsel %vm740, 0.0, %v868
        %v997 = vsel %vm741, 0.0, %v869
        %v998 = vsel %vm742, 0.0, %v870
        %v999 = vsel %vm743, 0.0, %v871
        %v1000 = vsel %vm744, 0.0, %v872
        %v1001 = vsel %vm745, 0.0, %v873
        %v1002 = vsel %vm746, 0.0, %v874
        %v1003 = vsel %vm747, 0.0, %v875
        %v1004 = vsel %vm748, 0.0, %v876
        %v1005 = vsel %vm749, 0.0, %v877
        %v1006 = vsel %vm750, 0.0, %v878
        %v1007 = vsel %vm751, 0.0, %v879
        %v1008 = vsel %vm752, 0.0, %v880
        %v1009 = vsel %vm753, 0.0, %v881
        %v1010 = vsel %vm754, 0.0, %v882
        %v1011 = vsel %vm755, 0.0, %v883
        %v1012 = vsel %vm756, 0.0, %v884
        %v1013 = vsel %vm757, 0.0, %v885
        %v1014 = vsel %vm758, 0.0, %v886
        %v1015 = vsel %vm759, 0.0, %v887
        %v1016 = vsel %vm760, 0.0, %v888
        %v1017 = vsel %vm761, 0.0, %v889
        %v1018 = vsel %vm762, 0.0, %v890
        %v1019 = vsel %vm763, 0.0, %v891
        %v1020 = vsel %vm764, 0.0, %v892
        %v1021 = vsel %vm765, 0.0, %v893
        %v1022 = vld [vmem:[#allocation7] sm:$0xf]
        %v1024 = vperm.slane %v1022, 0
        %v1025 = vperm.slane %v1022, 1
        %v1026 = vperm.slane %v1022, 2
        %v1027 = vperm.slane %v1022, 3
        %v1032 = vmul.f32 %v894, %v1024
        %v1033 = vmul.f32 %v895, %v1025
        %v1034 = vmul.f32 %v896, %v1026
        %v1035 = vmul.f32 %v897, %v1027
        %v1036 = vmul.f32 %v898, %v1024
        %v1037 = vmul.f32 %v899, %v1025
        %v1038 = vmul.f32 %v900, %v1026
        %v1039 = vmul.f32 %v901, %v1027
        %v1040 = vmul.f32 %v902, %v1024
        %v1041 = vmul.f32 %v903, %v1025
        %v1042 = vmul.f32 %v904, %v1026
        %v1043 = vmul.f32 %v905, %v1027
        %v1044 = vmul.f32 %v906, %v1024
        %v1045 = vmul.f32 %v907, %v1025
        %v1046 = vmul.f32 %v908, %v1026
        %v1047 = vmul.f32 %v909, %v1027
        %v1048 = vmul.f32 %v910, %v1024
        %v1049 = vmul.f32 %v911, %v1025
        %v1050 = vmul.f32 %v912, %v1026
        %v1051 = vmul.f32 %v913, %v1027
        %v1052 = vmul.f32 %v914, %v1024
        %v1053 = vmul.f32 %v915, %v1025
        %v1054 = vmul.f32 %v916, %v1026
        %v1055 = vmul.f32 %v917, %v1027
        %v1056 = vmul.f32 %v918, %v1024
        %v1057 = vmul.f32 %v919, %v1025
        %v1058 = vmul.f32 %v920, %v1026
        %v1059 = vmul.f32 %v921, %v1027
        %v1060 = vmul.f32 %v922, %v1024
        %v1061 = vmul.f32 %v923, %v1025
        %v1062 = vmul.f32 %v924, %v1026
        %v1063 = vmul.f32 %v925, %v1027
        %v1064 = vmul.f32 %v926, %v1024
        %v1065 = vmul.f32 %v927, %v1025
        %v1066 = vmul.f32 %v928, %v1026
        %v1067 = vmul.f32 %v929, %v1027
        %v1068 = vmul.f32 %v930, %v1024
        %v1069 = vmul.f32 %v931, %v1025
        %v1070 = vmul.f32 %v932, %v1026
        %v1071 = vmul.f32 %v933, %v1027
        %v1072 = vmul.f32 %v934, %v1024
        %v1073 = vmul.f32 %v935, %v1025
        %v1074 = vmul.f32 %v936, %v1026
        %v1075 = vmul.f32 %v937, %v1027
        %v1076 = vmul.f32 %v938, %v1024
        %v1077 = vmul.f32 %v939, %v1025
        %v1078 = vmul.f32 %v940, %v1026
        %v1079 = vmul.f32 %v941, %v1027
        %v1080 = vmul.f32 %v942, %v1024
        %v1081 = vmul.f32 %v943, %v1025
        %v1082 = vmul.f32 %v944, %v1026
        %v1083 = vmul.f32 %v945, %v1027
        %v1084 = vmul.f32 %v946, %v1024
        %v1085 = vmul.f32 %v947, %v1025
        %v1086 = vmul.f32 %v948, %v1026
        %v1087 = vmul.f32 %v949, %v1027
        %v1088 = vmul.f32 %v950, %v1024
        %v1089 = vmul.f32 %v951, %v1025
        %v1090 = vmul.f32 %v952, %v1026
        %v1091 = vmul.f32 %v953, %v1027
        %v1092 = vmul.f32 %v954, %v1024
        %v1093 = vmul.f32 %v955, %v1025
        %v1094 = vmul.f32 %v956, %v1026
        %v1095 = vmul.f32 %v957, %v1027
        %v1096 = vmul.f32 %v958, %v1024
        %v1097 = vmul.f32 %v959, %v1025
        %v1098 = vmul.f32 %v960, %v1026
        %v1099 = vmul.f32 %v961, %v1027
        %v1100 = vmul.f32 %v962, %v1024
        %v1101 = vmul.f32 %v963, %v1025
        %v1102 = vmul.f32 %v964, %v1026
        %v1103 = vmul.f32 %v965, %v1027
        %v1104 = vmul.f32 %v966, %v1024
        %v1105 = vmul.f32 %v967, %v1025
        %v1106 = vmul.f32 %v968, %v1026
        %v1107 = vmul.f32 %v969, %v1027
        %v1108 = vmul.f32 %v970, %v1024
        %v1109 = vmul.f32 %v971, %v1025
        %v1110 = vmul.f32 %v972, %v1026
        %v1111 = vmul.f32 %v973, %v1027
        %v1112 = vmul.f32 %v974, %v1024
        %v1113 = vmul.f32 %v975, %v1025
        %v1114 = vmul.f32 %v976, %v1026
        %v1115 = vmul.f32 %v977, %v1027
        %v1116 = vmul.f32 %v978, %v1024
        %v1117 = vmul.f32 %v979, %v1025
        %v1118 = vmul.f32 %v980, %v1026
        %v1119 = vmul.f32 %v981, %v1027
        %v1120 = vmul.f32 %v982, %v1024
        %v1121 = vmul.f32 %v983, %v1025
        %v1122 = vmul.f32 %v984, %v1026
        %v1123 = vmul.f32 %v985, %v1027
        %v1124 = vmul.f32 %v986, %v1024
        %v1125 = vmul.f32 %v987, %v1025
        %v1126 = vmul.f32 %v988, %v1026
        %v1127 = vmul.f32 %v989, %v1027
        %v1128 = vmul.f32 %v990, %v1024
        %v1129 = vmul.f32 %v991, %v1025
        %v1130 = vmul.f32 %v992, %v1026
        %v1131 = vmul.f32 %v993, %v1027
        %v1132 = vmul.f32 %v994, %v1024
        %v1133 = vmul.f32 %v995, %v1025
        %v1134 = vmul.f32 %v996, %v1026
        %v1135 = vmul.f32 %v997, %v1027
        %v1136 = vmul.f32 %v998, %v1024
        %v1137 = vmul.f32 %v999, %v1025
        %v1138 = vmul.f32 %v1000, %v1026
        %v1139 = vmul.f32 %v1001, %v1027
        %v1140 = vmul.f32 %v1002, %v1024
        %v1141 = vmul.f32 %v1003, %v1025
        %v1142 = vmul.f32 %v1004, %v1026
        %v1143 = vmul.f32 %v1005, %v1027
        %v1144 = vmul.f32 %v1006, %v1024
        %v1145 = vmul.f32 %v1007, %v1025
        %v1146 = vmul.f32 %v1008, %v1026
        %v1147 = vmul.f32 %v1009, %v1027
        %v1148 = vmul.f32 %v1010, %v1024
        %v1149 = vmul.f32 %v1011, %v1025
        %v1150 = vmul.f32 %v1012, %v1026
        %v1151 = vmul.f32 %v1013, %v1027
        %v1152 = vmul.f32 %v1014, %v1024
        %v1153 = vmul.f32 %v1015, %v1025
        %v1154 = vmul.f32 %v1016, %v1026
        %v1155 = vmul.f32 %v1017, %v1027
        %v1156 = vmul.f32 %v1018, %v1024
        %v1157 = vmul.f32 %v1019, %v1025
        %v1158 = vmul.f32 %v1020, %v1026
        %v1159 = vmul.f32 %v1021, %v1027
        %v1160 = vand.u32 2147483647, %v1032
        %v1161 = vand.u32 2147483647, %v1033
        %v1162 = vand.u32 2147483647, %v1034
        %v1163 = vand.u32 2147483647, %v1035
        %v1164 = vand.u32 2147483647, %v1036
        %v1165 = vand.u32 2147483647, %v1037
        %v1166 = vand.u32 2147483647, %v1038
        %v1167 = vand.u32 2147483647, %v1039
        %v1168 = vand.u32 2147483647, %v1040
        %v1169 = vand.u32 2147483647, %v1041
        %v1170 = vand.u32 2147483647, %v1042
        %v1171 = vand.u32 2147483647, %v1043
        %v1172 = vand.u32 2147483647, %v1044
        %v1173 = vand.u32 2147483647, %v1045
        %v1174 = vand.u32 2147483647, %v1046
        %v1175 = vand.u32 2147483647, %v1047
        %v1176 = vand.u32 2147483647, %v1048
        %v1177 = vand.u32 2147483647, %v1049
        %v1178 = vand.u32 2147483647, %v1050
        %v1179 = vand.u32 2147483647, %v1051
        %v1180 = vand.u32 2147483647, %v1052
        %v1181 = vand.u32 2147483647, %v1053
        %v1182 = vand.u32 2147483647, %v1054
        %v1183 = vand.u32 2147483647, %v1055
        %v1184 = vand.u32 2147483647, %v1056
        %v1185 = vand.u32 2147483647, %v1057
        %v1186 = vand.u32 2147483647, %v1058
        %v1187 = vand.u32 2147483647, %v1059
        %v1188 = vand.u32 2147483647, %v1060
        %v1189 = vand.u32 2147483647, %v1061
        %v1190 = vand.u32 2147483647, %v1062
        %v1191 = vand.u32 2147483647, %v1063
        %v1192 = vand.u32 2147483647, %v1064
        %v1193 = vand.u32 2147483647, %v1065
        %v1194 = vand.u32 2147483647, %v1066
        %v1195 = vand.u32 2147483647, %v1067
        %v1196 = vand.u32 2147483647, %v1068
        %v1197 = vand.u32 2147483647, %v1069
        %v1198 = vand.u32 2147483647, %v1070
        %v1199 = vand.u32 2147483647, %v1071
        %v1200 = vand.u32 2147483647, %v1072
        %v1201 = vand.u32 2147483647, %v1073
        %v1202 = vand.u32 2147483647, %v1074
        %v1203 = vand.u32 2147483647, %v1075
        %v1204 = vand.u32 2147483647, %v1076
        %v1205 = vand.u32 2147483647, %v1077
        %v1206 = vand.u32 2147483647, %v1078
        %v1207 = vand.u32 2147483647, %v1079
        %v1208 = vand.u32 2147483647, %v1080
        %v1209 = vand.u32 2147483647, %v1081
        %v1210 = vand.u32 2147483647, %v1082
        %v1211 = vand.u32 2147483647, %v1083
        %v1212 = vand.u32 2147483647, %v1084
        %v1213 = vand.u32 2147483647, %v1085
        %v1214 = vand.u32 2147483647, %v1086
        %v1215 = vand.u32 2147483647, %v1087
        %v1216 = vand.u32 2147483647, %v1088
        %v1217 = vand.u32 2147483647, %v1089
        %v1218 = vand.u32 2147483647, %v1090
        %v1219 = vand.u32 2147483647, %v1091
        %v1220 = vand.u32 2147483647, %v1092
        %v1221 = vand.u32 2147483647, %v1093
        %v1222 = vand.u32 2147483647, %v1094
        %v1223 = vand.u32 2147483647, %v1095
        %v1224 = vand.u32 2147483647, %v1096
        %v1225 = vand.u32 2147483647, %v1097
        %v1226 = vand.u32 2147483647, %v1098
        %v1227 = vand.u32 2147483647, %v1099
        %v1228 = vand.u32 2147483647, %v1100
        %v1229 = vand.u32 2147483647, %v1101
        %v1230 = vand.u32 2147483647, %v1102
        %v1231 = vand.u32 2147483647, %v1103
        %v1232 = vand.u32 2147483647, %v1104
        %v1233 = vand.u32 2147483647, %v1105
        %v1234 = vand.u32 2147483647, %v1106
        %v1235 = vand.u32 2147483647, %v1107
        %v1236 = vand.u32 2147483647, %v1108
        %v1237 = vand.u32 2147483647, %v1109
        %v1238 = vand.u32 2147483647, %v1110
        %v1239 = vand.u32 2147483647, %v1111
        %v1240 = vand.u32 2147483647, %v1112
        %v1241 = vand.u32 2147483647, %v1113
        %v1242 = vand.u32 2147483647, %v1114
        %v1243 = vand.u32 2147483647, %v1115
        %v1244 = vand.u32 2147483647, %v1116
        %v1245 = vand.u32 2147483647, %v1117
        %v1246 = vand.u32 2147483647, %v1118
        %v1247 = vand.u32 2147483647, %v1119
        %v1248 = vand.u32 2147483647, %v1120
        %v1249 = vand.u32 2147483647, %v1121
        %v1250 = vand.u32 2147483647, %v1122
        %v1251 = vand.u32 2147483647, %v1123
        %v1252 = vand.u32 2147483647, %v1124
        %v1253 = vand.u32 2147483647, %v1125
        %v1254 = vand.u32 2147483647, %v1126
        %v1255 = vand.u32 2147483647, %v1127
        %v1256 = vand.u32 2147483647, %v1128
        %v1257 = vand.u32 2147483647, %v1129
        %v1258 = vand.u32 2147483647, %v1130
        %v1259 = vand.u32 2147483647, %v1131
        %v1260 = vand.u32 2147483647, %v1132
        %v1261 = vand.u32 2147483647, %v1133
        %v1262 = vand.u32 2147483647, %v1134
        %v1263 = vand.u32 2147483647, %v1135
        %v1264 = vand.u32 2147483647, %v1136
        %v1265 = vand.u32 2147483647, %v1137
        %v1266 = vand.u32 2147483647, %v1138
        %v1267 = vand.u32 2147483647, %v1139
        %v1268 = vand.u32 2147483647, %v1140
        %v1269 = vand.u32 2147483647, %v1141
        %v1270 = vand.u32 2147483647, %v1142
        %v1271 = vand.u32 2147483647, %v1143
        %v1272 = vand.u32 2147483647, %v1144
        %v1273 = vand.u32 2147483647, %v1145
        %v1274 = vand.u32 2147483647, %v1146
        %v1275 = vand.u32 2147483647, %v1147
        %v1276 = vand.u32 2147483647, %v1148
        %v1277 = vand.u32 2147483647, %v1149
        %v1278 = vand.u32 2147483647, %v1150
        %v1279 = vand.u32 2147483647, %v1151
        %v1280 = vand.u32 2147483647, %v1152
        %v1281 = vand.u32 2147483647, %v1153
        %v1282 = vand.u32 2147483647, %v1154
        %v1283 = vand.u32 2147483647, %v1155
        %v1284 = vand.u32 2147483647, %v1156
        %v1285 = vand.u32 2147483647, %v1157
        %v1286 = vand.u32 2147483647, %v1158
        %v1287 = vand.u32 2147483647, %v1159
        %v1288 = vld [vmem:[%s378] sm:$0xff]
        %v1289 = vld [vmem:[%s378 + $0x8] sm:$0xff]
        %v1290 = vld [vmem:[%s378 + $0x10] sm:$0xff]
        %v1291 = vld [vmem:[%s378 + $0x18] sm:$0xff]
        %v1292 = vld [vmem:[%s378 + $0x20] sm:$0xff]
        %v1293 = vld [vmem:[%s378 + $0x28] sm:$0xff]
        %v1294 = vld [vmem:[%s378 + $0x30] sm:$0xff]
        %v1295 = vld [vmem:[%s378 + $0x38] sm:$0xff]
        %v1296 = vld [vmem:[%s378 + $0x40] sm:$0xff]
        %v1297 = vld [vmem:[%s378 + $0x48] sm:$0xff]
        %v1298 = vld [vmem:[%s378 + $0x50] sm:$0xff]
        %v1299 = vld [vmem:[%s378 + $0x58] sm:$0xff]
        %v1300 = vld [vmem:[%s378 + $0x60] sm:$0xff]
        %v1301 = vld [vmem:[%s378 + $0x68] sm:$0xff]
        %v1302 = vld [vmem:[%s378 + $0x70] sm:$0xff]
        %v1303 = vld [vmem:[%s378 + $0x78] sm:$0xff]
        %v1304 = vld [vmem:[%s378 + $0x80] sm:$0xff]
        %v1305 = vld [vmem:[%s378 + $0x88] sm:$0xff]
        %v1306 = vld [vmem:[%s378 + $0x90] sm:$0xff]
        %v1307 = vld [vmem:[%s378 + $0x98] sm:$0xff]
        %v1308 = vld [vmem:[%s378 + $0xa0] sm:$0xff]
        %v1309 = vld [vmem:[%s378 + $0xa8] sm:$0xff]
        %v1310 = vld [vmem:[%s378 + $0xb0] sm:$0xff]
        %v1311 = vld [vmem:[%s378 + $0xb8] sm:$0xff]
        %v1312 = vld [vmem:[%s378 + $0xc0] sm:$0xff]
        %v1313 = vld [vmem:[%s378 + $0xc8] sm:$0xff]
        %v1314 = vld [vmem:[%s378 + $0xd0] sm:$0xff]
        %v1315 = vld [vmem:[%s378 + $0xd8] sm:$0xff]
        %v1316 = vld [vmem:[%s378 + $0xe0] sm:$0xff]
        %v1317 = vld [vmem:[%s378 + $0xe8] sm:$0xff]
        %v1318 = vld [vmem:[%s378 + $0xf0] sm:$0xff]
        %v1319 = vld [vmem:[%s378 + $0xf8] sm:$0xff]
        %v1320 = vld [vmem:[#allocation8] sm:$0xff]
        %v1321 = vld [vmem:[#allocation8 + $0x8] sm:$0xff]
        %v1322 = vld [vmem:[#allocation8 + $0x10] sm:$0xff]
        %v1323 = vld [vmem:[#allocation8 + $0x18] sm:$0xff]
        %v1324 = vld [vmem:[#allocation8 + $0x20] sm:$0xff]
        %v1325 = vld [vmem:[#allocation8 + $0x28] sm:$0xff]
        %v1326 = vld [vmem:[#allocation8 + $0x30] sm:$0xff]
        %v1327 = vld [vmem:[#allocation8 + $0x38] sm:$0xff]
        %v1328 = vld [vmem:[#allocation8 + $0x40] sm:$0xff]
        %v1329 = vld [vmem:[#allocation8 + $0x48] sm:$0xff]
        %v1330 = vld [vmem:[#allocation8 + $0x50] sm:$0xff]
        %v1331 = vld [vmem:[#allocation8 + $0x58] sm:$0xff]
        %v1332 = vld [vmem:[#allocation8 + $0x60] sm:$0xff]
        %v1333 = vld [vmem:[#allocation8 + $0x68] sm:$0xff]
        %v1334 = vld [vmem:[#allocation8 + $0x70] sm:$0xff]
        %v1335 = vld [vmem:[#allocation8 + $0x78] sm:$0xff]
        %v1336 = vpack.c.bf16 %v1288, %v1288
        %v1337 = vpack.c.bf16 %v1289, %v1289
        %v1338 = vpack.c.bf16 %v1290, %v1290
        %v1339 = vpack.c.bf16 %v1291, %v1291
        %v1340 = vpack.c.bf16 %v1292, %v1292
        %v1341 = vpack.c.bf16 %v1293, %v1293
        %v1342 = vpack.c.bf16 %v1294, %v1294
        %v1343 = vpack.c.bf16 %v1295, %v1295
        %v1344 = vpack.c.bf16 %v1296, %v1296
        %v1345 = vpack.c.bf16 %v1297, %v1297
        %v1346 = vpack.c.bf16 %v1298, %v1298
        %v1347 = vpack.c.bf16 %v1299, %v1299
        %v1348 = vpack.c.bf16 %v1300, %v1300
        %v1349 = vpack.c.bf16 %v1301, %v1301
        %v1350 = vpack.c.bf16 %v1302, %v1302
        %v1351 = vpack.c.bf16 %v1303, %v1303
        %v1352 = vpack.c.bf16 %v1304, %v1304
        %v1353 = vpack.c.bf16 %v1305, %v1305
        %v1354 = vpack.c.bf16 %v1306, %v1306
        %v1355 = vpack.c.bf16 %v1307, %v1307
        %v1356 = vpack.c.bf16 %v1308, %v1308
        %v1357 = vpack.c.bf16 %v1309, %v1309
        %v1358 = vpack.c.bf16 %v1310, %v1310
        %v1359 = vpack.c.bf16 %v1311, %v1311
        %v1360 = vpack.c.bf16 %v1312, %v1312
        %v1361 = vpack.c.bf16 %v1313, %v1313
        %v1362 = vpack.c.bf16 %v1314, %v1314
        %v1363 = vpack.c.bf16 %v1315, %v1315
        %v1364 = vpack.c.bf16 %v1316, %v1316
        %v1365 = vpack.c.bf16 %v1317, %v1317
        %v1366 = vpack.c.bf16 %v1318, %v1318
        %v1367 = vpack.c.bf16 %v1319, %v1319
        %v1368 = vunpack.c.l.bf16 %v1336
        %v1369 = vunpack.c.l.bf16 %v1337
        %v1370 = vunpack.c.l.bf16 %v1338
        %v1371 = vunpack.c.l.bf16 %v1339
        %v1372 = vunpack.c.l.bf16 %v1340
        %v1373 = vunpack.c.l.bf16 %v1341
        %v1374 = vunpack.c.l.bf16 %v1342
        %v1375 = vunpack.c.l.bf16 %v1343
        %v1376 = vunpack.c.l.bf16 %v1344
        %v1377 = vunpack.c.l.bf16 %v1345
        %v1378 = vunpack.c.l.bf16 %v1346
        %v1379 = vunpack.c.l.bf16 %v1347
        %v1380 = vunpack.c.l.bf16 %v1348
        %v1381 = vunpack.c.l.bf16 %v1349
        %v1382 = vunpack.c.l.bf16 %v1350
        %v1383 = vunpack.c.l.bf16 %v1351
        %v1384 = vunpack.c.l.bf16 %v1352
        %v1385 = vunpack.c.l.bf16 %v1353
        %v1386 = vunpack.c.l.bf16 %v1354
        %v1387 = vunpack.c.l.bf16 %v1355
        %v1388 = vunpack.c.l.bf16 %v1356
        %v1389 = vunpack.c.l.bf16 %v1357
        %v1390 = vunpack.c.l.bf16 %v1358
        %v1391 = vunpack.c.l.bf16 %v1359
        %v1392 = vunpack.c.l.bf16 %v1360
        %v1393 = vunpack.c.l.bf16 %v1361
        %v1394 = vunpack.c.l.bf16 %v1362
        %v1395 = vunpack.c.l.bf16 %v1363
        %v1396 = vunpack.c.l.bf16 %v1364
        %v1397 = vunpack.c.l.bf16 %v1365
        %v1398 = vunpack.c.l.bf16 %v1366
        %v1399 = vunpack.c.l.bf16 %v1367
        %v1400 = vsub.f32 %v1288, %v1368
        %v1401 = vsub.f32 %v1289, %v1369
        %v1402 = vsub.f32 %v1290, %v1370
        %v1403 = vsub.f32 %v1291, %v1371
        %v1404 = vsub.f32 %v1292, %v1372
        %v1405 = vsub.f32 %v1293, %v1373
        %v1406 = vsub.f32 %v1294, %v1374
        %v1407 = vsub.f32 %v1295, %v1375
        %v1408 = vsub.f32 %v1296, %v1376
        %v1409 = vsub.f32 %v1297, %v1377
        %v1410 = vsub.f32 %v1298, %v1378
        %v1411 = vsub.f32 %v1299, %v1379
        %v1412 = vsub.f32 %v1300, %v1380
        %v1413 = vsub.f32 %v1301, %v1381
        %v1414 = vsub.f32 %v1302, %v1382
        %v1415 = vsub.f32 %v1303, %v1383
        %v1416 = vsub.f32 %v1304, %v1384
        %v1417 = vsub.f32 %v1305, %v1385
        %v1418 = vsub.f32 %v1306, %v1386
        %v1419 = vsub.f32 %v1307, %v1387
        %v1420 = vsub.f32 %v1308, %v1388
        %v1421 = vsub.f32 %v1309, %v1389
        %v1422 = vsub.f32 %v1310, %v1390
        %v1423 = vsub.f32 %v1311, %v1391
        %v1424 = vsub.f32 %v1312, %v1392
        %v1425 = vsub.f32 %v1313, %v1393
        %v1426 = vsub.f32 %v1314, %v1394
        %v1427 = vsub.f32 %v1315, %v1395
        %v1428 = vsub.f32 %v1316, %v1396
        %v1429 = vsub.f32 %v1317, %v1397
        %v1430 = vsub.f32 %v1318, %v1398
        %v1431 = vsub.f32 %v1319, %v1399
        %v1432 = vpack.c.bf16 %v1400, %v1400
        %v1433 = vpack.c.bf16 %v1401, %v1401
        %v1434 = vpack.c.bf16 %v1402, %v1402
        %v1435 = vpack.c.bf16 %v1403, %v1403
        %v1436 = vpack.c.bf16 %v1404, %v1404
        %v1437 = vpack.c.bf16 %v1405, %v1405
        %v1438 = vpack.c.bf16 %v1406, %v1406
        %v1439 = vpack.c.bf16 %v1407, %v1407
        %v1440 = vpack.c.bf16 %v1408, %v1408
        %v1441 = vpack.c.bf16 %v1409, %v1409
        %v1442 = vpack.c.bf16 %v1410, %v1410
        %v1443 = vpack.c.bf16 %v1411, %v1411
        %v1444 = vpack.c.bf16 %v1412, %v1412
        %v1445 = vpack.c.bf16 %v1413, %v1413
        %v1446 = vpack.c.bf16 %v1414, %v1414
        %v1447 = vpack.c.bf16 %v1415, %v1415
        %v1448 = vpack.c.bf16 %v1416, %v1416
        %v1449 = vpack.c.bf16 %v1417, %v1417
        %v1450 = vpack.c.bf16 %v1418, %v1418
        %v1451 = vpack.c.bf16 %v1419, %v1419
        %v1452 = vpack.c.bf16 %v1420, %v1420
        %v1453 = vpack.c.bf16 %v1421, %v1421
        %v1454 = vpack.c.bf16 %v1422, %v1422
        %v1455 = vpack.c.bf16 %v1423, %v1423
        %v1456 = vpack.c.bf16 %v1424, %v1424
        %v1457 = vpack.c.bf16 %v1425, %v1425
        %v1458 = vpack.c.bf16 %v1426, %v1426
        %v1459 = vpack.c.bf16 %v1427, %v1427
        %v1460 = vpack.c.bf16 %v1428, %v1428
        %v1461 = vpack.c.bf16 %v1429, %v1429
        %v1462 = vpack.c.bf16 %v1430, %v1430
        %v1463 = vpack.c.bf16 %v1431, %v1431
        %v1464 = vunpack.c.l.bf16 %v1432
        %v1465 = vunpack.c.l.bf16 %v1433
        %v1466 = vunpack.c.l.bf16 %v1434
        %v1467 = vunpack.c.l.bf16 %v1435
        %v1468 = vunpack.c.l.bf16 %v1436
        %v1469 = vunpack.c.l.bf16 %v1437
        %v1470 = vunpack.c.l.bf16 %v1438
        %v1471 = vunpack.c.l.bf16 %v1439
        %v1472 = vunpack.c.l.bf16 %v1440
        %v1473 = vunpack.c.l.bf16 %v1441
        %v1474 = vunpack.c.l.bf16 %v1442
        %v1475 = vunpack.c.l.bf16 %v1443
        %v1476 = vunpack.c.l.bf16 %v1444
        %v1477 = vunpack.c.l.bf16 %v1445
        %v1478 = vunpack.c.l.bf16 %v1446
        %v1479 = vunpack.c.l.bf16 %v1447
        %v1480 = vunpack.c.l.bf16 %v1448
        %v1481 = vunpack.c.l.bf16 %v1449
        %v1482 = vunpack.c.l.bf16 %v1450
        %v1483 = vunpack.c.l.bf16 %v1451
        %v1484 = vunpack.c.l.bf16 %v1452
        %v1485 = vunpack.c.l.bf16 %v1453
        %v1486 = vunpack.c.l.bf16 %v1454
        %v1487 = vunpack.c.l.bf16 %v1455
        %v1488 = vunpack.c.l.bf16 %v1456
        %v1489 = vunpack.c.l.bf16 %v1457
        %v1490 = vunpack.c.l.bf16 %v1458
        %v1491 = vunpack.c.l.bf16 %v1459
        %v1492 = vunpack.c.l.bf16 %v1460
        %v1493 = vunpack.c.l.bf16 %v1461
        %v1494 = vunpack.c.l.bf16 %v1462
        %v1495 = vunpack.c.l.bf16 %v1463
        %v1496 = vsub.f32 %v1400, %v1464
        %v1497 = vsub.f32 %v1401, %v1465
        %v1498 = vsub.f32 %v1402, %v1466
        %v1499 = vsub.f32 %v1403, %v1467
        %v1500 = vsub.f32 %v1404, %v1468
        %v1501 = vsub.f32 %v1405, %v1469
        %v1502 = vsub.f32 %v1406, %v1470
        %v1503 = vsub.f32 %v1407, %v1471
        %v1504 = vsub.f32 %v1408, %v1472
        %v1505 = vsub.f32 %v1409, %v1473
        %v1506 = vsub.f32 %v1410, %v1474
        %v1507 = vsub.f32 %v1411, %v1475
        %v1508 = vsub.f32 %v1412, %v1476
        %v1509 = vsub.f32 %v1413, %v1477
        %v1510 = vsub.f32 %v1414, %v1478
        %v1511 = vsub.f32 %v1415, %v1479
        %v1512 = vsub.f32 %v1416, %v1480
        %v1513 = vsub.f32 %v1417, %v1481
        %v1514 = vsub.f32 %v1418, %v1482
        %v1515 = vsub.f32 %v1419, %v1483
        %v1516 = vsub.f32 %v1420, %v1484
        %v1517 = vsub.f32 %v1421, %v1485
        %v1518 = vsub.f32 %v1422, %v1486
        %v1519 = vsub.f32 %v1423, %v1487
        %v1520 = vsub.f32 %v1424, %v1488
        %v1521 = vsub.f32 %v1425, %v1489
        %v1522 = vsub.f32 %v1426, %v1490
        %v1523 = vsub.f32 %v1427, %v1491
        %v1524 = vsub.f32 %v1428, %v1492
        %v1525 = vsub.f32 %v1429, %v1493
        %v1526 = vsub.f32 %v1430, %v1494
        %v1527 = vsub.f32 %v1431, %v1495
        %v1528 = vpack.c.bf16 %v1497, %v1496
        %v1529 = vpack.c.bf16 %v1499, %v1498
        %v1530 = vpack.c.bf16 %v1501, %v1500
        %v1531 = vpack.c.bf16 %v1503, %v1502
        %v1532 = vpack.c.bf16 %v1505, %v1504
        %v1533 = vpack.c.bf16 %v1507, %v1506
        %v1534 = vpack.c.bf16 %v1509, %v1508
        %v1535 = vpack.c.bf16 %v1511, %v1510
        %v1536 = vpack.c.bf16 %v1513, %v1512
        %v1537 = vpack.c.bf16 %v1515, %v1514
        %v1538 = vpack.c.bf16 %v1517, %v1516
        %v1539 = vpack.c.bf16 %v1519, %v1518
        %v1540 = vpack.c.bf16 %v1521, %v1520
        %v1541 = vpack.c.bf16 %v1523, %v1522
        %v1542 = vpack.c.bf16 %v1525, %v1524
        %v1543 = vpack.c.bf16 %v1527, %v1526
        %v1576 = vunpack.c.l.b16 %v1432
        %v1577 = vunpack.c.l.b16 %v1433
        %v1578 = vunpack.c.l.b16 %v1434
        %v1579 = vunpack.c.l.b16 %v1435
        %v1580 = vunpack.c.l.b16 %v1436
        %v1581 = vunpack.c.l.b16 %v1437
        %v1582 = vunpack.c.l.b16 %v1438
        %v1583 = vunpack.c.l.b16 %v1439
        %v1584 = vunpack.c.l.b16 %v1440
        %v1585 = vunpack.c.l.b16 %v1441
        %v1586 = vunpack.c.l.b16 %v1442
        %v1587 = vunpack.c.l.b16 %v1443
        %v1588 = vunpack.c.l.b16 %v1444
        %v1589 = vunpack.c.l.b16 %v1445
        %v1590 = vunpack.c.l.b16 %v1446
        %v1591 = vunpack.c.l.b16 %v1447
        %v1592 = vunpack.c.l.b16 %v1448
        %v1593 = vunpack.c.l.b16 %v1449
        %v1594 = vunpack.c.l.b16 %v1450
        %v1595 = vunpack.c.l.b16 %v1451
        %v1596 = vunpack.c.l.b16 %v1452
        %v1597 = vunpack.c.l.b16 %v1453
        %v1598 = vunpack.c.l.b16 %v1454
        %v1599 = vunpack.c.l.b16 %v1455
        %v1600 = vunpack.c.l.b16 %v1456
        %v1601 = vunpack.c.l.b16 %v1457
        %v1602 = vunpack.c.l.b16 %v1458
        %v1603 = vunpack.c.l.b16 %v1459
        %v1604 = vunpack.c.l.b16 %v1460
        %v1605 = vunpack.c.l.b16 %v1461
        %v1606 = vunpack.c.l.b16 %v1462
        %v1607 = vunpack.c.l.b16 %v1463
        %v1608 = vpack.c.b16 %v1577, %v1576
        %v1609 = vpack.c.b16 %v1579, %v1578
        %v1610 = vpack.c.b16 %v1581, %v1580
        %v1611 = vpack.c.b16 %v1583, %v1582
        %v1612 = vpack.c.b16 %v1585, %v1584
        %v1613 = vpack.c.b16 %v1587, %v1586
        %v1614 = vpack.c.b16 %v1589, %v1588
        %v1615 = vpack.c.b16 %v1591, %v1590
        %v1616 = vpack.c.b16 %v1593, %v1592
        %v1617 = vpack.c.b16 %v1595, %v1594
        %v1618 = vpack.c.b16 %v1597, %v1596
        %v1619 = vpack.c.b16 %v1599, %v1598
        %v1620 = vpack.c.b16 %v1601, %v1600
        %v1621 = vpack.c.b16 %v1603, %v1602
        %v1622 = vpack.c.b16 %v1605, %v1604
        %v1623 = vpack.c.b16 %v1607, %v1606
        %v1640 = vunpack.c.l.b16 %v1320
        %v1641 = vunpack.c.h.b16 %v1320
        %v1642 = vunpack.c.l.b16 %v1321
        %v1643 = vunpack.c.h.b16 %v1321
        %v1644 = vunpack.c.l.b16 %v1322
        %v1645 = vunpack.c.h.b16 %v1322
        %v1646 = vunpack.c.l.b16 %v1323
        %v1647 = vunpack.c.h.b16 %v1323
        %v1648 = vunpack.c.l.b16 %v1324
        %v1649 = vunpack.c.h.b16 %v1324
        %v1650 = vunpack.c.l.b16 %v1325
        %v1651 = vunpack.c.h.b16 %v1325
        %v1652 = vunpack.c.l.b16 %v1326
        %v1653 = vunpack.c.h.b16 %v1326
        %v1654 = vunpack.c.l.b16 %v1327
        %v1655 = vunpack.c.h.b16 %v1327
        %v1656 = vunpack.c.l.b16 %v1328
        %v1657 = vunpack.c.h.b16 %v1328
        %v1658 = vunpack.c.l.b16 %v1329
        %v1659 = vunpack.c.h.b16 %v1329
        %v1660 = vunpack.c.l.b16 %v1330
        %v1661 = vunpack.c.h.b16 %v1330
        %v1662 = vunpack.c.l.b16 %v1331
        %v1663 = vunpack.c.h.b16 %v1331
        %v1664 = vunpack.c.l.b16 %v1332
        %v1665 = vunpack.c.h.b16 %v1332
        %v1666 = vunpack.c.l.b16 %v1333
        %v1667 = vunpack.c.h.b16 %v1333
        %v1668 = vunpack.c.l.b16 %v1334
        %v1669 = vunpack.c.h.b16 %v1334
        %v1670 = vunpack.c.l.b16 %v1335
        %v1671 = vunpack.c.h.b16 %v1335
        %v1672 = vpack.c.b16 %v1644, %v1640
        %v1673 = vpack.c.b16 %v1645, %v1641
        %v1674 = vpack.c.b16 %v1646, %v1642
        %v1675 = vpack.c.b16 %v1647, %v1643
        %v1676 = vpack.c.b16 %v1652, %v1648
        %v1677 = vpack.c.b16 %v1653, %v1649
        %v1678 = vpack.c.b16 %v1654, %v1650
        %v1679 = vpack.c.b16 %v1655, %v1651
        %v1680 = vpack.c.b16 %v1660, %v1656
        %v1681 = vpack.c.b16 %v1661, %v1657
        %v1682 = vpack.c.b16 %v1662, %v1658
        %v1683 = vpack.c.b16 %v1663, %v1659
        %v1684 = vpack.c.b16 %v1668, %v1664
        %v1685 = vpack.c.b16 %v1669, %v1665
        %v1686 = vpack.c.b16 %v1670, %v1666
        %v1687 = vpack.c.b16 %v1671, %v1667
        %vm1704 = vcmask 523264
        %v1706 = vsel %vm1704, %v1608, 0
        %v1709 = vsel %vm1704, %v1609, 0
        %v1712 = vsel %vm1704, %v1610, 0
        %v1715 = vsel %vm1704, %v1611, 0
        %v1718 = vsel %vm1704, %v1612, 0
        %v1721 = vsel %vm1704, %v1613, 0
        %v1724 = vsel %vm1704, %v1614, 0
        %v1727 = vsel %vm1704, %v1615, 0
        %v1730 = vsel %vm1704, %v1616, 0
        %v1733 = vsel %vm1704, %v1617, 0
        %v1736 = vsel %vm1704, %v1618, 0
        %v1739 = vsel %vm1704, %v1619, 0
        %v1742 = vsel %vm1704, %v1620, 0
        %v1745 = vsel %vm1704, %v1621, 0
        %v1748 = vsel %vm1704, %v1622, 0
        %v1751 = vsel %vm1704, %v1623, 0
        %1753 = vmatpush.bf16.msra.mxu0 0
        %1754 = vmatpush.bf16.msra.mxu0 0
        %1755 = vmatpush.bf16.msra.mxu0 0
        %1756 = vmatpush.bf16.msra.mxu0 0
        %1757 = vmatpush.bf16.msra.mxu0 %v1684
        %1758 = vmatpush.bf16.msra.mxu0 %v1680
        %1759 = vmatpush.bf16.msra.mxu0 %v1676
        %1760 = vmatpush.bf16.msra.mxu0 %v1672
        %1761 = vmatmul.bf16.gmra.mxu0 %v1706
        %v1762 = vpop.f32.mrf.mxu0
        %v1763 = vadd.f32 0.0, %v1762
        %v1764 = vpop.f32.mrf.mxu0
        %v1765 = vadd.f32 0.0, %v1764
        %1766 = vmatmul.bf16.gmra.mxu0 %v1709
        %v1767 = vpop.f32.mrf.mxu0
        %v1768 = vadd.f32 0.0, %v1767
        %v1769 = vpop.f32.mrf.mxu0
        %v1770 = vadd.f32 0.0, %v1769
        %1771 = vmatmul.bf16.gmra.mxu0 %v1712
        %v1772 = vpop.f32.mrf.mxu0
        %v1773 = vadd.f32 0.0, %v1772
        %v1774 = vpop.f32.mrf.mxu0
        %v1775 = vadd.f32 0.0, %v1774
        %1776 = vmatmul.bf16.gmra.mxu0 %v1715
        %v1777 = vpop.f32.mrf.mxu0
        %v1778 = vadd.f32 0.0, %v1777
        %v1779 = vpop.f32.mrf.mxu0
        %v1780 = vadd.f32 0.0, %v1779
        %1781 = vmatmul.bf16.gmra.mxu0 %v1718
        %v1782 = vpop.f32.mrf.mxu0
        %v1783 = vadd.f32 0.0, %v1782
        %v1784 = vpop.f32.mrf.mxu0
        %v1785 = vadd.f32 0.0, %v1784
        %1786 = vmatmul.bf16.gmra.mxu0 %v1721
        %v1787 = vpop.f32.mrf.mxu0
        %v1788 = vadd.f32 0.0, %v1787
        %v1789 = vpop.f32.mrf.mxu0
        %v1790 = vadd.f32 0.0, %v1789
        %1791 = vmatmul.bf16.gmra.mxu0 %v1724
        %v1792 = vpop.f32.mrf.mxu0
        %v1793 = vadd.f32 0.0, %v1792
        %v1794 = vpop.f32.mrf.mxu0
        %v1795 = vadd.f32 0.0, %v1794
        %1796 = vmatmul.bf16.gmra.mxu0 %v1727
        %v1797 = vpop.f32.mrf.mxu0
        %v1798 = vadd.f32 0.0, %v1797
        %v1799 = vpop.f32.mrf.mxu0
        %v1800 = vadd.f32 0.0, %v1799
        %1801 = vmatmul.bf16.gmra.mxu0 %v1730
        %v1802 = vpop.f32.mrf.mxu0
        %v1803 = vadd.f32 0.0, %v1802
        %v1804 = vpop.f32.mrf.mxu0
        %v1805 = vadd.f32 0.0, %v1804
        %1806 = vmatmul.bf16.gmra.mxu0 %v1733
        %v1807 = vpop.f32.mrf.mxu0
        %v1808 = vadd.f32 0.0, %v1807
        %v1809 = vpop.f32.mrf.mxu0
        %v1810 = vadd.f32 0.0, %v1809
        %1811 = vmatmul.bf16.gmra.mxu0 %v1736
        %v1812 = vpop.f32.mrf.mxu0
        %v1813 = vadd.f32 0.0, %v1812
        %v1814 = vpop.f32.mrf.mxu0
        %v1815 = vadd.f32 0.0, %v1814
        %1816 = vmatmul.bf16.gmra.mxu0 %v1739
        %v1817 = vpop.f32.mrf.mxu0
        %v1818 = vadd.f32 0.0, %v1817
        %v1819 = vpop.f32.mrf.mxu0
        %v1820 = vadd.f32 0.0, %v1819
        %1821 = vmatmul.bf16.gmra.mxu0 %v1742
        %v1822 = vpop.f32.mrf.mxu0
        %v1823 = vadd.f32 0.0, %v1822
        %v1824 = vpop.f32.mrf.mxu0
        %v1825 = vadd.f32 0.0, %v1824
        %1826 = vmatmul.bf16.gmra.mxu0 %v1745
        %v1827 = vpop.f32.mrf.mxu0
        %v1828 = vadd.f32 0.0, %v1827
        %v1829 = vpop.f32.mrf.mxu0
        %v1830 = vadd.f32 0.0, %v1829
        %1831 = vmatmul.bf16.gmra.mxu0 %v1748
        %v1832 = vpop.f32.mrf.mxu0
        %v1833 = vadd.f32 0.0, %v1832
        %v1834 = vpop.f32.mrf.mxu0
        %v1835 = vadd.f32 0.0, %v1834
        %1836 = vmatmul.bf16.gmra.mxu0 %v1751
        %v1837 = vpop.f32.mrf.mxu0
        %v1838 = vadd.f32 0.0, %v1837
        %v1839 = vpop.f32.mrf.mxu0
        %v1840 = vadd.f32 0.0, %v1839
        %1841 = vdwg.mxu0
        %1842 = vmatpush.bf16.msra.mxu0 0
        %1843 = vmatpush.bf16.msra.mxu0 0
        %1844 = vmatpush.bf16.msra.mxu0 0
        %1845 = vmatpush.bf16.msra.mxu0 0
        %1846 = vmatpush.bf16.msra.mxu0 %v1685
        %1847 = vmatpush.bf16.msra.mxu0 %v1681
        %1848 = vmatpush.bf16.msra.mxu0 %v1677
        %1849 = vmatpush.bf16.msra.mxu0 %v1673
        %1850 = vmatmul.bf16.gmra.mxu0 %v1706
        %v1851 = vpop.f32.mrf.mxu0
        %v1852 = vadd.f32 0.0, %v1851
        %v1853 = vpop.f32.mrf.mxu0
        %v1854 = vadd.f32 0.0, %v1853
        %1855 = vmatmul.bf16.gmra.mxu0 %v1709
        %v1856 = vpop.f32.mrf.mxu0
        %v1857 = vadd.f32 0.0, %v1856
        %v1858 = vpop.f32.mrf.mxu0
        %v1859 = vadd.f32 0.0, %v1858
        %1860 = vmatmul.bf16.gmra.mxu0 %v1712
        %v1861 = vpop.f32.mrf.mxu0
        %v1862 = vadd.f32 0.0, %v1861
        %v1863 = vpop.f32.mrf.mxu0
        %v1864 = vadd.f32 0.0, %v1863
        %1865 = vmatmul.bf16.gmra.mxu0 %v1715
        %v1866 = vpop.f32.mrf.mxu0
        %v1867 = vadd.f32 0.0, %v1866
        %v1868 = vpop.f32.mrf.mxu0
        %v1869 = vadd.f32 0.0, %v1868
        %1870 = vmatmul.bf16.gmra.mxu0 %v1718
        %v1871 = vpop.f32.mrf.mxu0
        %v1872 = vadd.f32 0.0, %v1871
        %v1873 = vpop.f32.mrf.mxu0
        %v1874 = vadd.f32 0.0, %v1873
        %1875 = vmatmul.bf16.gmra.mxu0 %v1721
        %v1876 = vpop.f32.mrf.mxu0
        %v1877 = vadd.f32 0.0, %v1876
        %v1878 = vpop.f32.mrf.mxu0
        %v1879 = vadd.f32 0.0, %v1878
        %1880 = vmatmul.bf16.gmra.mxu0 %v1724
        %v1881 = vpop.f32.mrf.mxu0
        %v1882 = vadd.f32 0.0, %v1881
        %v1883 = vpop.f32.mrf.mxu0
        %v1884 = vadd.f32 0.0, %v1883
        %1885 = vmatmul.bf16.gmra.mxu0 %v1727
        %v1886 = vpop.f32.mrf.mxu0
        %v1887 = vadd.f32 0.0, %v1886
        %v1888 = vpop.f32.mrf.mxu0
        %v1889 = vadd.f32 0.0, %v1888
        %1890 = vmatmul.bf16.gmra.mxu0 %v1730
        %v1891 = vpop.f32.mrf.mxu0
        %v1892 = vadd.f32 0.0, %v1891
        %v1893 = vpop.f32.mrf.mxu0
        %v1894 = vadd.f32 0.0, %v1893
        %1895 = vmatmul.bf16.gmra.mxu0 %v1733
        %v1896 = vpop.f32.mrf.mxu0
        %v1897 = vadd.f32 0.0, %v1896
        %v1898 = vpop.f32.mrf.mxu0
        %v1899 = vadd.f32 0.0, %v1898
        %1900 = vmatmul.bf16.gmra.mxu0 %v1736
        %v1901 = vpop.f32.mrf.mxu0
        %v1902 = vadd.f32 0.0, %v1901
        %v1903 = vpop.f32.mrf.mxu0
        %v1904 = vadd.f32 0.0, %v1903
        %1905 = vmatmul.bf16.gmra.mxu0 %v1739
        %v1906 = vpop.f32.mrf.mxu0
        %v1907 = vadd.f32 0.0, %v1906
        %v1908 = vpop.f32.mrf.mxu0
        %v1909 = vadd.f32 0.0, %v1908
        %1910 = vmatmul.bf16.gmra.mxu0 %v1742
        %v1911 = vpop.f32.mrf.mxu0
        %v1912 = vadd.f32 0.0, %v1911
        %v1913 = vpop.f32.mrf.mxu0
        %v1914 = vadd.f32 0.0, %v1913
        %1915 = vmatmul.bf16.gmra.mxu0 %v1745
        %v1916 = vpop.f32.mrf.mxu0
        %v1917 = vadd.f32 0.0, %v1916
        %v1918 = vpop.f32.mrf.mxu0
        %v1919 = vadd.f32 0.0, %v1918
        %1920 = vmatmul.bf16.gmra.mxu0 %v1748
        %v1921 = vpop.f32.mrf.mxu0
        %v1922 = vadd.f32 0.0, %v1921
        %v1923 = vpop.f32.mrf.mxu0
        %v1924 = vadd.f32 0.0, %v1923
        %1925 = vmatmul.bf16.gmra.mxu0 %v1751
        %v1926 = vpop.f32.mrf.mxu0
        %v1927 = vadd.f32 0.0, %v1926
        %v1928 = vpop.f32.mrf.mxu0
        %v1929 = vadd.f32 0.0, %v1928
        %1930 = vdwg.mxu0
        %1931 = vmatpush.bf16.msra.mxu0 0
        %1932 = vmatpush.bf16.msra.mxu0 0
        %1933 = vmatpush.bf16.msra.mxu0 0
        %1934 = vmatpush.bf16.msra.mxu0 0
        %1935 = vmatpush.bf16.msra.mxu0 %v1686
        %1936 = vmatpush.bf16.msra.mxu0 %v1682
        %1937 = vmatpush.bf16.msra.mxu0 %v1678
        %1938 = vmatpush.bf16.msra.mxu0 %v1674
        %1939 = vmatmul.bf16.gmra.mxu0 %v1706
        %v1940 = vpop.f32.mrf.mxu0
        %v1941 = vadd.f32 0.0, %v1940
        %v1942 = vpop.f32.mrf.mxu0
        %v1943 = vadd.f32 0.0, %v1942
        %1944 = vmatmul.bf16.gmra.mxu0 %v1709
        %v1945 = vpop.f32.mrf.mxu0
        %v1946 = vadd.f32 0.0, %v1945
        %v1947 = vpop.f32.mrf.mxu0
        %v1948 = vadd.f32 0.0, %v1947
        %1949 = vmatmul.bf16.gmra.mxu0 %v1712
        %v1950 = vpop.f32.mrf.mxu0
        %v1951 = vadd.f32 0.0, %v1950
        %v1952 = vpop.f32.mrf.mxu0
        %v1953 = vadd.f32 0.0, %v1952
        %1954 = vmatmul.bf16.gmra.mxu0 %v1715
        %v1955 = vpop.f32.mrf.mxu0
        %v1956 = vadd.f32 0.0, %v1955
        %v1957 = vpop.f32.mrf.mxu0
        %v1958 = vadd.f32 0.0, %v1957
        %1959 = vmatmul.bf16.gmra.mxu0 %v1718
        %v1960 = vpop.f32.mrf.mxu0
        %v1961 = vadd.f32 0.0, %v1960
        %v1962 = vpop.f32.mrf.mxu0
        %v1963 = vadd.f32 0.0, %v1962
        %1964 = vmatmul.bf16.gmra.mxu0 %v1721
        %v1965 = vpop.f32.mrf.mxu0
        %v1966 = vadd.f32 0.0, %v1965
        %v1967 = vpop.f32.mrf.mxu0
        %v1968 = vadd.f32 0.0, %v1967
        %1969 = vmatmul.bf16.gmra.mxu0 %v1724
        %v1970 = vpop.f32.mrf.mxu0
        %v1971 = vadd.f32 0.0, %v1970
        %v1972 = vpop.f32.mrf.mxu0
        %v1973 = vadd.f32 0.0, %v1972
        %1974 = vmatmul.bf16.gmra.mxu0 %v1727
        %v1975 = vpop.f32.mrf.mxu0
        %v1976 = vadd.f32 0.0, %v1975
        %v1977 = vpop.f32.mrf.mxu0
        %v1978 = vadd.f32 0.0, %v1977
        %1979 = vmatmul.bf16.gmra.mxu0 %v1730
        %v1980 = vpop.f32.mrf.mxu0
        %v1981 = vadd.f32 0.0, %v1980
        %v1982 = vpop.f32.mrf.mxu0
        %v1983 = vadd.f32 0.0, %v1982
        %1984 = vmatmul.bf16.gmra.mxu0 %v1733
        %v1985 = vpop.f32.mrf.mxu0
        %v1986 = vadd.f32 0.0, %v1985
        %v1987 = vpop.f32.mrf.mxu0
        %v1988 = vadd.f32 0.0, %v1987
        %1989 = vmatmul.bf16.gmra.mxu0 %v1736
        %v1990 = vpop.f32.mrf.mxu0
        %v1991 = vadd.f32 0.0, %v1990
        %v1992 = vpop.f32.mrf.mxu0
        %v1993 = vadd.f32 0.0, %v1992
        %1994 = vmatmul.bf16.gmra.mxu0 %v1739
        %v1995 = vpop.f32.mrf.mxu0
        %v1996 = vadd.f32 0.0, %v1995
        %v1997 = vpop.f32.mrf.mxu0
        %v1998 = vadd.f32 0.0, %v1997
        %1999 = vmatmul.bf16.gmra.mxu0 %v1742
        %v2000 = vpop.f32.mrf.mxu0
        %v2001 = vadd.f32 0.0, %v2000
        %v2002 = vpop.f32.mrf.mxu0
        %v2003 = vadd.f32 0.0, %v2002
        %2004 = vmatmul.bf16.gmra.mxu0 %v1745
        %v2005 = vpop.f32.mrf.mxu0
        %v2006 = vadd.f32 0.0, %v2005
        %v2007 = vpop.f32.mrf.mxu0
        %v2008 = vadd.f32 0.0, %v2007
        %2009 = vmatmul.bf16.gmra.mxu0 %v1748
        %v2010 = vpop.f32.mrf.mxu0
        %v2011 = vadd.f32 0.0, %v2010
        %v2012 = vpop.f32.mrf.mxu0
        %v2013 = vadd.f32 0.0, %v2012
        %2014 = vmatmul.bf16.gmra.mxu0 %v1751
        %v2015 = vpop.f32.mrf.mxu0
        %v2016 = vadd.f32 0.0, %v2015
        %v2017 = vpop.f32.mrf.mxu0
        %v2018 = vadd.f32 0.0, %v2017
        %2019 = vdwg.mxu0
        %2020 = vmatpush.bf16.msra.mxu0 0
        %2021 = vmatpush.bf16.msra.mxu0 0
        %2022 = vmatpush.bf16.msra.mxu0 0
        %2023 = vmatpush.bf16.msra.mxu0 0
        %2024 = vmatpush.bf16.msra.mxu0 %v1687
        %2025 = vmatpush.bf16.msra.mxu0 %v1683
        %2026 = vmatpush.bf16.msra.mxu0 %v1679
        %2027 = vmatpush.bf16.msra.mxu0 %v1675
        %2028 = vmatmul.bf16.gmra.mxu0 %v1706
        %v2029 = vpop.f32.mrf.mxu0
        %v2030 = vadd.f32 0.0, %v2029
        %v2031 = vpop.f32.mrf.mxu0
        %v2032 = vadd.f32 0.0, %v2031
        %2033 = vmatmul.bf16.gmra.mxu0 %v1709
        %v2034 = vpop.f32.mrf.mxu0
        %v2035 = vadd.f32 0.0, %v2034
        %v2036 = vpop.f32.mrf.mxu0
        %v2037 = vadd.f32 0.0, %v2036
        %2038 = vmatmul.bf16.gmra.mxu0 %v1712
        %v2039 = vpop.f32.mrf.mxu0
        %v2040 = vadd.f32 0.0, %v2039
        %v2041 = vpop.f32.mrf.mxu0
        %v2042 = vadd.f32 0.0, %v2041
        %2043 = vmatmul.bf16.gmra.mxu0 %v1715
        %v2044 = vpop.f32.mrf.mxu0
        %v2045 = vadd.f32 0.0, %v2044
        %v2046 = vpop.f32.mrf.mxu0
        %v2047 = vadd.f32 0.0, %v2046
        %2048 = vmatmul.bf16.gmra.mxu0 %v1718
        %v2049 = vpop.f32.mrf.mxu0
        %v2050 = vadd.f32 0.0, %v2049
        %v2051 = vpop.f32.mrf.mxu0
        %v2052 = vadd.f32 0.0, %v2051
        %2053 = vmatmul.bf16.gmra.mxu0 %v1721
        %v2054 = vpop.f32.mrf.mxu0
        %v2055 = vadd.f32 0.0, %v2054
        %v2056 = vpop.f32.mrf.mxu0
        %v2057 = vadd.f32 0.0, %v2056
        %2058 = vmatmul.bf16.gmra.mxu0 %v1724
        %v2059 = vpop.f32.mrf.mxu0
        %v2060 = vadd.f32 0.0, %v2059
        %v2061 = vpop.f32.mrf.mxu0
        %v2062 = vadd.f32 0.0, %v2061
        %2063 = vmatmul.bf16.gmra.mxu0 %v1727
        %v2064 = vpop.f32.mrf.mxu0
        %v2065 = vadd.f32 0.0, %v2064
        %v2066 = vpop.f32.mrf.mxu0
        %v2067 = vadd.f32 0.0, %v2066
        %2068 = vmatmul.bf16.gmra.mxu0 %v1730
        %v2069 = vpop.f32.mrf.mxu0
        %v2070 = vadd.f32 0.0, %v2069
        %v2071 = vpop.f32.mrf.mxu0
        %v2072 = vadd.f32 0.0, %v2071
        %2073 = vmatmul.bf16.gmra.mxu0 %v1733
        %v2074 = vpop.f32.mrf.mxu0
        %v2075 = vadd.f32 0.0, %v2074
        %v2076 = vpop.f32.mrf.mxu0
        %v2077 = vadd.f32 0.0, %v2076
        %2078 = vmatmul.bf16.gmra.mxu0 %v1736
        %v2079 = vpop.f32.mrf.mxu0
        %v2080 = vadd.f32 0.0, %v2079
        %v2081 = vpop.f32.mrf.mxu0
        %v2082 = vadd.f32 0.0, %v2081
        %2083 = vmatmul.bf16.gmra.mxu0 %v1739
        %v2084 = vpop.f32.mrf.mxu0
        %v2085 = vadd.f32 0.0, %v2084
        %v2086 = vpop.f32.mrf.mxu0
        %v2087 = vadd.f32 0.0, %v2086
        %2088 = vmatmul.bf16.gmra.mxu0 %v1742
        %v2089 = vpop.f32.mrf.mxu0
        %v2090 = vadd.f32 0.0, %v2089
        %v2091 = vpop.f32.mrf.mxu0
        %v2092 = vadd.f32 0.0, %v2091
        %2093 = vmatmul.bf16.gmra.mxu0 %v1745
        %v2094 = vpop.f32.mrf.mxu0
        %v2095 = vadd.f32 0.0, %v2094
        %v2096 = vpop.f32.mrf.mxu0
        %v2097 = vadd.f32 0.0, %v2096
        %2098 = vmatmul.bf16.gmra.mxu0 %v1748
        %v2099 = vpop.f32.mrf.mxu0
        %v2100 = vadd.f32 0.0, %v2099
        %v2101 = vpop.f32.mrf.mxu0
        %v2102 = vadd.f32 0.0, %v2101
        %2103 = vmatmul.bf16.gmra.mxu0 %v1751
        %v2104 = vpop.f32.mrf.mxu0
        %v2105 = vadd.f32 0.0, %v2104
        %v2106 = vpop.f32.mrf.mxu0
        %v2107 = vadd.f32 0.0, %v2106
        %2108 = vdwg.mxu0
        %v2141 = vunpack.c.l.b16 %v1336
        %v2142 = vunpack.c.l.b16 %v1337
        %v2143 = vunpack.c.l.b16 %v1338
        %v2144 = vunpack.c.l.b16 %v1339
        %v2145 = vunpack.c.l.b16 %v1340
        %v2146 = vunpack.c.l.b16 %v1341
        %v2147 = vunpack.c.l.b16 %v1342
        %v2148 = vunpack.c.l.b16 %v1343
        %v2149 = vunpack.c.l.b16 %v1344
        %v2150 = vunpack.c.l.b16 %v1345
        %v2151 = vunpack.c.l.b16 %v1346
        %v2152 = vunpack.c.l.b16 %v1347
        %v2153 = vunpack.c.l.b16 %v1348
        %v2154 = vunpack.c.l.b16 %v1349
        %v2155 = vunpack.c.l.b16 %v1350
        %v2156 = vunpack.c.l.b16 %v1351
        %v2157 = vunpack.c.l.b16 %v1352
        %v2158 = vunpack.c.l.b16 %v1353
        %v2159 = vunpack.c.l.b16 %v1354
        %v2160 = vunpack.c.l.b16 %v1355
        %v2161 = vunpack.c.l.b16 %v1356
        %v2162 = vunpack.c.l.b16 %v1357
        %v2163 = vunpack.c.l.b16 %v1358
        %v2164 = vunpack.c.l.b16 %v1359
        %v2165 = vunpack.c.l.b16 %v1360
        %v2166 = vunpack.c.l.b16 %v1361
        %v2167 = vunpack.c.l.b16 %v1362
        %v2168 = vunpack.c.l.b16 %v1363
        %v2169 = vunpack.c.l.b16 %v1364
        %v2170 = vunpack.c.l.b16 %v1365
        %v2171 = vunpack.c.l.b16 %v1366
        %v2172 = vunpack.c.l.b16 %v1367
        %v2173 = vpack.c.b16 %v2142, %v2141
        %v2174 = vpack.c.b16 %v2144, %v2143
        %v2175 = vpack.c.b16 %v2146, %v2145
        %v2176 = vpack.c.b16 %v2148, %v2147
        %v2177 = vpack.c.b16 %v2150, %v2149
        %v2178 = vpack.c.b16 %v2152, %v2151
        %v2179 = vpack.c.b16 %v2154, %v2153
        %v2180 = vpack.c.b16 %v2156, %v2155
        %v2181 = vpack.c.b16 %v2158, %v2157
        %v2182 = vpack.c.b16 %v2160, %v2159
        %v2183 = vpack.c.b16 %v2162, %v2161
        %v2184 = vpack.c.b16 %v2164, %v2163
        %v2185 = vpack.c.b16 %v2166, %v2165
        %v2186 = vpack.c.b16 %v2168, %v2167
        %v2187 = vpack.c.b16 %v2170, %v2169
        %v2188 = vpack.c.b16 %v2172, %v2171
        %v2190 = vsel %vm1704, %v2173, 0
        %v2193 = vsel %vm1704, %v2174, 0
        %v2196 = vsel %vm1704, %v2175, 0
        %v2199 = vsel %vm1704, %v2176, 0
        %v2202 = vsel %vm1704, %v2177, 0
        %v2205 = vsel %vm1704, %v2178, 0
        %v2208 = vsel %vm1704, %v2179, 0
        %v2211 = vsel %vm1704, %v2180, 0
        %v2214 = vsel %vm1704, %v2181, 0
        %v2217 = vsel %vm1704, %v2182, 0
        %v2220 = vsel %vm1704, %v2183, 0
        %v2223 = vsel %vm1704, %v2184, 0
        %v2226 = vsel %vm1704, %v2185, 0
        %v2229 = vsel %vm1704, %v2186, 0
        %v2232 = vsel %vm1704, %v2187, 0
        %v2235 = vsel %vm1704, %v2188, 0
        %2237 = vmatpush.bf16.msra.mxu0 0
        %2238 = vmatpush.bf16.msra.mxu0 0
        %2239 = vmatpush.bf16.msra.mxu0 0
        %2240 = vmatpush.bf16.msra.mxu0 0
        %2241 = vmatpush.bf16.msra.mxu0 %v1684
        %2242 = vmatpush.bf16.msra.mxu0 %v1680
        %2243 = vmatpush.bf16.msra.mxu0 %v1676
        %2244 = vmatpush.bf16.msra.mxu0 %v1672
        %2245 = vmatmul.bf16.gmra.mxu0 %v2190
        %v2246 = vpop.f32.mrf.mxu0
        %v2247 = vadd.f32 %v1763, %v2246
        %v2248 = vpop.f32.mrf.mxu0
        %v2249 = vadd.f32 %v1765, %v2248
        %2250 = vmatmul.bf16.gmra.mxu0 %v2193
        %v2251 = vpop.f32.mrf.mxu0
        %v2252 = vadd.f32 %v1768, %v2251
        %v2253 = vpop.f32.mrf.mxu0
        %v2254 = vadd.f32 %v1770, %v2253
        %2255 = vmatmul.bf16.gmra.mxu0 %v2196
        %v2256 = vpop.f32.mrf.mxu0
        %v2257 = vadd.f32 %v1773, %v2256
        %v2258 = vpop.f32.mrf.mxu0
        %v2259 = vadd.f32 %v1775, %v2258
        %2260 = vmatmul.bf16.gmra.mxu0 %v2199
        %v2261 = vpop.f32.mrf.mxu0
        %v2262 = vadd.f32 %v1778, %v2261
        %v2263 = vpop.f32.mrf.mxu0
        %v2264 = vadd.f32 %v1780, %v2263
        %2265 = vmatmul.bf16.gmra.mxu0 %v2202
        %v2266 = vpop.f32.mrf.mxu0
        %v2267 = vadd.f32 %v1783, %v2266
        %v2268 = vpop.f32.mrf.mxu0
        %v2269 = vadd.f32 %v1785, %v2268
        %2270 = vmatmul.bf16.gmra.mxu0 %v2205
        %v2271 = vpop.f32.mrf.mxu0
        %v2272 = vadd.f32 %v1788, %v2271
        %v2273 = vpop.f32.mrf.mxu0
        %v2274 = vadd.f32 %v1790, %v2273
        %2275 = vmatmul.bf16.gmra.mxu0 %v2208
        %v2276 = vpop.f32.mrf.mxu0
        %v2277 = vadd.f32 %v1793, %v2276
        %v2278 = vpop.f32.mrf.mxu0
        %v2279 = vadd.f32 %v1795, %v2278
        %2280 = vmatmul.bf16.gmra.mxu0 %v2211
        %v2281 = vpop.f32.mrf.mxu0
        %v2282 = vadd.f32 %v1798, %v2281
        %v2283 = vpop.f32.mrf.mxu0
        %v2284 = vadd.f32 %v1800, %v2283
        %2285 = vmatmul.bf16.gmra.mxu0 %v2214
        %v2286 = vpop.f32.mrf.mxu0
        %v2287 = vadd.f32 %v1803, %v2286
        %v2288 = vpop.f32.mrf.mxu0
        %v2289 = vadd.f32 %v1805, %v2288
        %2290 = vmatmul.bf16.gmra.mxu0 %v2217
        %v2291 = vpop.f32.mrf.mxu0
        %v2292 = vadd.f32 %v1808, %v2291
        %v2293 = vpop.f32.mrf.mxu0
        %v2294 = vadd.f32 %v1810, %v2293
        %2295 = vmatmul.bf16.gmra.mxu0 %v2220
        %v2296 = vpop.f32.mrf.mxu0
        %v2297 = vadd.f32 %v1813, %v2296
        %v2298 = vpop.f32.mrf.mxu0
        %v2299 = vadd.f32 %v1815, %v2298
        %2300 = vmatmul.bf16.gmra.mxu0 %v2223
        %v2301 = vpop.f32.mrf.mxu0
        %v2302 = vadd.f32 %v1818, %v2301
        %v2303 = vpop.f32.mrf.mxu0
        %v2304 = vadd.f32 %v1820, %v2303
        %2305 = vmatmul.bf16.gmra.mxu0 %v2226
        %v2306 = vpop.f32.mrf.mxu0
        %v2307 = vadd.f32 %v1823, %v2306
        %v2308 = vpop.f32.mrf.mxu0
        %v2309 = vadd.f32 %v1825, %v2308
        %2310 = vmatmul.bf16.gmra.mxu0 %v2229
        %v2311 = vpop.f32.mrf.mxu0
        %v2312 = vadd.f32 %v1828, %v2311
        %v2313 = vpop.f32.mrf.mxu0
        %v2314 = vadd.f32 %v1830, %v2313
        %2315 = vmatmul.bf16.gmra.mxu0 %v2232
        %v2316 = vpop.f32.mrf.mxu0
        %v2317 = vadd.f32 %v1833, %v2316
        %v2318 = vpop.f32.mrf.mxu0
        %v2319 = vadd.f32 %v1835, %v2318
        %2320 = vmatmul.bf16.gmra.mxu0 %v2235
        %v2321 = vpop.f32.mrf.mxu0
        %v2322 = vadd.f32 %v1838, %v2321
        %v2323 = vpop.f32.mrf.mxu0
        %v2324 = vadd.f32 %v1840, %v2323
        %2325 = vdwg.mxu0
        %2326 = vmatpush.bf16.msra.mxu0 0
        %2327 = vmatpush.bf16.msra.mxu0 0
        %2328 = vmatpush.bf16.msra.mxu0 0
        %2329 = vmatpush.bf16.msra.mxu0 0
        %2330 = vmatpush.bf16.msra.mxu0 %v1685
        %2331 = vmatpush.bf16.msra.mxu0 %v1681
        %2332 = vmatpush.bf16.msra.mxu0 %v1677
        %2333 = vmatpush.bf16.msra.mxu0 %v1673
        %2334 = vmatmul.bf16.gmra.mxu0 %v2190
        %v2335 = vpop.f32.mrf.mxu0
        %v2336 = vadd.f32 %v1852, %v2335
        %v2337 = vpop.f32.mrf.mxu0
        %v2338 = vadd.f32 %v1854, %v2337
        %2339 = vmatmul.bf16.gmra.mxu0 %v2193
        %v2340 = vpop.f32.mrf.mxu0
        %v2341 = vadd.f32 %v1857, %v2340
        %v2342 = vpop.f32.mrf.mxu0
        %v2343 = vadd.f32 %v1859, %v2342
        %2344 = vmatmul.bf16.gmra.mxu0 %v2196
        %v2345 = vpop.f32.mrf.mxu0
        %v2346 = vadd.f32 %v1862, %v2345
        %v2347 = vpop.f32.mrf.mxu0
        %v2348 = vadd.f32 %v1864, %v2347
        %2349 = vmatmul.bf16.gmra.mxu0 %v2199
        %v2350 = vpop.f32.mrf.mxu0
        %v2351 = vadd.f32 %v1867, %v2350
        %v2352 = vpop.f32.mrf.mxu0
        %v2353 = vadd.f32 %v1869, %v2352
        %2354 = vmatmul.bf16.gmra.mxu0 %v2202
        %v2355 = vpop.f32.mrf.mxu0
        %v2356 = vadd.f32 %v1872, %v2355
        %v2357 = vpop.f32.mrf.mxu0
        %v2358 = vadd.f32 %v1874, %v2357
        %2359 = vmatmul.bf16.gmra.mxu0 %v2205
        %v2360 = vpop.f32.mrf.mxu0
        %v2361 = vadd.f32 %v1877, %v2360
        %v2362 = vpop.f32.mrf.mxu0
        %v2363 = vadd.f32 %v1879, %v2362
        %2364 = vmatmul.bf16.gmra.mxu0 %v2208
        %v2365 = vpop.f32.mrf.mxu0
        %v2366 = vadd.f32 %v1882, %v2365
        %v2367 = vpop.f32.mrf.mxu0
        %v2368 = vadd.f32 %v1884, %v2367
        %2369 = vmatmul.bf16.gmra.mxu0 %v2211
        %v2370 = vpop.f32.mrf.mxu0
        %v2371 = vadd.f32 %v1887, %v2370
        %v2372 = vpop.f32.mrf.mxu0
        %v2373 = vadd.f32 %v1889, %v2372
        %2374 = vmatmul.bf16.gmra.mxu0 %v2214
        %v2375 = vpop.f32.mrf.mxu0
        %v2376 = vadd.f32 %v1892, %v2375
        %v2377 = vpop.f32.mrf.mxu0
        %v2378 = vadd.f32 %v1894, %v2377
        %2379 = vmatmul.bf16.gmra.mxu0 %v2217
        %v2380 = vpop.f32.mrf.mxu0
        %v2381 = vadd.f32 %v1897, %v2380
        %v2382 = vpop.f32.mrf.mxu0
        %v2383 = vadd.f32 %v1899, %v2382
        %2384 = vmatmul.bf16.gmra.mxu0 %v2220
        %v2385 = vpop.f32.mrf.mxu0
        %v2386 = vadd.f32 %v1902, %v2385
        %v2387 = vpop.f32.mrf.mxu0
        %v2388 = vadd.f32 %v1904, %v2387
        %2389 = vmatmul.bf16.gmra.mxu0 %v2223
        %v2390 = vpop.f32.mrf.mxu0
        %v2391 = vadd.f32 %v1907, %v2390
        %v2392 = vpop.f32.mrf.mxu0
        %v2393 = vadd.f32 %v1909, %v2392
        %2394 = vmatmul.bf16.gmra.mxu0 %v2226
        %v2395 = vpop.f32.mrf.mxu0
        %v2396 = vadd.f32 %v1912, %v2395
        %v2397 = vpop.f32.mrf.mxu0
        %v2398 = vadd.f32 %v1914, %v2397
        %2399 = vmatmul.bf16.gmra.mxu0 %v2229
        %v2400 = vpop.f32.mrf.mxu0
        %v2401 = vadd.f32 %v1917, %v2400
        %v2402 = vpop.f32.mrf.mxu0
        %v2403 = vadd.f32 %v1919, %v2402
        %2404 = vmatmul.bf16.gmra.mxu0 %v2232
        %v2405 = vpop.f32.mrf.mxu0
        %v2406 = vadd.f32 %v1922, %v2405
        %v2407 = vpop.f32.mrf.mxu0
        %v2408 = vadd.f32 %v1924, %v2407
        %2409 = vmatmul.bf16.gmra.mxu0 %v2235
        %v2410 = vpop.f32.mrf.mxu0
        %v2411 = vadd.f32 %v1927, %v2410
        %v2412 = vpop.f32.mrf.mxu0
        %v2413 = vadd.f32 %v1929, %v2412
        %2414 = vdwg.mxu0
        %2415 = vmatpush.bf16.msra.mxu0 0
        %2416 = vmatpush.bf16.msra.mxu0 0
        %2417 = vmatpush.bf16.msra.mxu0 0
        %2418 = vmatpush.bf16.msra.mxu0 0
        %2419 = vmatpush.bf16.msra.mxu0 %v1686
        %2420 = vmatpush.bf16.msra.mxu0 %v1682
        %2421 = vmatpush.bf16.msra.mxu0 %v1678
        %2422 = vmatpush.bf16.msra.mxu0 %v1674
        %2423 = vmatmul.bf16.gmra.mxu0 %v2190
        %v2424 = vpop.f32.mrf.mxu0
        %v2425 = vadd.f32 %v1941, %v2424
        %v2426 = vpop.f32.mrf.mxu0
        %v2427 = vadd.f32 %v1943, %v2426
        %2428 = vmatmul.bf16.gmra.mxu0 %v2193
        %v2429 = vpop.f32.mrf.mxu0
        %v2430 = vadd.f32 %v1946, %v2429
        %v2431 = vpop.f32.mrf.mxu0
        %v2432 = vadd.f32 %v1948, %v2431
        %2433 = vmatmul.bf16.gmra.mxu0 %v2196
        %v2434 = vpop.f32.mrf.mxu0
        %v2435 = vadd.f32 %v1951, %v2434
        %v2436 = vpop.f32.mrf.mxu0
        %v2437 = vadd.f32 %v1953, %v2436
        %2438 = vmatmul.bf16.gmra.mxu0 %v2199
        %v2439 = vpop.f32.mrf.mxu0
        %v2440 = vadd.f32 %v1956, %v2439
        %v2441 = vpop.f32.mrf.mxu0
        %v2442 = vadd.f32 %v1958, %v2441
        %2443 = vmatmul.bf16.gmra.mxu0 %v2202
        %v2444 = vpop.f32.mrf.mxu0
        %v2445 = vadd.f32 %v1961, %v2444
        %v2446 = vpop.f32.mrf.mxu0
        %v2447 = vadd.f32 %v1963, %v2446
        %2448 = vmatmul.bf16.gmra.mxu0 %v2205
        %v2449 = vpop.f32.mrf.mxu0
        %v2450 = vadd.f32 %v1966, %v2449
        %v2451 = vpop.f32.mrf.mxu0
        %v2452 = vadd.f32 %v1968, %v2451
        %2453 = vmatmul.bf16.gmra.mxu0 %v2208
        %v2454 = vpop.f32.mrf.mxu0
        %v2455 = vadd.f32 %v1971, %v2454
        %v2456 = vpop.f32.mrf.mxu0
        %v2457 = vadd.f32 %v1973, %v2456
        %2458 = vmatmul.bf16.gmra.mxu0 %v2211
        %v2459 = vpop.f32.mrf.mxu0
        %v2460 = vadd.f32 %v1976, %v2459
        %v2461 = vpop.f32.mrf.mxu0
        %v2462 = vadd.f32 %v1978, %v2461
        %2463 = vmatmul.bf16.gmra.mxu0 %v2214
        %v2464 = vpop.f32.mrf.mxu0
        %v2465 = vadd.f32 %v1981, %v2464
        %v2466 = vpop.f32.mrf.mxu0
        %v2467 = vadd.f32 %v1983, %v2466
        %2468 = vmatmul.bf16.gmra.mxu0 %v2217
        %v2469 = vpop.f32.mrf.mxu0
        %v2470 = vadd.f32 %v1986, %v2469
        %v2471 = vpop.f32.mrf.mxu0
        %v2472 = vadd.f32 %v1988, %v2471
        %2473 = vmatmul.bf16.gmra.mxu0 %v2220
        %v2474 = vpop.f32.mrf.mxu0
        %v2475 = vadd.f32 %v1991, %v2474
        %v2476 = vpop.f32.mrf.mxu0
        %v2477 = vadd.f32 %v1993, %v2476
        %2478 = vmatmul.bf16.gmra.mxu0 %v2223
        %v2479 = vpop.f32.mrf.mxu0
        %v2480 = vadd.f32 %v1996, %v2479
        %v2481 = vpop.f32.mrf.mxu0
        %v2482 = vadd.f32 %v1998, %v2481
        %2483 = vmatmul.bf16.gmra.mxu0 %v2226
        %v2484 = vpop.f32.mrf.mxu0
        %v2485 = vadd.f32 %v2001, %v2484
        %v2486 = vpop.f32.mrf.mxu0
        %v2487 = vadd.f32 %v2003, %v2486
        %2488 = vmatmul.bf16.gmra.mxu0 %v2229
        %v2489 = vpop.f32.mrf.mxu0
        %v2490 = vadd.f32 %v2006, %v2489
        %v2491 = vpop.f32.mrf.mxu0
        %v2492 = vadd.f32 %v2008, %v2491
        %2493 = vmatmul.bf16.gmra.mxu0 %v2232
        %v2494 = vpop.f32.mrf.mxu0
        %v2495 = vadd.f32 %v2011, %v2494
        %v2496 = vpop.f32.mrf.mxu0
        %v2497 = vadd.f32 %v2013, %v2496
        %2498 = vmatmul.bf16.gmra.mxu0 %v2235
        %v2499 = vpop.f32.mrf.mxu0
        %v2500 = vadd.f32 %v2016, %v2499
        %v2501 = vpop.f32.mrf.mxu0
        %v2502 = vadd.f32 %v2018, %v2501
        %2503 = vdwg.mxu0
        %2504 = vmatpush.bf16.msra.mxu0 0
        %2505 = vmatpush.bf16.msra.mxu0 0
        %2506 = vmatpush.bf16.msra.mxu0 0
        %2507 = vmatpush.bf16.msra.mxu0 0
        %2508 = vmatpush.bf16.msra.mxu0 %v1687
        %2509 = vmatpush.bf16.msra.mxu0 %v1683
        %2510 = vmatpush.bf16.msra.mxu0 %v1679
        %2511 = vmatpush.bf16.msra.mxu0 %v1675
        %2512 = vmatmul.bf16.gmra.mxu0 %v2190
        %v2513 = vpop.f32.mrf.mxu0
        %v2514 = vadd.f32 %v2030, %v2513
        %v2515 = vpop.f32.mrf.mxu0
        %v2516 = vadd.f32 %v2032, %v2515
        %2517 = vmatmul.bf16.gmra.mxu0 %v2193
        %v2518 = vpop.f32.mrf.mxu0
        %v2519 = vadd.f32 %v2035, %v2518
        %v2520 = vpop.f32.mrf.mxu0
        %v2521 = vadd.f32 %v2037, %v2520
        %2522 = vmatmul.bf16.gmra.mxu0 %v2196
        %v2523 = vpop.f32.mrf.mxu0
        %v2524 = vadd.f32 %v2040, %v2523
        %v2525 = vpop.f32.mrf.mxu0
        %v2526 = vadd.f32 %v2042, %v2525
        %2527 = vmatmul.bf16.gmra.mxu0 %v2199
        %v2528 = vpop.f32.mrf.mxu0
        %v2529 = vadd.f32 %v2045, %v2528
        %v2530 = vpop.f32.mrf.mxu0
        %v2531 = vadd.f32 %v2047, %v2530
        %2532 = vmatmul.bf16.gmra.mxu0 %v2202
        %v2533 = vpop.f32.mrf.mxu0
        %v2534 = vadd.f32 %v2050, %v2533
        %v2535 = vpop.f32.mrf.mxu0
        %v2536 = vadd.f32 %v2052, %v2535
        %2537 = vmatmul.bf16.gmra.mxu0 %v2205
        %v2538 = vpop.f32.mrf.mxu0
        %v2539 = vadd.f32 %v2055, %v2538
        %v2540 = vpop.f32.mrf.mxu0
        %v2541 = vadd.f32 %v2057, %v2540
        %2542 = vmatmul.bf16.gmra.mxu0 %v2208
        %v2543 = vpop.f32.mrf.mxu0
        %v2544 = vadd.f32 %v2060, %v2543
        %v2545 = vpop.f32.mrf.mxu0
        %v2546 = vadd.f32 %v2062, %v2545
        %2547 = vmatmul.bf16.gmra.mxu0 %v2211
        %v2548 = vpop.f32.mrf.mxu0
        %v2549 = vadd.f32 %v2065, %v2548
        %v2550 = vpop.f32.mrf.mxu0
        %v2551 = vadd.f32 %v2067, %v2550
        %2552 = vmatmul.bf16.gmra.mxu0 %v2214
        %v2553 = vpop.f32.mrf.mxu0
        %v2554 = vadd.f32 %v2070, %v2553
        %v2555 = vpop.f32.mrf.mxu0
        %v2556 = vadd.f32 %v2072, %v2555
        %2557 = vmatmul.bf16.gmra.mxu0 %v2217
        %v2558 = vpop.f32.mrf.mxu0
        %v2559 = vadd.f32 %v2075, %v2558
        %v2560 = vpop.f32.mrf.mxu0
        %v2561 = vadd.f32 %v2077, %v2560
        %2562 = vmatmul.bf16.gmra.mxu0 %v2220
        %v2563 = vpop.f32.mrf.mxu0
        %v2564 = vadd.f32 %v2080, %v2563
        %v2565 = vpop.f32.mrf.mxu0
        %v2566 = vadd.f32 %v2082, %v2565
        %2567 = vmatmul.bf16.gmra.mxu0 %v2223
        %v2568 = vpop.f32.mrf.mxu0
        %v2569 = vadd.f32 %v2085, %v2568
        %v2570 = vpop.f32.mrf.mxu0
        %v2571 = vadd.f32 %v2087, %v2570
        %2572 = vmatmul.bf16.gmra.mxu0 %v2226
        %v2573 = vpop.f32.mrf.mxu0
        %v2574 = vadd.f32 %v2090, %v2573
        %v2575 = vpop.f32.mrf.mxu0
        %v2576 = vadd.f32 %v2092, %v2575
        %2577 = vmatmul.bf16.gmra.mxu0 %v2229
        %v2578 = vpop.f32.mrf.mxu0
        %v2579 = vadd.f32 %v2095, %v2578
        %v2580 = vpop.f32.mrf.mxu0
        %v2581 = vadd.f32 %v2097, %v2580
        %2582 = vmatmul.bf16.gmra.mxu0 %v2232
        %v2583 = vpop.f32.mrf.mxu0
        %v2584 = vadd.f32 %v2100, %v2583
        %v2585 = vpop.f32.mrf.mxu0
        %v2586 = vadd.f32 %v2102, %v2585
        %2587 = vmatmul.bf16.gmra.mxu0 %v2235
        %v2588 = vpop.f32.mrf.mxu0
        %v2589 = vadd.f32 %v2105, %v2588
        %v2590 = vpop.f32.mrf.mxu0
        %v2591 = vadd.f32 %v2107, %v2590
        %2592 = vdwg.mxu0
        %v2594 = vsel %vm1704, %v1528, 0
        %v2597 = vsel %vm1704, %v1529, 0
        %v2600 = vsel %vm1704, %v1530, 0
        %v2603 = vsel %vm1704, %v1531, 0
        %v2606 = vsel %vm1704, %v1532, 0
        %v2609 = vsel %vm1704, %v1533, 0
        %v2612 = vsel %vm1704, %v1534, 0
        %v2615 = vsel %vm1704, %v1535, 0
        %v2618 = vsel %vm1704, %v1536, 0
        %v2621 = vsel %vm1704, %v1537, 0
        %v2624 = vsel %vm1704, %v1538, 0
        %v2627 = vsel %vm1704, %v1539, 0
        %v2630 = vsel %vm1704, %v1540, 0
        %v2633 = vsel %vm1704, %v1541, 0
        %v2636 = vsel %vm1704, %v1542, 0
        %v2639 = vsel %vm1704, %v1543, 0
        %2641 = vmatpush.bf16.msra.mxu0 0
        %2642 = vmatpush.bf16.msra.mxu0 0
        %2643 = vmatpush.bf16.msra.mxu0 0
        %2644 = vmatpush.bf16.msra.mxu0 0
        %2645 = vmatpush.bf16.msra.mxu0 %v1684
        %2646 = vmatpush.bf16.msra.mxu0 %v1680
        %2647 = vmatpush.bf16.msra.mxu0 %v1676
        %2648 = vmatpush.bf16.msra.mxu0 %v1672
        %2649 = vmatmul.bf16.gmra.mxu0 %v2594
        %v2650 = vpop.f32.mrf.mxu0
        %v2651 = vadd.f32 0.0, %v2650
        %v2652 = vpop.f32.mrf.mxu0
        %v2653 = vadd.f32 0.0, %v2652
        %2654 = vmatmul.bf16.gmra.mxu0 %v2597
        %v2655 = vpop.f32.mrf.mxu0
        %v2656 = vadd.f32 0.0, %v2655
        %v2657 = vpop.f32.mrf.mxu0
        %v2658 = vadd.f32 0.0, %v2657
        %2659 = vmatmul.bf16.gmra.mxu0 %v2600
        %v2660 = vpop.f32.mrf.mxu0
        %v2661 = vadd.f32 0.0, %v2660
        %v2662 = vpop.f32.mrf.mxu0
        %v2663 = vadd.f32 0.0, %v2662
        %2664 = vmatmul.bf16.gmra.mxu0 %v2603
        %v2665 = vpop.f32.mrf.mxu0
        %v2666 = vadd.f32 0.0, %v2665
        %v2667 = vpop.f32.mrf.mxu0
        %v2668 = vadd.f32 0.0, %v2667
        %2669 = vmatmul.bf16.gmra.mxu0 %v2606
        %v2670 = vpop.f32.mrf.mxu0
        %v2671 = vadd.f32 0.0, %v2670
        %v2672 = vpop.f32.mrf.mxu0
        %v2673 = vadd.f32 0.0, %v2672
        %2674 = vmatmul.bf16.gmra.mxu0 %v2609
        %v2675 = vpop.f32.mrf.mxu0
        %v2676 = vadd.f32 0.0, %v2675
        %v2677 = vpop.f32.mrf.mxu0
        %v2678 = vadd.f32 0.0, %v2677
        %2679 = vmatmul.bf16.gmra.mxu0 %v2612
        %v2680 = vpop.f32.mrf.mxu0
        %v2681 = vadd.f32 0.0, %v2680
        %v2682 = vpop.f32.mrf.mxu0
        %v2683 = vadd.f32 0.0, %v2682
        %2684 = vmatmul.bf16.gmra.mxu0 %v2615
        %v2685 = vpop.f32.mrf.mxu0
        %v2686 = vadd.f32 0.0, %v2685
        %v2687 = vpop.f32.mrf.mxu0
        %v2688 = vadd.f32 0.0, %v2687
        %2689 = vmatmul.bf16.gmra.mxu0 %v2618
        %v2690 = vpop.f32.mrf.mxu0
        %v2691 = vadd.f32 0.0, %v2690
        %v2692 = vpop.f32.mrf.mxu0
        %v2693 = vadd.f32 0.0, %v2692
        %2694 = vmatmul.bf16.gmra.mxu0 %v2621
        %v2695 = vpop.f32.mrf.mxu0
        %v2696 = vadd.f32 0.0, %v2695
        %v2697 = vpop.f32.mrf.mxu0
        %v2698 = vadd.f32 0.0, %v2697
        %2699 = vmatmul.bf16.gmra.mxu0 %v2624
        %v2700 = vpop.f32.mrf.mxu0
        %v2701 = vadd.f32 0.0, %v2700
        %v2702 = vpop.f32.mrf.mxu0
        %v2703 = vadd.f32 0.0, %v2702
        %2704 = vmatmul.bf16.gmra.mxu0 %v2627
        %v2705 = vpop.f32.mrf.mxu0
        %v2706 = vadd.f32 0.0, %v2705
        %v2707 = vpop.f32.mrf.mxu0
        %v2708 = vadd.f32 0.0, %v2707
        %2709 = vmatmul.bf16.gmra.mxu0 %v2630
        %v2710 = vpop.f32.mrf.mxu0
        %v2711 = vadd.f32 0.0, %v2710
        %v2712 = vpop.f32.mrf.mxu0
        %v2713 = vadd.f32 0.0, %v2712
        %2714 = vmatmul.bf16.gmra.mxu0 %v2633
        %v2715 = vpop.f32.mrf.mxu0
        %v2716 = vadd.f32 0.0, %v2715
        %v2717 = vpop.f32.mrf.mxu0
        %v2718 = vadd.f32 0.0, %v2717
        %2719 = vmatmul.bf16.gmra.mxu0 %v2636
        %v2720 = vpop.f32.mrf.mxu0
        %v2721 = vadd.f32 0.0, %v2720
        %v2722 = vpop.f32.mrf.mxu0
        %v2723 = vadd.f32 0.0, %v2722
        %2724 = vmatmul.bf16.gmra.mxu0 %v2639
        %v2725 = vpop.f32.mrf.mxu0
        %v2726 = vadd.f32 0.0, %v2725
        %v2727 = vpop.f32.mrf.mxu0
        %v2728 = vadd.f32 0.0, %v2727
        %2729 = vdwg.mxu0
        %2730 = vmatpush.bf16.msra.mxu0 0
        %2731 = vmatpush.bf16.msra.mxu0 0
        %2732 = vmatpush.bf16.msra.mxu0 0
        %2733 = vmatpush.bf16.msra.mxu0 0
        %2734 = vmatpush.bf16.msra.mxu0 %v1685
        %2735 = vmatpush.bf16.msra.mxu0 %v1681
        %2736 = vmatpush.bf16.msra.mxu0 %v1677
        %2737 = vmatpush.bf16.msra.mxu0 %v1673
        %2738 = vmatmul.bf16.gmra.mxu0 %v2594
        %v2739 = vpop.f32.mrf.mxu0
        %v2740 = vadd.f32 0.0, %v2739
        %v2741 = vpop.f32.mrf.mxu0
        %v2742 = vadd.f32 0.0, %v2741
        %2743 = vmatmul.bf16.gmra.mxu0 %v2597
        %v2744 = vpop.f32.mrf.mxu0
        %v2745 = vadd.f32 0.0, %v2744
        %v2746 = vpop.f32.mrf.mxu0
        %v2747 = vadd.f32 0.0, %v2746
        %2748 = vmatmul.bf16.gmra.mxu0 %v2600
        %v2749 = vpop.f32.mrf.mxu0
        %v2750 = vadd.f32 0.0, %v2749
        %v2751 = vpop.f32.mrf.mxu0
        %v2752 = vadd.f32 0.0, %v2751
        %2753 = vmatmul.bf16.gmra.mxu0 %v2603
        %v2754 = vpop.f32.mrf.mxu0
        %v2755 = vadd.f32 0.0, %v2754
        %v2756 = vpop.f32.mrf.mxu0
        %v2757 = vadd.f32 0.0, %v2756
        %2758 = vmatmul.bf16.gmra.mxu0 %v2606
        %v2759 = vpop.f32.mrf.mxu0
        %v2760 = vadd.f32 0.0, %v2759
        %v2761 = vpop.f32.mrf.mxu0
        %v2762 = vadd.f32 0.0, %v2761
        %2763 = vmatmul.bf16.gmra.mxu0 %v2609
        %v2764 = vpop.f32.mrf.mxu0
        %v2765 = vadd.f32 0.0, %v2764
        %v2766 = vpop.f32.mrf.mxu0
        %v2767 = vadd.f32 0.0, %v2766
        %2768 = vmatmul.bf16.gmra.mxu0 %v2612
        %v2769 = vpop.f32.mrf.mxu0
        %v2770 = vadd.f32 0.0, %v2769
        %v2771 = vpop.f32.mrf.mxu0
        %v2772 = vadd.f32 0.0, %v2771
        %2773 = vmatmul.bf16.gmra.mxu0 %v2615
        %v2774 = vpop.f32.mrf.mxu0
        %v2775 = vadd.f32 0.0, %v2774
        %v2776 = vpop.f32.mrf.mxu0
        %v2777 = vadd.f32 0.0, %v2776
        %2778 = vmatmul.bf16.gmra.mxu0 %v2618
        %v2779 = vpop.f32.mrf.mxu0
        %v2780 = vadd.f32 0.0, %v2779
        %v2781 = vpop.f32.mrf.mxu0
        %v2782 = vadd.f32 0.0, %v2781
        %2783 = vmatmul.bf16.gmra.mxu0 %v2621
        %v2784 = vpop.f32.mrf.mxu0
        %v2785 = vadd.f32 0.0, %v2784
        %v2786 = vpop.f32.mrf.mxu0
        %v2787 = vadd.f32 0.0, %v2786
        %2788 = vmatmul.bf16.gmra.mxu0 %v2624
        %v2789 = vpop.f32.mrf.mxu0
        %v2790 = vadd.f32 0.0, %v2789
        %v2791 = vpop.f32.mrf.mxu0
        %v2792 = vadd.f32 0.0, %v2791
        %2793 = vmatmul.bf16.gmra.mxu0 %v2627
        %v2794 = vpop.f32.mrf.mxu0
        %v2795 = vadd.f32 0.0, %v2794
        %v2796 = vpop.f32.mrf.mxu0
        %v2797 = vadd.f32 0.0, %v2796
        %2798 = vmatmul.bf16.gmra.mxu0 %v2630
        %v2799 = vpop.f32.mrf.mxu0
        %v2800 = vadd.f32 0.0, %v2799
        %v2801 = vpop.f32.mrf.mxu0
        %v2802 = vadd.f32 0.0, %v2801
        %2803 = vmatmul.bf16.gmra.mxu0 %v2633
        %v2804 = vpop.f32.mrf.mxu0
        %v2805 = vadd.f32 0.0, %v2804
        %v2806 = vpop.f32.mrf.mxu0
        %v2807 = vadd.f32 0.0, %v2806
        %2808 = vmatmul.bf16.gmra.mxu0 %v2636
        %v2809 = vpop.f32.mrf.mxu0
        %v2810 = vadd.f32 0.0, %v2809
        %v2811 = vpop.f32.mrf.mxu0
        %v2812 = vadd.f32 0.0, %v2811
        %2813 = vmatmul.bf16.gmra.mxu0 %v2639
        %v2814 = vpop.f32.mrf.mxu0
        %v2815 = vadd.f32 0.0, %v2814
        %v2816 = vpop.f32.mrf.mxu0
        %v2817 = vadd.f32 0.0, %v2816
        %2818 = vdwg.mxu0
        %2819 = vmatpush.bf16.msra.mxu0 0
        %2820 = vmatpush.bf16.msra.mxu0 0
        %2821 = vmatpush.bf16.msra.mxu0 0
        %2822 = vmatpush.bf16.msra.mxu0 0
        %2823 = vmatpush.bf16.msra.mxu0 %v1686
        %2824 = vmatpush.bf16.msra.mxu0 %v1682
        %2825 = vmatpush.bf16.msra.mxu0 %v1678
        %2826 = vmatpush.bf16.msra.mxu0 %v1674
        %2827 = vmatmul.bf16.gmra.mxu0 %v2594
        %v2828 = vpop.f32.mrf.mxu0
        %v2829 = vadd.f32 0.0, %v2828
        %v2830 = vpop.f32.mrf.mxu0
        %v2831 = vadd.f32 0.0, %v2830
        %2832 = vmatmul.bf16.gmra.mxu0 %v2597
        %v2833 = vpop.f32.mrf.mxu0
        %v2834 = vadd.f32 0.0, %v2833
        %v2835 = vpop.f32.mrf.mxu0
        %v2836 = vadd.f32 0.0, %v2835
        %2837 = vmatmul.bf16.gmra.mxu0 %v2600
        %v2838 = vpop.f32.mrf.mxu0
        %v2839 = vadd.f32 0.0, %v2838
        %v2840 = vpop.f32.mrf.mxu0
        %v2841 = vadd.f32 0.0, %v2840
        %2842 = vmatmul.bf16.gmra.mxu0 %v2603
        %v2843 = vpop.f32.mrf.mxu0
        %v2844 = vadd.f32 0.0, %v2843
        %v2845 = vpop.f32.mrf.mxu0
        %v2846 = vadd.f32 0.0, %v2845
        %2847 = vmatmul.bf16.gmra.mxu0 %v2606
        %v2848 = vpop.f32.mrf.mxu0
        %v2849 = vadd.f32 0.0, %v2848
        %v2850 = vpop.f32.mrf.mxu0
        %v2851 = vadd.f32 0.0, %v2850
        %2852 = vmatmul.bf16.gmra.mxu0 %v2609
        %v2853 = vpop.f32.mrf.mxu0
        %v2854 = vadd.f32 0.0, %v2853
        %v2855 = vpop.f32.mrf.mxu0
        %v2856 = vadd.f32 0.0, %v2855
        %2857 = vmatmul.bf16.gmra.mxu0 %v2612
        %v2858 = vpop.f32.mrf.mxu0
        %v2859 = vadd.f32 0.0, %v2858
        %v2860 = vpop.f32.mrf.mxu0
        %v2861 = vadd.f32 0.0, %v2860
        %2862 = vmatmul.bf16.gmra.mxu0 %v2615
        %v2863 = vpop.f32.mrf.mxu0
        %v2864 = vadd.f32 0.0, %v2863
        %v2865 = vpop.f32.mrf.mxu0
        %v2866 = vadd.f32 0.0, %v2865
        %2867 = vmatmul.bf16.gmra.mxu0 %v2618
        %v2868 = vpop.f32.mrf.mxu0
        %v2869 = vadd.f32 0.0, %v2868
        %v2870 = vpop.f32.mrf.mxu0
        %v2871 = vadd.f32 0.0, %v2870
        %2872 = vmatmul.bf16.gmra.mxu0 %v2621
        %v2873 = vpop.f32.mrf.mxu0
        %v2874 = vadd.f32 0.0, %v2873
        %v2875 = vpop.f32.mrf.mxu0
        %v2876 = vadd.f32 0.0, %v2875
        %2877 = vmatmul.bf16.gmra.mxu0 %v2624
        %v2878 = vpop.f32.mrf.mxu0
        %v2879 = vadd.f32 0.0, %v2878
        %v2880 = vpop.f32.mrf.mxu0
        %v2881 = vadd.f32 0.0, %v2880
        %2882 = vmatmul.bf16.gmra.mxu0 %v2627
        %v2883 = vpop.f32.mrf.mxu0
        %v2884 = vadd.f32 0.0, %v2883
        %v2885 = vpop.f32.mrf.mxu0
        %v2886 = vadd.f32 0.0, %v2885
        %2887 = vmatmul.bf16.gmra.mxu0 %v2630
        %v2888 = vpop.f32.mrf.mxu0
        %v2889 = vadd.f32 0.0, %v2888
        %v2890 = vpop.f32.mrf.mxu0
        %v2891 = vadd.f32 0.0, %v2890
        %2892 = vmatmul.bf16.gmra.mxu0 %v2633
        %v2893 = vpop.f32.mrf.mxu0
        %v2894 = vadd.f32 0.0, %v2893
        %v2895 = vpop.f32.mrf.mxu0
        %v2896 = vadd.f32 0.0, %v2895
        %2897 = vmatmul.bf16.gmra.mxu0 %v2636
        %v2898 = vpop.f32.mrf.mxu0
        %v2899 = vadd.f32 0.0, %v2898
        %v2900 = vpop.f32.mrf.mxu0
        %v2901 = vadd.f32 0.0, %v2900
        %2902 = vmatmul.bf16.gmra.mxu0 %v2639
        %v2903 = vpop.f32.mrf.mxu0
        %v2904 = vadd.f32 0.0, %v2903
        %v2905 = vpop.f32.mrf.mxu0
        %v2906 = vadd.f32 0.0, %v2905
        %2907 = vdwg.mxu0
        %2908 = vmatpush.bf16.msra.mxu0 0
        %2909 = vmatpush.bf16.msra.mxu0 0
        %2910 = vmatpush.bf16.msra.mxu0 0
        %2911 = vmatpush.bf16.msra.mxu0 0
        %2912 = vmatpush.bf16.msra.mxu0 %v1687
        %2913 = vmatpush.bf16.msra.mxu0 %v1683
        %2914 = vmatpush.bf16.msra.mxu0 %v1679
        %2915 = vmatpush.bf16.msra.mxu0 %v1675
        %2916 = vmatmul.bf16.gmra.mxu0 %v2594
        %v2917 = vpop.f32.mrf.mxu0
        %v2918 = vadd.f32 0.0, %v2917
        %v2919 = vpop.f32.mrf.mxu0
        %v2920 = vadd.f32 0.0, %v2919
        %2921 = vmatmul.bf16.gmra.mxu0 %v2597
        %v2922 = vpop.f32.mrf.mxu0
        %v2923 = vadd.f32 0.0, %v2922
        %v2924 = vpop.f32.mrf.mxu0
        %v2925 = vadd.f32 0.0, %v2924
        %2926 = vmatmul.bf16.gmra.mxu0 %v2600
        %v2927 = vpop.f32.mrf.mxu0
        %v2928 = vadd.f32 0.0, %v2927
        %v2929 = vpop.f32.mrf.mxu0
        %v2930 = vadd.f32 0.0, %v2929
        %2931 = vmatmul.bf16.gmra.mxu0 %v2603
        %v2932 = vpop.f32.mrf.mxu0
        %v2933 = vadd.f32 0.0, %v2932
        %v2934 = vpop.f32.mrf.mxu0
        %v2935 = vadd.f32 0.0, %v2934
        %2936 = vmatmul.bf16.gmra.mxu0 %v2606
        %v2937 = vpop.f32.mrf.mxu0
        %v2938 = vadd.f32 0.0, %v2937
        %v2939 = vpop.f32.mrf.mxu0
        %v2940 = vadd.f32 0.0, %v2939
        %2941 = vmatmul.bf16.gmra.mxu0 %v2609
        %v2942 = vpop.f32.mrf.mxu0
        %v2943 = vadd.f32 0.0, %v2942
        %v2944 = vpop.f32.mrf.mxu0
        %v2945 = vadd.f32 0.0, %v2944
        %2946 = vmatmul.bf16.gmra.mxu0 %v2612
        %v2947 = vpop.f32.mrf.mxu0
        %v2948 = vadd.f32 0.0, %v2947
        %v2949 = vpop.f32.mrf.mxu0
        %v2950 = vadd.f32 0.0, %v2949
        %2951 = vmatmul.bf16.gmra.mxu0 %v2615
        %v2952 = vpop.f32.mrf.mxu0
        %v2953 = vadd.f32 0.0, %v2952
        %v2954 = vpop.f32.mrf.mxu0
        %v2955 = vadd.f32 0.0, %v2954
        %2956 = vmatmul.bf16.gmra.mxu0 %v2618
        %v2957 = vpop.f32.mrf.mxu0
        %v2958 = vadd.f32 0.0, %v2957
        %v2959 = vpop.f32.mrf.mxu0
        %v2960 = vadd.f32 0.0, %v2959
        %2961 = vmatmul.bf16.gmra.mxu0 %v2621
        %v2962 = vpop.f32.mrf.mxu0
        %v2963 = vadd.f32 0.0, %v2962
        %v2964 = vpop.f32.mrf.mxu0
        %v2965 = vadd.f32 0.0, %v2964
        %2966 = vmatmul.bf16.gmra.mxu0 %v2624
        %v2967 = vpop.f32.mrf.mxu0
        %v2968 = vadd.f32 0.0, %v2967
        %v2969 = vpop.f32.mrf.mxu0
        %v2970 = vadd.f32 0.0, %v2969
        %2971 = vmatmul.bf16.gmra.mxu0 %v2627
        %v2972 = vpop.f32.mrf.mxu0
        %v2973 = vadd.f32 0.0, %v2972
        %v2974 = vpop.f32.mrf.mxu0
        %v2975 = vadd.f32 0.0, %v2974
        %2976 = vmatmul.bf16.gmra.mxu0 %v2630
        %v2977 = vpop.f32.mrf.mxu0
        %v2978 = vadd.f32 0.0, %v2977
        %v2979 = vpop.f32.mrf.mxu0
        %v2980 = vadd.f32 0.0, %v2979
        %2981 = vmatmul.bf16.gmra.mxu0 %v2633
        %v2982 = vpop.f32.mrf.mxu0
        %v2983 = vadd.f32 0.0, %v2982
        %v2984 = vpop.f32.mrf.mxu0
        %v2985 = vadd.f32 0.0, %v2984
        %2986 = vmatmul.bf16.gmra.mxu0 %v2636
        %v2987 = vpop.f32.mrf.mxu0
        %v2988 = vadd.f32 0.0, %v2987
        %v2989 = vpop.f32.mrf.mxu0
        %v2990 = vadd.f32 0.0, %v2989
        %2991 = vmatmul.bf16.gmra.mxu0 %v2639
        %v2992 = vpop.f32.mrf.mxu0
        %v2993 = vadd.f32 0.0, %v2992
        %v2994 = vpop.f32.mrf.mxu0
        %v2995 = vadd.f32 0.0, %v2994
        %2996 = vdwg.mxu0
        %v2997 = vadd.f32 %v2247, %v2651
        %v2998 = vadd.f32 %v2336, %v2740
        %v2999 = vadd.f32 %v2425, %v2829
        %v3000 = vadd.f32 %v2514, %v2918
        %v3001 = vadd.f32 %v2249, %v2653
        %v3002 = vadd.f32 %v2338, %v2742
        %v3003 = vadd.f32 %v2427, %v2831
        %v3004 = vadd.f32 %v2516, %v2920
        %v3005 = vadd.f32 %v2252, %v2656
        %v3006 = vadd.f32 %v2341, %v2745
        %v3007 = vadd.f32 %v2430, %v2834
        %v3008 = vadd.f32 %v2519, %v2923
        %v3009 = vadd.f32 %v2254, %v2658
        %v3010 = vadd.f32 %v2343, %v2747
        %v3011 = vadd.f32 %v2432, %v2836
        %v3012 = vadd.f32 %v2521, %v2925
        %v3013 = vadd.f32 %v2257, %v2661
        %v3014 = vadd.f32 %v2346, %v2750
        %v3015 = vadd.f32 %v2435, %v2839
        %v3016 = vadd.f32 %v2524, %v2928
        %v3017 = vadd.f32 %v2259, %v2663
        %v3018 = vadd.f32 %v2348, %v2752
        %v3019 = vadd.f32 %v2437, %v2841
        %v3020 = vadd.f32 %v2526, %v2930
        %v3021 = vadd.f32 %v2262, %v2666
        %v3022 = vadd.f32 %v2351, %v2755
        %v3023 = vadd.f32 %v2440, %v2844
        %v3024 = vadd.f32 %v2529, %v2933
        %v3025 = vadd.f32 %v2264, %v2668
        %v3026 = vadd.f32 %v2353, %v2757
        %v3027 = vadd.f32 %v2442, %v2846
        %v3028 = vadd.f32 %v2531, %v2935
        %v3029 = vadd.f32 %v2267, %v2671
        %v3030 = vadd.f32 %v2356, %v2760
        %v3031 = vadd.f32 %v2445, %v2849
        %v3032 = vadd.f32 %v2534, %v2938
        %v3033 = vadd.f32 %v2269, %v2673
        %v3034 = vadd.f32 %v2358, %v2762
        %v3035 = vadd.f32 %v2447, %v2851
        %v3036 = vadd.f32 %v2536, %v2940
        %v3037 = vadd.f32 %v2272, %v2676
        %v3038 = vadd.f32 %v2361, %v2765
        %v3039 = vadd.f32 %v2450, %v2854
        %v3040 = vadd.f32 %v2539, %v2943
        %v3041 = vadd.f32 %v2274, %v2678
        %v3042 = vadd.f32 %v2363, %v2767
        %v3043 = vadd.f32 %v2452, %v2856
        %v3044 = vadd.f32 %v2541, %v2945
        %v3045 = vadd.f32 %v2277, %v2681
        %v3046 = vadd.f32 %v2366, %v2770
        %v3047 = vadd.f32 %v2455, %v2859
        %v3048 = vadd.f32 %v2544, %v2948
        %v3049 = vadd.f32 %v2279, %v2683
        %v3050 = vadd.f32 %v2368, %v2772
        %v3051 = vadd.f32 %v2457, %v2861
        %v3052 = vadd.f32 %v2546, %v2950
        %v3053 = vadd.f32 %v2282, %v2686
        %v3054 = vadd.f32 %v2371, %v2775
        %v3055 = vadd.f32 %v2460, %v2864
        %v3056 = vadd.f32 %v2549, %v2953
        %v3057 = vadd.f32 %v2284, %v2688
        %v3058 = vadd.f32 %v2373, %v2777
        %v3059 = vadd.f32 %v2462, %v2866
        %v3060 = vadd.f32 %v2551, %v2955
        %v3061 = vadd.f32 %v2287, %v2691
        %v3062 = vadd.f32 %v2376, %v2780
        %v3063 = vadd.f32 %v2465, %v2869
        %v3064 = vadd.f32 %v2554, %v2958
        %v3065 = vadd.f32 %v2289, %v2693
        %v3066 = vadd.f32 %v2378, %v2782
        %v3067 = vadd.f32 %v2467, %v2871
        %v3068 = vadd.f32 %v2556, %v2960
        %v3069 = vadd.f32 %v2292, %v2696
        %v3070 = vadd.f32 %v2381, %v2785
        %v3071 = vadd.f32 %v2470, %v2874
        %v3072 = vadd.f32 %v2559, %v2963
        %v3073 = vadd.f32 %v2294, %v2698
        %v3074 = vadd.f32 %v2383, %v2787
        %v3075 = vadd.f32 %v2472, %v2876
        %v3076 = vadd.f32 %v2561, %v2965
        %v3077 = vadd.f32 %v2297, %v2701
        %v3078 = vadd.f32 %v2386, %v2790
        %v3079 = vadd.f32 %v2475, %v2879
        %v3080 = vadd.f32 %v2564, %v2968
        %v3081 = vadd.f32 %v2299, %v2703
        %v3082 = vadd.f32 %v2388, %v2792
        %v3083 = vadd.f32 %v2477, %v2881
        %v3084 = vadd.f32 %v2566, %v2970
        %v3085 = vadd.f32 %v2302, %v2706
        %v3086 = vadd.f32 %v2391, %v2795
        %v3087 = vadd.f32 %v2480, %v2884
        %v3088 = vadd.f32 %v2569, %v2973
        %v3089 = vadd.f32 %v2304, %v2708
        %v3090 = vadd.f32 %v2393, %v2797
        %v3091 = vadd.f32 %v2482, %v2886
        %v3092 = vadd.f32 %v2571, %v2975
        %v3093 = vadd.f32 %v2307, %v2711
        %v3094 = vadd.f32 %v2396, %v2800
        %v3095 = vadd.f32 %v2485, %v2889
        %v3096 = vadd.f32 %v2574, %v2978
        %v3097 = vadd.f32 %v2309, %v2713
        %v3098 = vadd.f32 %v2398, %v2802
        %v3099 = vadd.f32 %v2487, %v2891
        %v3100 = vadd.f32 %v2576, %v2980
        %v3101 = vadd.f32 %v2312, %v2716
        %v3102 = vadd.f32 %v2401, %v2805
        %v3103 = vadd.f32 %v2490, %v2894
        %v3104 = vadd.f32 %v2579, %v2983
        %v3105 = vadd.f32 %v2314, %v2718
        %v3106 = vadd.f32 %v2403, %v2807
        %v3107 = vadd.f32 %v2492, %v2896
        %v3108 = vadd.f32 %v2581, %v2985
        %v3109 = vadd.f32 %v2317, %v2721
        %v3110 = vadd.f32 %v2406, %v2810
        %v3111 = vadd.f32 %v2495, %v2899
        %v3112 = vadd.f32 %v2584, %v2988
        %v3113 = vadd.f32 %v2319, %v2723
        %v3114 = vadd.f32 %v2408, %v2812
        %v3115 = vadd.f32 %v2497, %v2901
        %v3116 = vadd.f32 %v2586, %v2990
        %v3117 = vadd.f32 %v2322, %v2726
        %v3118 = vadd.f32 %v2411, %v2815
        %v3119 = vadd.f32 %v2500, %v2904
        %v3120 = vadd.f32 %v2589, %v2993
        %v3121 = vadd.f32 %v2324, %v2728
        %v3122 = vadd.f32 %v2413, %v2817
        %v3123 = vadd.f32 %v2502, %v2906
        %v3124 = vadd.f32 %v2591, %v2995
        %v3125 = vmul.f32 %v1160, %v2997
        %v3126 = vmul.f32 %v1161, %v2998
        %v3127 = vmul.f32 %v1162, %v2999
        %v3128 = vmul.f32 %v1163, %v3000
        %v3129 = vmul.f32 %v1164, %v3001
        %v3130 = vmul.f32 %v1165, %v3002
        %v3131 = vmul.f32 %v1166, %v3003
        %v3132 = vmul.f32 %v1167, %v3004
        %v3133 = vmul.f32 %v1168, %v3005
        %v3134 = vmul.f32 %v1169, %v3006
        %v3135 = vmul.f32 %v1170, %v3007
        %v3136 = vmul.f32 %v1171, %v3008
        %v3137 = vmul.f32 %v1172, %v3009
        %v3138 = vmul.f32 %v1173, %v3010
        %v3139 = vmul.f32 %v1174, %v3011
        %v3140 = vmul.f32 %v1175, %v3012
        %v3141 = vmul.f32 %v1176, %v3013
        %v3142 = vmul.f32 %v1177, %v3014
        %v3143 = vmul.f32 %v1178, %v3015
        %v3144 = vmul.f32 %v1179, %v3016
        %v3145 = vmul.f32 %v1180, %v3017
        %v3146 = vmul.f32 %v1181, %v3018
        %v3147 = vmul.f32 %v1182, %v3019
        %v3148 = vmul.f32 %v1183, %v3020
        %v3149 = vmul.f32 %v1184, %v3021
        %v3150 = vmul.f32 %v1185, %v3022
        %v3151 = vmul.f32 %v1186, %v3023
        %v3152 = vmul.f32 %v1187, %v3024
        %v3153 = vmul.f32 %v1188, %v3025
        %v3154 = vmul.f32 %v1189, %v3026
        %v3155 = vmul.f32 %v1190, %v3027
        %v3156 = vmul.f32 %v1191, %v3028
        %v3157 = vmul.f32 %v1192, %v3029
        %v3158 = vmul.f32 %v1193, %v3030
        %v3159 = vmul.f32 %v1194, %v3031
        %v3160 = vmul.f32 %v1195, %v3032
        %v3161 = vmul.f32 %v1196, %v3033
        %v3162 = vmul.f32 %v1197, %v3034
        %v3163 = vmul.f32 %v1198, %v3035
        %v3164 = vmul.f32 %v1199, %v3036
        %v3165 = vmul.f32 %v1200, %v3037
        %v3166 = vmul.f32 %v1201, %v3038
        %v3167 = vmul.f32 %v1202, %v3039
        %v3168 = vmul.f32 %v1203, %v3040
        %v3169 = vmul.f32 %v1204, %v3041
        %v3170 = vmul.f32 %v1205, %v3042
        %v3171 = vmul.f32 %v1206, %v3043
        %v3172 = vmul.f32 %v1207, %v3044
        %v3173 = vmul.f32 %v1208, %v3045
        %v3174 = vmul.f32 %v1209, %v3046
        %v3175 = vmul.f32 %v1210, %v3047
        %v3176 = vmul.f32 %v1211, %v3048
        %v3177 = vmul.f32 %v1212, %v3049
        %v3178 = vmul.f32 %v1213, %v3050
        %v3179 = vmul.f32 %v1214, %v3051
        %v3180 = vmul.f32 %v1215, %v3052
        %v3181 = vmul.f32 %v1216, %v3053
        %v3182 = vmul.f32 %v1217, %v3054
        %v3183 = vmul.f32 %v1218, %v3055
        %v3184 = vmul.f32 %v1219, %v3056
        %v3185 = vmul.f32 %v1220, %v3057
        %v3186 = vmul.f32 %v1221, %v3058
        %v3187 = vmul.f32 %v1222, %v3059
        %v3188 = vmul.f32 %v1223, %v3060
        %v3189 = vmul.f32 %v1224, %v3061
        %v3190 = vmul.f32 %v1225, %v3062
        %v3191 = vmul.f32 %v1226, %v3063
        %v3192 = vmul.f32 %v1227, %v3064
        %v3193 = vmul.f32 %v1228, %v3065
        %v3194 = vmul.f32 %v1229, %v3066
        %v3195 = vmul.f32 %v1230, %v3067
        %v3196 = vmul.f32 %v1231, %v3068
        %v3197 = vmul.f32 %v1232, %v3069
        %v3198 = vmul.f32 %v1233, %v3070
        %v3199 = vmul.f32 %v1234, %v3071
        %v3200 = vmul.f32 %v1235, %v3072
        %v3201 = vmul.f32 %v1236, %v3073
        %v3202 = vmul.f32 %v1237, %v3074
        %v3203 = vmul.f32 %v1238, %v3075
        %v3204 = vmul.f32 %v1239, %v3076
        %v3205 = vmul.f32 %v1240, %v3077
        %v3206 = vmul.f32 %v1241, %v3078
        %v3207 = vmul.f32 %v1242, %v3079
        %v3208 = vmul.f32 %v1243, %v3080
        %v3209 = vmul.f32 %v1244, %v3081
        %v3210 = vmul.f32 %v1245, %v3082
        %v3211 = vmul.f32 %v1246, %v3083
        %v3212 = vmul.f32 %v1247, %v3084
        %v3213 = vmul.f32 %v1248, %v3085
        %v3214 = vmul.f32 %v1249, %v3086
        %v3215 = vmul.f32 %v1250, %v3087
        %v3216 = vmul.f32 %v1251, %v3088
        %v3217 = vmul.f32 %v1252, %v3089
        %v3218 = vmul.f32 %v1253, %v3090
        %v3219 = vmul.f32 %v1254, %v3091
        %v3220 = vmul.f32 %v1255, %v3092
        %v3221 = vmul.f32 %v1256, %v3093
        %v3222 = vmul.f32 %v1257, %v3094
        %v3223 = vmul.f32 %v1258, %v3095
        %v3224 = vmul.f32 %v1259, %v3096
        %v3225 = vmul.f32 %v1260, %v3097
        %v3226 = vmul.f32 %v1261, %v3098
        %v3227 = vmul.f32 %v1262, %v3099
        %v3228 = vmul.f32 %v1263, %v3100
        %v3229 = vmul.f32 %v1264, %v3101
        %v3230 = vmul.f32 %v1265, %v3102
        %v3231 = vmul.f32 %v1266, %v3103
        %v3232 = vmul.f32 %v1267, %v3104
        %v3233 = vmul.f32 %v1268, %v3105
        %v3234 = vmul.f32 %v1269, %v3106
        %v3235 = vmul.f32 %v1270, %v3107
        %v3236 = vmul.f32 %v1271, %v3108
        %v3237 = vmul.f32 %v1272, %v3109
        %v3238 = vmul.f32 %v1273, %v3110
        %v3239 = vmul.f32 %v1274, %v3111
        %v3240 = vmul.f32 %v1275, %v3112
        %v3241 = vmul.f32 %v1276, %v3113
        %v3242 = vmul.f32 %v1277, %v3114
        %v3243 = vmul.f32 %v1278, %v3115
        %v3244 = vmul.f32 %v1279, %v3116
        %v3245 = vmul.f32 %v1280, %v3117
        %v3246 = vmul.f32 %v1281, %v3118
        %v3247 = vmul.f32 %v1282, %v3119
        %v3248 = vmul.f32 %v1283, %v3120
        %v3249 = vmul.f32 %v1284, %v3121
        %v3250 = vmul.f32 %v1285, %v3122
        %v3251 = vmul.f32 %v1286, %v3123
        %v3252 = vmul.f32 %v1287, %v3124
        %3253 = vst [vmem:[%s367] sm:$0xff] %v3125
        %3254 = vst [vmem:[%s367 + $0x8] sm:$0xff] %v3126
        %3255 = vst [vmem:[%s367 + $0x10] sm:$0xff] %v3127
        %3256 = vst [vmem:[%s367 + $0x18] sm:$0xff] %v3128
        %3257 = vst [vmem:[%s367 + $0x20] sm:$0xff] %v3129
        %3258 = vst [vmem:[%s367 + $0x28] sm:$0xff] %v3130
        %3259 = vst [vmem:[%s367 + $0x30] sm:$0xff] %v3131
        %3260 = vst [vmem:[%s367 + $0x38] sm:$0xff] %v3132
        %3261 = vst [vmem:[%s367 + $0x40] sm:$0xff] %v3133
        %3262 = vst [vmem:[%s367 + $0x48] sm:$0xff] %v3134
        %3263 = vst [vmem:[%s367 + $0x50] sm:$0xff] %v3135
        %3264 = vst [vmem:[%s367 + $0x58] sm:$0xff] %v3136
        %3265 = vst [vmem:[%s367 + $0x60] sm:$0xff] %v3137
        %3266 = vst [vmem:[%s367 + $0x68] sm:$0xff] %v3138
        %3267 = vst [vmem:[%s367 + $0x70] sm:$0xff] %v3139
        %3268 = vst [vmem:[%s367 + $0x78] sm:$0xff] %v3140
        %3269 = vst [vmem:[%s367 + $0x80] sm:$0xff] %v3141
        %3270 = vst [vmem:[%s367 + $0x88] sm:$0xff] %v3142
        %3271 = vst [vmem:[%s367 + $0x90] sm:$0xff] %v3143
        %3272 = vst [vmem:[%s367 + $0x98] sm:$0xff] %v3144
        %3273 = vst [vmem:[%s367 + $0xa0] sm:$0xff] %v3145
        %3274 = vst [vmem:[%s367 + $0xa8] sm:$0xff] %v3146
        %3275 = vst [vmem:[%s367 + $0xb0] sm:$0xff] %v3147
        %3276 = vst [vmem:[%s367 + $0xb8] sm:$0xff] %v3148
        %3277 = vst [vmem:[%s367 + $0xc0] sm:$0xff] %v3149
        %3278 = vst [vmem:[%s367 + $0xc8] sm:$0xff] %v3150
        %3279 = vst [vmem:[%s367 + $0xd0] sm:$0xff] %v3151
        %3280 = vst [vmem:[%s367 + $0xd8] sm:$0xff] %v3152
        %3281 = vst [vmem:[%s367 + $0xe0] sm:$0xff] %v3153
        %3282 = vst [vmem:[%s367 + $0xe8] sm:$0xff] %v3154
        %3283 = vst [vmem:[%s367 + $0xf0] sm:$0xff] %v3155
        %3284 = vst [vmem:[%s367 + $0xf8] sm:$0xff] %v3156
        %3285 = vst [vmem:[%s367 + $0x100] sm:$0xff] %v3157
        %3286 = vst [vmem:[%s367 + $0x108] sm:$0xff] %v3158
        %3287 = vst [vmem:[%s367 + $0x110] sm:$0xff] %v3159
        %3288 = vst [vmem:[%s367 + $0x118] sm:$0xff] %v3160
        %3289 = vst [vmem:[%s367 + $0x120] sm:$0xff] %v3161
        %3290 = vst [vmem:[%s367 + $0x128] sm:$0xff] %v3162
        %3291 = vst [vmem:[%s367 + $0x130] sm:$0xff] %v3163
        %3292 = vst [vmem:[%s367 + $0x138] sm:$0xff] %v3164
        %3293 = vst [vmem:[%s367 + $0x140] sm:$0xff] %v3165
        %3294 = vst [vmem:[%s367 + $0x148] sm:$0xff] %v3166
        %3295 = vst [vmem:[%s367 + $0x150] sm:$0xff] %v3167
        %3296 = vst [vmem:[%s367 + $0x158] sm:$0xff] %v3168
        %3297 = vst [vmem:[%s367 + $0x160] sm:$0xff] %v3169
        %3298 = vst [vmem:[%s367 + $0x168] sm:$0xff] %v3170
        %3299 = vst [vmem:[%s367 + $0x170] sm:$0xff] %v3171
        %3300 = vst [vmem:[%s367 + $0x178] sm:$0xff] %v3172
        %3301 = vst [vmem:[%s367 + $0x180] sm:$0xff] %v3173
        %3302 = vst [vmem:[%s367 + $0x188] sm:$0xff] %v3174
        %3303 = vst [vmem:[%s367 + $0x190] sm:$0xff] %v3175
        %3304 = vst [vmem:[%s367 + $0x198] sm:$0xff] %v3176
        %3305 = vst [vmem:[%s367 + $0x1a0] sm:$0xff] %v3177
        %3306 = vst [vmem:[%s367 + $0x1a8] sm:$0xff] %v3178
        %3307 = vst [vmem:[%s367 + $0x1b0] sm:$0xff] %v3179
        %3308 = vst [vmem:[%s367 + $0x1b8] sm:$0xff] %v3180
        %3309 = vst [vmem:[%s367 + $0x1c0] sm:$0xff] %v3181
        %3310 = vst [vmem:[%s367 + $0x1c8] sm:$0xff] %v3182
        %3311 = vst [vmem:[%s367 + $0x1d0] sm:$0xff] %v3183
        %3312 = vst [vmem:[%s367 + $0x1d8] sm:$0xff] %v3184
        %3313 = vst [vmem:[%s367 + $0x1e0] sm:$0xff] %v3185
        %3314 = vst [vmem:[%s367 + $0x1e8] sm:$0xff] %v3186
        %3315 = vst [vmem:[%s367 + $0x1f0] sm:$0xff] %v3187
        %3316 = vst [vmem:[%s367 + $0x1f8] sm:$0xff] %v3188
        %3317 = vst [vmem:[%s367 + $0x200] sm:$0xff] %v3189
        %3318 = vst [vmem:[%s367 + $0x208] sm:$0xff] %v3190
        %3319 = vst [vmem:[%s367 + $0x210] sm:$0xff] %v3191
        %3320 = vst [vmem:[%s367 + $0x218] sm:$0xff] %v3192
        %3321 = vst [vmem:[%s367 + $0x220] sm:$0xff] %v3193
        %3322 = vst [vmem:[%s367 + $0x228] sm:$0xff] %v3194
        %3323 = vst [vmem:[%s367 + $0x230] sm:$0xff] %v3195
        %3324 = vst [vmem:[%s367 + $0x238] sm:$0xff] %v3196
        %3325 = vst [vmem:[%s367 + $0x240] sm:$0xff] %v3197
        %3326 = vst [vmem:[%s367 + $0x248] sm:$0xff] %v3198
        %3327 = vst [vmem:[%s367 + $0x250] sm:$0xff] %v3199
        %3328 = vst [vmem:[%s367 + $0x258] sm:$0xff] %v3200
        %3329 = vst [vmem:[%s367 + $0x260] sm:$0xff] %v3201
        %3330 = vst [vmem:[%s367 + $0x268] sm:$0xff] %v3202
        %3331 = vst [vmem:[%s367 + $0x270] sm:$0xff] %v3203
        %3332 = vst [vmem:[%s367 + $0x278] sm:$0xff] %v3204
        %3333 = vst [vmem:[%s367 + $0x280] sm:$0xff] %v3205
        %3334 = vst [vmem:[%s367 + $0x288] sm:$0xff] %v3206
        %3335 = vst [vmem:[%s367 + $0x290] sm:$0xff] %v3207
        %3336 = vst [vmem:[%s367 + $0x298] sm:$0xff] %v3208
        %3337 = vst [vmem:[%s367 + $0x2a0] sm:$0xff] %v3209
        %3338 = vst [vmem:[%s367 + $0x2a8] sm:$0xff] %v3210
        %3339 = vst [vmem:[%s367 + $0x2b0] sm:$0xff] %v3211
        %3340 = vst [vmem:[%s367 + $0x2b8] sm:$0xff] %v3212
        %3341 = vst [vmem:[%s367 + $0x2c0] sm:$0xff] %v3213
        %3342 = vst [vmem:[%s367 + $0x2c8] sm:$0xff] %v3214
        %3343 = vst [vmem:[%s367 + $0x2d0] sm:$0xff] %v3215
        %3344 = vst [vmem:[%s367 + $0x2d8] sm:$0xff] %v3216
        %3345 = vst [vmem:[%s367 + $0x2e0] sm:$0xff] %v3217
        %3346 = vst [vmem:[%s367 + $0x2e8] sm:$0xff] %v3218
        %3347 = vst [vmem:[%s367 + $0x2f0] sm:$0xff] %v3219
        %3348 = vst [vmem:[%s367 + $0x2f8] sm:$0xff] %v3220
        %3349 = vst [vmem:[%s367 + $0x300] sm:$0xff] %v3221
        %3350 = vst [vmem:[%s367 + $0x308] sm:$0xff] %v3222
        %3351 = vst [vmem:[%s367 + $0x310] sm:$0xff] %v3223
        %3352 = vst [vmem:[%s367 + $0x318] sm:$0xff] %v3224
        %3353 = vst [vmem:[%s367 + $0x320] sm:$0xff] %v3225
        %3354 = vst [vmem:[%s367 + $0x328] sm:$0xff] %v3226
        %3355 = vst [vmem:[%s367 + $0x330] sm:$0xff] %v3227
        %3356 = vst [vmem:[%s367 + $0x338] sm:$0xff] %v3228
        %3357 = vst [vmem:[%s367 + $0x340] sm:$0xff] %v3229
        %3358 = vst [vmem:[%s367 + $0x348] sm:$0xff] %v3230
        %3359 = vst [vmem:[%s367 + $0x350] sm:$0xff] %v3231
        %3360 = vst [vmem:[%s367 + $0x358] sm:$0xff] %v3232
        %3361 = vst [vmem:[%s367 + $0x360] sm:$0xff] %v3233
        %3362 = vst [vmem:[%s367 + $0x368] sm:$0xff] %v3234
        %3363 = vst [vmem:[%s367 + $0x370] sm:$0xff] %v3235
        %3364 = vst [vmem:[%s367 + $0x378] sm:$0xff] %v3236
        %3365 = vst [vmem:[%s367 + $0x380] sm:$0xff] %v3237
        %3366 = vst [vmem:[%s367 + $0x388] sm:$0xff] %v3238
        %3367 = vst [vmem:[%s367 + $0x390] sm:$0xff] %v3239
        %3368 = vst [vmem:[%s367 + $0x398] sm:$0xff] %v3240
        %3369 = vst [vmem:[%s367 + $0x3a0] sm:$0xff] %v3241
        %3370 = vst [vmem:[%s367 + $0x3a8] sm:$0xff] %v3242
        %3371 = vst [vmem:[%s367 + $0x3b0] sm:$0xff] %v3243
        %3372 = vst [vmem:[%s367 + $0x3b8] sm:$0xff] %v3244
        %3373 = vst [vmem:[%s367 + $0x3c0] sm:$0xff] %v3245
        %3374 = vst [vmem:[%s367 + $0x3c8] sm:$0xff] %v3246
        %3375 = vst [vmem:[%s367 + $0x3d0] sm:$0xff] %v3247
        %3376 = vst [vmem:[%s367 + $0x3d8] sm:$0xff] %v3248
        %3377 = vst [vmem:[%s367 + $0x3e0] sm:$0xff] %v3249
        %3378 = vst [vmem:[%s367 + $0x3e8] sm:$0xff] %v3250
        %3379 = vst [vmem:[%s367 + $0x3f0] sm:$0xff] %v3251
        %3380 = vst [vmem:[%s367 + $0x3f8] sm:$0xff] %v3252
        %s3381 = sand.u32 %s174, 1
        %s3382 = scalar_lea.sflag [#allocation4], %s3381
        %s3383 = sand.u32 %s174, 1
        %s3384 = smul.addr %s3383, 1024
        %s3385 = scalar_lea.vmem [#allocation10], %s3384
        // Predicated region
        $region57: #{tpu_custom_call.1} parent=39 // pred_check
          %p3386 = pneg %p184
        $region58: #{tpu_custom_call.1} parent=39 // pred_check_branch
          %3388 = sbr.rel (%p3386) target = $region60
        $region59: #{tpu_custom_call.1} parent=39 // pred_region
          %s3389 = smul.u32 32, %s31
          %3391 = vsyncadd %s3382, 0
          %s3392 = smul.addr %s3389, 4
          %s3393 = smul.addr %s30, 256
          %s3394 = sadd.s32 %s3392, %s3393
          %s3395 = smul.addr %s3394, 8
          %s3396 = scalar_lea.hbm %s5, %s3395
          %s3397 = sshll.u32 %s3385, 4
          %s3398 = int_to_ptr.vmem [resolvable:$true] %s3397
          %s3399 = sshll.u32 %s3396, 4
          %s3400 = int_to_ptr.hbm [resolvable:$true] %s3399
          %3405 = dma.vmem_to_hbm [thread:$0]  %s3398, 16384, %s3400, %s3382, 512, 512, 32
        $region60: #{tpu_custom_call.1} parent=39 // pred_fallthru
          _
      $region40: #{tpu_custom_call.1} parent=5 // pred_fallthru
        _
      %p3406 = scmp.le.s32.totalorder 2, %s21
      // Predicated region
      $region61: #{tpu_custom_call.1} parent=5 // pred_check
        %p3407 = pneg %p3406
      $region62: #{tpu_custom_call.1} parent=5 // pred_check_branch
        %3409 = sbr.rel (%p3407) target = $region64
      $region63: #{tpu_custom_call.1} parent=5 // pred_region
        %s3410 = ssub.s32 %s21, 2
        // Predicated region
        $region65: #{tpu_custom_call.1} parent=63 // pred_check
          %p3411 = pneg %p190
        $region66: #{tpu_custom_call.1} parent=63 // pred_check_branch
          %3413 = sbr.rel (%p3411) target = $region68
        $region67: #{tpu_custom_call.1} parent=63 // pred_region
          %s3414 = sand.u32 %s175, 1
          %s3415 = scalar_lea.sflag [#allocation4], %s3414
          %s3416 = sand.u32 %s175, 1
          %s3417 = smul.addr %s3416, 1024
          %s3418 = scalar_lea.vmem [#allocation10], %s3417
          %3420 = dma.done %s3415, 16384
        $region68: #{tpu_custom_call.1} parent=63 // pred_fallthru
          _
      $region64: #{tpu_custom_call.1} parent=5 // pred_fallthru
        _
    $region6: #{tpu_custom_call.1} parent=1 // loop_footer
      %s25 = sadd.s32 1, %s21
    $region7: #{tpu_custom_call.1} parent=1 // loop_footer_branch
      %20 = sbr.rel target = $region3
    $region8: #{tpu_custom_call.1} parent=1 // loop_exit
      _
    %3421 = vsyncpa [#allocation3], 1
    %s3422 = scalar_lea.sflag [#allocation3], 1
    %3423 = vsyncpa %s3422, 1
    %3424 = vsyncpa [#allocation6], 1
    %s3425 = scalar_lea.sflag [#allocation6], 1
    %3426 = vsyncpa %s3425, 1
    %3427 = vsyncpa [#allocation9], 1
    %3428 = vsyncpa [#allocation4], 1
    %s3429 = scalar_lea.sflag [#allocation4], 1
    %3430 = vsyncpa %s3429, 1

</llo_original>
